<compile_context>
chip_gen: v7x
topology: tpu7x:2x2x1
jax: 0.10.0
libtpu: 0.0.40
codegen_flags: <defaults>
</compile_context>

<pallas_src>
import functools

import jax
import jax.numpy as jnp
from jax import lax
from jax.experimental import pallas as pl
from jax.experimental.pallas import tpu as pltpu


def _resolve_k(k, n):
    """Mirror of WeldonPool2dFunction.get_number_of_instances."""
    if k <= 0:
        return 0
    elif k < 1:
        return int(round(k * n))
    elif k > n:
        return int(n)
    else:
        return int(k)


def _round_up(x, m):
    return ((x + m - 1) // m) * m


def _vmem_capacity_bytes():
    """Per-core VMEM capacity; conservative (v7x-sized) fallback if the query fails."""
    try:
        return int(pltpu.get_tpu_info().vmem_capacity_bytes)
    except Exception:
        return 64 << 20


def _valid_batch_tiles(b):
    """tb choices that keep the (tb, C_pad) output block legal under the (8,128)
    rule: tb must be a multiple of 8 or equal to the full batch."""
    return [d for d in range(1, b + 1) if b % d == 0 and (d % 8 == 0 or d == b)]


def _pick_batch_tile(b, c_in, n, requested, x_itemsize, tile_budget_bytes):
    """Pick a batch tile that (a) fits 2 pipeline buffers of the activation tile
    in the budget, (b) prefers an even grid of >= 2 steps (v7x 2-TC sharding and
    pipelining), (c) is <= 32."""
    valid = _valid_batch_tiles(b)
    if requested is not None:
        r = max(1, min(int(requested), b))
        fits = [d for d in valid if d <= r]
        return max(fits) if fits else min(valid)
    bytes_per_batch = max(1, c_in * n * x_itemsize)
    cap = max(1, tile_budget_bytes // (2 * bytes_per_batch))
    cap = min(cap, 32)
    fits = [d for d in valid if d <= cap]
    if not fits:
        return min(valid)

    def pref(d):
        g = b // d
        return (g >= 2, g % 2 == 0, d)   # >=2 steps, even grid, then largest tile

    return max(fits, key=pref)


def _topk_sum_lanes(s, k, col_ids, n, largest):
    """Sum of the k largest (largest=True) or smallest values of s along the lane
    axis.  s: (C, N) f32.  Returns (C, 1) f32.  Ties are broken by first
    occurrence, matching a sort-based top-k sum exactly."""
    c = s.shape[0]
    if k <= 0:
        return jnp.zeros((c, 1), jnp.float32)
    neutral = -jnp.inf if largest else jnp.inf
    acc = jnp.zeros((c, 1), jnp.float32)
    cur = s
    for step in range(k):
        if largest:
            m = jnp.max(cur, axis=1, keepdims=True)       # (C, 1)
        else:
            m = jnp.min(cur, axis=1, keepdims=True)
        acc = acc + m
        if step + 1 < k:                                  # skip mask on last step
            first = jnp.min(jnp.where(cur == m, col_ids, n), axis=1, keepdims=True)
            cur = jnp.where(col_ids == first, neutral, cur)
    return acc


def _weldon_kernel(x_ref, w_ref, b_ref, o_ref, *, kmax, kmin, tb, matmul_dtype):
    """x_ref: (TB, C_in, N)  activation in native layout (no HBM transpose)
       w_ref: (C_pad, C_in)  1x1-conv weight, classes zero-padded to 128 lanes
       b_ref: (1, C_pad)     bias (zero-padded)
       o_ref: (TB, C_pad)    per-image class scores
    """
    c_pad = w_ref.shape[0]
    n = x_ref.shape[2]

    w = w_ref[...]                                        # load once per grid step
    if matmul_dtype is not None:
        w = w.astype(matmul_dtype)
    bias = b_ref[...]                                     # (1, C_pad)

    # Hoisted lane-index iota (1, N); broadcast inside the wheres.
    col_ids = lax.broadcasted_iota(jnp.int32, (1, n), 1)

    cols = []
    for t in range(tb):                                   # tb is small & static
        xt = x_ref[t]                                     # (C_in, N)
        if matmul_dtype is not None:
            xt = xt.astype(matmul_dtype)
        # 1x1 conv == channel matmul on the MXU; keep the (C_pad, N) layout.
        s = jnp.dot(w, xt, preferred_element_type=jnp.float32)       # (C_pad, N)

        # Back-to-back chains: at most {s, cur} live at a time.
        # kmax == 0 is guarded (PyTorch would produce 0/0 = NaN for that config).
        if kmax > 0:
            out_t = _topk_sum_lanes(s, kmax, col_ids, n, largest=True) * (1.0 / kmax)
        else:
            out_t = jnp.zeros((c_pad, 1), jnp.float32)
        if kmin > 0:
            bot = _topk_sum_lanes(s, kmin, col_ids, n, largest=False) * (1.0 / kmin)
            out_t = (out_t + bot) * 0.5
        cols.append(out_t)                                # (C_pad, 1)

    out_cn = cols[0] if tb == 1 else jnp.concatenate(cols, axis=1)    # (C_pad, tb)
    # Single tiny transpose + single bias add + single dense full-block store.
    out = jnp.transpose(out_cn, (1, 0)) + bias                        # (tb, C_pad)
    o_ref[...] = out.astype(o_ref.dtype)


def weldon_head_forward(x_nchw, weight, bias, kmax=1, kmin=None,
                        batch_tile=None, matmul_dtype=None):
    """Forward pass of WeldonHead.

    x_nchw : (B, C_in, H, W) float32
    weight : (num_classes, C_in) float32   (1x1 conv weight, squeezed)
    bias   : (num_classes,) float32
    matmul_dtype : optional (e.g. jnp.bfloat16) reduced-precision MXU path
    returns: (B, num_classes) float32
    """
    if kmin is None:
        kmin = kmax
    b, c_in, h, w = x_nchw.shape
    n = h * w
    num_classes = weight.shape[0]

    k_max = _resolve_k(kmax, n)
    k_min = _resolve_k(kmin, n)

    # Native layout: NCHW -> (B, C_in, N) is a free reshape (no HBM transpose).
    x_bcn = x_nchw.reshape(b, c_in, n)

    # Lane-dense class dimension: zero-pad num_classes up to a multiple of 128.
    c_pad = _round_up(num_classes, 128)
    w_pad = jnp.zeros((c_pad, c_in), weight.dtype).at[:num_classes, :].set(weight)
    b_pad = jnp.zeros((1, c_pad), bias.dtype).at[0, :num_classes].set(bias)

    # Generation-aware budgets (v7x: 64 MiB VMEM / 2 TCs; v5e/v6e: 128 MiB / 1 TC).
    vmem_cap = _vmem_capacity_bytes()
    vmem_ceiling = min(int(vmem_cap * 0.75), 96 << 20)
    tile_budget = min(vmem_cap // 5, 24 << 20)

    tb = _pick_batch_tile(b, c_in, n, batch_tile, x_bcn.dtype.itemsize, tile_budget)
    grid = (b // tb,)

    # Explicit VMEM budget: double-buffered activation tile + weights/out +
    # in-kernel (C_pad, N) temporaries + slack, clamped to the per-gen ceiling.
    x_tile_bytes = tb * c_in * n * x_bcn.dtype.itemsize
    w_bytes = c_pad * c_in * w_pad.dtype.itemsize
    out_bytes = tb * c_pad * 4
    tmp_bytes = 3 * c_pad * _round_up(n, 128) * 4
    want = 2 * x_tile_bytes + 2 * (w_bytes + out_bytes) + tmp_bytes + (2 << 20)
    vmem_limit_bytes = int(min(max(want, 16 << 20), vmem_ceiling))

    kernel = functools.partial(_weldon_kernel, kmax=k_max, kmin=k_min, tb=tb,
                               matmul_dtype=matmul_dtype)

    out_padded = pl.pallas_call(
        kernel,
        out_shape=jax.ShapeDtypeStruct((b, c_pad), jnp.float32),
        grid_spec=pltpu.PrefetchScalarGridSpec(
            num_scalar_prefetch=0,
            grid=grid,
            in_specs=[
                pl.BlockSpec((tb, c_in, n), lambda i: (i, 0, 0)),
                pl.BlockSpec((c_pad, c_in), lambda i: (0, 0)),
                pl.BlockSpec((1, c_pad), lambda i: (0, 0)),
            ],
            out_specs=pl.BlockSpec((tb, c_pad), lambda i: (i, 0)),
        ),
        compiler_params=pltpu.CompilerParams(
            dimension_semantics=("parallel",),
            vmem_limit_bytes=vmem_limit_bytes),
    )(x_bcn, w_pad, b_pad)

    return out_padded[:, :num_classes]


def weldon_head_reference(x_nchw, weight, bias, kmax=1, kmin=None):
    """Pure-JAX reference (sort-based, mirrors the PyTorch autograd.Function)."""
    if kmin is None:
        kmin = kmax
    b, c_in, h, w = x_nchw.shape
    n = h * w
    k_max = _resolve_k(kmax, n)
    k_min = _resolve_k(kmin, n)

    y = jnp.einsum('bchw,kc->bkhw', x_nchw, weight,
                   precision=lax.Precision.HIGHEST) + bias[None, :, None, None]
    y = y.reshape(b, weight.shape[0], n)
    s = jnp.sort(y, axis=2)[:, :, ::-1]                                # descending
    out = s[:, :, :k_max].sum(axis=2) / k_max
    if k_min > 0:
        out = (out + s[:, :, n - k_min:].sum(axis=2) / k_min) / 2.0
    return out


if __name__ == "__main__":
    key = jax.random.PRNGKey(0)
    k1, k2, k3 = jax.random.split(key, 3)

    B, C_IN, H, W = 4, 32, 8, 8
    NUM_CLASSES = 16

    x = jax.random.normal(k1, (B, C_IN, H, W), dtype=jnp.float32)
    # Deterministic "kaiming-ish" init for the 1x1 conv transfer layer.
    weight = jax.random.normal(k2, (NUM_CLASSES, C_IN), dtype=jnp.float32) * (2.0 / C_IN) ** 0.5
    bias = jax.random.normal(k3, (NUM_CLASSES,), dtype=jnp.float32) * 0.01

    # Config 1: module-default kmin (kmin=None -> kmin=kmax).
    out1 = jax.block_until_ready(weldon_head_forward(x, weight, bias, kmax=2, kmin=None))
    ref1 = weldon_head_reference(x, weight, bias, kmax=2, kmin=None)
    assert out1.shape == (B, NUM_CLASSES)
    assert jnp.allclose(out1, ref1, atol=1e-4, rtol=1e-4), "mismatch vs reference (kmax=2)"

    # Config 2: asymmetric kmax/kmin exercises both extraction chains.
    out2 = jax.block_until_ready(weldon_head_forward(x, weight, bias, kmax=3, kmin=1))
    ref2 = weldon_head_reference(x, weight, bias, kmax=3, kmin=1)
    assert jnp.allclose(out2, ref2, atol=1e-4, rtol=1e-4), "mismatch vs reference (kmax=3,kmin=1)"

    # TODO(synk): backward pass (scatter of grads to top/bottom-k indices) and the
    # loss/accuracy heads are not part of this forward kernel.
    print("KERNEL_OK")
</pallas_src>

<mosaic_0001>
module attributes {stable_mosaic.version = 11 : i64} {
  func.func @_weldon_kernel(%arg0: i32, %arg1: memref<4x32x64xf32, #tpu.memory_space<vmem>>, %arg2: memref<128x32xf32, #tpu.memory_space<vmem>>, %arg3: memref<1x128xf32, #tpu.memory_space<vmem>>, %arg4: memref<4x128xf32, #tpu.memory_space<vmem>>) attributes {dimension_semantics = [#tpu.dimension_semantics<parallel>], iteration_bounds = array<i64: 1>, scalar_prefetch = 0 : i64, scratch_operands = 0 : i64, tpu.core_type = #tpu.core_type<tc>, window_params = [{transform_indices = @transform_0, window_bounds = array<i64: 4, 32, 64>}, {pipeline_mode = #tpu.pipeline_mode<synchronous>, transform_indices = @transform_1, window_bounds = array<i64: 128, 32>}, {pipeline_mode = #tpu.pipeline_mode<synchronous>, transform_indices = @transform_2, window_bounds = array<i64: 1, 128>}, {transform_indices = @transform_3, window_bounds = array<i64: 4, 128>}]} {
    %c0 = arith.constant 0 : index
    %c0_0 = arith.constant 0 : index
    %0 = vector.load %arg2[%c0, %c0_0] : memref<128x32xf32, #tpu.memory_space<vmem>>, vector<128x32xf32>
    %c0_1 = arith.constant 0 : index
    %c0_2 = arith.constant 0 : index
    %1 = vector.load %arg3[%c0_1, %c0_2] : memref<1x128xf32, #tpu.memory_space<vmem>>, vector<1x128xf32>
    %2 = tpu.iota {dimensions = array<i32: 1>} : vector<1x64xi32>
    %c0_3 = arith.constant 0 : index
    %c0_4 = arith.constant 0 : index
    %c0_5 = arith.constant 0 : index
    %3 = vector.load %arg1[%c0_3, %c0_4, %c0_5] : memref<4x32x64xf32, #tpu.memory_space<vmem>>, vector<1x32x64xf32>
    %4 = vector.shape_cast %3 : vector<1x32x64xf32> to vector<32x64xf32>
    %cst = arith.constant dense<0.000000e+00> : vector<128x64xf32>
    %5 = tpu.matmul %0, %4, %cst {dimension_numbers = #tpu.dot_dimension_numbers<[1], [0], [0], [1], [0, 0, 1, 1], [], []>} : vector<128x32xf32>, vector<32x64xf32>, vector<128x64xf32> -> vector<128x64xf32>
    %cst_6 = arith.constant 0.000000e+00 : f32
    %6 = vector.broadcast %cst_6 : f32 to vector<128x1xf32>
    %cst_7 = arith.constant dense<0xFF800000> : vector<128xf32>
    %7 = vector.multi_reduction <maximumf>, %5, %cst_7 [1] : vector<128x64xf32> to vector<128xf32>
    %8 = vector.shape_cast %7 : vector<128xf32> to vector<128x1xf32>
    %9 = arith.addf %6, %8 : vector<128x1xf32>
    %10 = vector.broadcast %8 : vector<128x1xf32> to vector<128x64xf32>
    %11 = arith.cmpf oeq, %5, %10 : vector<128x64xf32>
    %c64_i32 = arith.constant 64 : i32
    %12 = vector.shape_cast %2 : vector<1x64xi32> to vector<1x64xi32>
    %13 = vector.broadcast %12 : vector<1x64xi32> to vector<128x64xi32>
    %14 = vector.broadcast %c64_i32 : i32 to vector<128x64xi32>
    %15 = arith.select %11, %13, %14 : vector<128x64xi1>, vector<128x64xi32>
    %cst_8 = arith.constant dense<2147483647> : vector<128xi32>
    %16 = vector.multi_reduction <minsi>, %15, %cst_8 [1] : vector<128x64xi32> to vector<128xi32>
    %17 = vector.shape_cast %16 : vector<128xi32> to vector<128x1xi32>
    %18 = vector.broadcast %2 : vector<1x64xi32> to vector<128x64xi32>
    %19 = vector.broadcast %17 : vector<128x1xi32> to vector<128x64xi32>
    %20 = arith.cmpi eq, %18, %19 : vector<128x64xi32>
    %cst_9 = arith.constant 0xFF800000 : f32
    %21 = vector.broadcast %cst_9 : f32 to vector<128x64xf32>
    %22 = arith.select %20, %21, %5 : vector<128x64xi1>, vector<128x64xf32>
    %cst_10 = arith.constant dense<0xFF800000> : vector<128xf32>
    %23 = vector.multi_reduction <maximumf>, %22, %cst_10 [1] : vector<128x64xf32> to vector<128xf32>
    %24 = vector.shape_cast %23 : vector<128xf32> to vector<128x1xf32>
    %25 = arith.addf %9, %24 : vector<128x1xf32>
    %cst_11 = arith.constant 5.000000e-01 : f32
    %26 = vector.broadcast %cst_11 : f32 to vector<128x1xf32>
    %27 = arith.mulf %25, %26 : vector<128x1xf32>
    %cst_12 = arith.constant 0.000000e+00 : f32
    %28 = vector.broadcast %cst_12 : f32 to vector<128x1xf32>
    %cst_13 = arith.constant dense<0x7F800000> : vector<128xf32>
    %29 = vector.multi_reduction <minimumf>, %5, %cst_13 [1] : vector<128x64xf32> to vector<128xf32>
    %30 = vector.shape_cast %29 : vector<128xf32> to vector<128x1xf32>
    %31 = arith.addf %28, %30 : vector<128x1xf32>
    %32 = vector.broadcast %30 : vector<128x1xf32> to vector<128x64xf32>
    %33 = arith.cmpf oeq, %5, %32 : vector<128x64xf32>
    %c64_i32_14 = arith.constant 64 : i32
    %34 = vector.shape_cast %2 : vector<1x64xi32> to vector<1x64xi32>
    %35 = vector.broadcast %34 : vector<1x64xi32> to vector<128x64xi32>
    %36 = vector.broadcast %c64_i32_14 : i32 to vector<128x64xi32>
    %37 = arith.select %33, %35, %36 : vector<128x64xi1>, vector<128x64xi32>
    %cst_15 = arith.constant dense<2147483647> : vector<128xi32>
    %38 = vector.multi_reduction <minsi>, %37, %cst_15 [1] : vector<128x64xi32> to vector<128xi32>
    %39 = vector.shape_cast %38 : vector<128xi32> to vector<128x1xi32>
    %40 = vector.broadcast %2 : vector<1x64xi32> to vector<128x64xi32>
    %41 = vector.broadcast %39 : vector<128x1xi32> to vector<128x64xi32>
    %42 = arith.cmpi eq, %40, %41 : vector<128x64xi32>
    %cst_16 = arith.constant 0x7F800000 : f32
    %43 = vector.broadcast %cst_16 : f32 to vector<128x64xf32>
    %44 = arith.select %42, %43, %5 : vector<128x64xi1>, vector<128x64xf32>
    %cst_17 = arith.constant dense<0x7F800000> : vector<128xf32>
    %45 = vector.multi_reduction <minimumf>, %44, %cst_17 [1] : vector<128x64xf32> to vector<128xf32>
    %46 = vector.shape_cast %45 : vector<128xf32> to vector<128x1xf32>
    %47 = arith.addf %31, %46 : vector<128x1xf32>
    %cst_18 = arith.constant 5.000000e-01 : f32
    %48 = vector.broadcast %cst_18 : f32 to vector<128x1xf32>
    %49 = arith.mulf %47, %48 : vector<128x1xf32>
    %50 = arith.addf %27, %49 : vector<128x1xf32>
    %cst_19 = arith.constant 5.000000e-01 : f32
    %51 = vector.broadcast %cst_19 : f32 to vector<128x1xf32>
    %52 = arith.mulf %50, %51 : vector<128x1xf32>
    %c1 = arith.constant 1 : index
    %c0_20 = arith.constant 0 : index
    %c0_21 = arith.constant 0 : index
    %53 = vector.load %arg1[%c1, %c0_20, %c0_21] : memref<4x32x64xf32, #tpu.memory_space<vmem>>, vector<1x32x64xf32>
    %54 = vector.shape_cast %53 : vector<1x32x64xf32> to vector<32x64xf32>
    %cst_22 = arith.constant dense<0.000000e+00> : vector<128x64xf32>
    %55 = tpu.matmul %0, %54, %cst_22 {dimension_numbers = #tpu.dot_dimension_numbers<[1], [0], [0], [1], [0, 0, 1, 1], [], []>} : vector<128x32xf32>, vector<32x64xf32>, vector<128x64xf32> -> vector<128x64xf32>
    %cst_23 = arith.constant 0.000000e+00 : f32
    %56 = vector.broadcast %cst_23 : f32 to vector<128x1xf32>
    %cst_24 = arith.constant dense<0xFF800000> : vector<128xf32>
    %57 = vector.multi_reduction <maximumf>, %55, %cst_24 [1] : vector<128x64xf32> to vector<128xf32>
    %58 = vector.shape_cast %57 : vector<128xf32> to vector<128x1xf32>
    %59 = arith.addf %56, %58 : vector<128x1xf32>
    %60 = vector.broadcast %58 : vector<128x1xf32> to vector<128x64xf32>
    %61 = arith.cmpf oeq, %55, %60 : vector<128x64xf32>
    %c64_i32_25 = arith.constant 64 : i32
    %62 = vector.shape_cast %2 : vector<1x64xi32> to vector<1x64xi32>
    %63 = vector.broadcast %62 : vector<1x64xi32> to vector<128x64xi32>
    %64 = vector.broadcast %c64_i32_25 : i32 to vector<128x64xi32>
    %65 = arith.select %61, %63, %64 : vector<128x64xi1>, vector<128x64xi32>
    %cst_26 = arith.constant dense<2147483647> : vector<128xi32>
    %66 = vector.multi_reduction <minsi>, %65, %cst_26 [1] : vector<128x64xi32> to vector<128xi32>
    %67 = vector.shape_cast %66 : vector<128xi32> to vector<128x1xi32>
    %68 = vector.broadcast %2 : vector<1x64xi32> to vector<128x64xi32>
    %69 = vector.broadcast %67 : vector<128x1xi32> to vector<128x64xi32>
    %70 = arith.cmpi eq, %68, %69 : vector<128x64xi32>
    %cst_27 = arith.constant 0xFF800000 : f32
    %71 = vector.broadcast %cst_27 : f32 to vector<128x64xf32>
    %72 = arith.select %70, %71, %55 : vector<128x64xi1>, vector<128x64xf32>
    %cst_28 = arith.constant dense<0xFF800000> : vector<128xf32>
    %73 = vector.multi_reduction <maximumf>, %72, %cst_28 [1] : vector<128x64xf32> to vector<128xf32>
    %74 = vector.shape_cast %73 : vector<128xf32> to vector<128x1xf32>
    %75 = arith.addf %59, %74 : vector<128x1xf32>
    %cst_29 = arith.constant 5.000000e-01 : f32
    %76 = vector.broadcast %cst_29 : f32 to vector<128x1xf32>
    %77 = arith.mulf %75, %76 : vector<128x1xf32>
    %cst_30 = arith.constant 0.000000e+00 : f32
    %78 = vector.broadcast %cst_30 : f32 to vector<128x1xf32>
    %cst_31 = arith.constant dense<0x7F800000> : vector<128xf32>
    %79 = vector.multi_reduction <minimumf>, %55, %cst_31 [1] : vector<128x64xf32> to vector<128xf32>
    %80 = vector.shape_cast %79 : vector<128xf32> to vector<128x1xf32>
    %81 = arith.addf %78, %80 : vector<128x1xf32>
    %82 = vector.broadcast %80 : vector<128x1xf32> to vector<128x64xf32>
    %83 = arith.cmpf oeq, %55, %82 : vector<128x64xf32>
    %c64_i32_32 = arith.constant 64 : i32
    %84 = vector.shape_cast %2 : vector<1x64xi32> to vector<1x64xi32>
    %85 = vector.broadcast %84 : vector<1x64xi32> to vector<128x64xi32>
    %86 = vector.broadcast %c64_i32_32 : i32 to vector<128x64xi32>
    %87 = arith.select %83, %85, %86 : vector<128x64xi1>, vector<128x64xi32>
    %cst_33 = arith.constant dense<2147483647> : vector<128xi32>
    %88 = vector.multi_reduction <minsi>, %87, %cst_33 [1] : vector<128x64xi32> to vector<128xi32>
    %89 = vector.shape_cast %88 : vector<128xi32> to vector<128x1xi32>
    %90 = vector.broadcast %2 : vector<1x64xi32> to vector<128x64xi32>
    %91 = vector.broadcast %89 : vector<128x1xi32> to vector<128x64xi32>
    %92 = arith.cmpi eq, %90, %91 : vector<128x64xi32>
    %cst_34 = arith.constant 0x7F800000 : f32
    %93 = vector.broadcast %cst_34 : f32 to vector<128x64xf32>
    %94 = arith.select %92, %93, %55 : vector<128x64xi1>, vector<128x64xf32>
    %cst_35 = arith.constant dense<0x7F800000> : vector<128xf32>
    %95 = vector.multi_reduction <minimumf>, %94, %cst_35 [1] : vector<128x64xf32> to vector<128xf32>
    %96 = vector.shape_cast %95 : vector<128xf32> to vector<128x1xf32>
    %97 = arith.addf %81, %96 : vector<128x1xf32>
    %cst_36 = arith.constant 5.000000e-01 : f32
    %98 = vector.broadcast %cst_36 : f32 to vector<128x1xf32>
    %99 = arith.mulf %97, %98 : vector<128x1xf32>
    %100 = arith.addf %77, %99 : vector<128x1xf32>
    %cst_37 = arith.constant 5.000000e-01 : f32
    %101 = vector.broadcast %cst_37 : f32 to vector<128x1xf32>
    %102 = arith.mulf %100, %101 : vector<128x1xf32>
    %c2 = arith.constant 2 : index
    %c0_38 = arith.constant 0 : index
    %c0_39 = arith.constant 0 : index
    %103 = vector.load %arg1[%c2, %c0_38, %c0_39] : memref<4x32x64xf32, #tpu.memory_space<vmem>>, vector<1x32x64xf32>
    %104 = vector.shape_cast %103 : vector<1x32x64xf32> to vector<32x64xf32>
    %cst_40 = arith.constant dense<0.000000e+00> : vector<128x64xf32>
    %105 = tpu.matmul %0, %104, %cst_40 {dimension_numbers = #tpu.dot_dimension_numbers<[1], [0], [0], [1], [0, 0, 1, 1], [], []>} : vector<128x32xf32>, vector<32x64xf32>, vector<128x64xf32> -> vector<128x64xf32>
    %cst_41 = arith.constant 0.000000e+00 : f32
    %106 = vector.broadcast %cst_41 : f32 to vector<128x1xf32>
    %cst_42 = arith.constant dense<0xFF800000> : vector<128xf32>
    %107 = vector.multi_reduction <maximumf>, %105, %cst_42 [1] : vector<128x64xf32> to vector<128xf32>
    %108 = vector.shape_cast %107 : vector<128xf32> to vector<128x1xf32>
    %109 = arith.addf %106, %108 : vector<128x1xf32>
    %110 = vector.broadcast %108 : vector<128x1xf32> to vector<128x64xf32>
    %111 = arith.cmpf oeq, %105, %110 : vector<128x64xf32>
    %c64_i32_43 = arith.constant 64 : i32
    %112 = vector.shape_cast %2 : vector<1x64xi32> to vector<1x64xi32>
    %113 = vector.broadcast %112 : vector<1x64xi32> to vector<128x64xi32>
    %114 = vector.broadcast %c64_i32_43 : i32 to vector<128x64xi32>
    %115 = arith.select %111, %113, %114 : vector<128x64xi1>, vector<128x64xi32>
    %cst_44 = arith.constant dense<2147483647> : vector<128xi32>
    %116 = vector.multi_reduction <minsi>, %115, %cst_44 [1] : vector<128x64xi32> to vector<128xi32>
    %117 = vector.shape_cast %116 : vector<128xi32> to vector<128x1xi32>
    %118 = vector.broadcast %2 : vector<1x64xi32> to vector<128x64xi32>
    %119 = vector.broadcast %117 : vector<128x1xi32> to vector<128x64xi32>
    %120 = arith.cmpi eq, %118, %119 : vector<128x64xi32>
    %cst_45 = arith.constant 0xFF800000 : f32
    %121 = vector.broadcast %cst_45 : f32 to vector<128x64xf32>
    %122 = arith.select %120, %121, %105 : vector<128x64xi1>, vector<128x64xf32>
    %cst_46 = arith.constant dense<0xFF800000> : vector<128xf32>
    %123 = vector.multi_reduction <maximumf>, %122, %cst_46 [1] : vector<128x64xf32> to vector<128xf32>
    %124 = vector.shape_cast %123 : vector<128xf32> to vector<128x1xf32>
    %125 = arith.addf %109, %124 : vector<128x1xf32>
    %cst_47 = arith.constant 5.000000e-01 : f32
    %126 = vector.broadcast %cst_47 : f32 to vector<128x1xf32>
    %127 = arith.mulf %125, %126 : vector<128x1xf32>
    %cst_48 = arith.constant 0.000000e+00 : f32
    %128 = vector.broadcast %cst_48 : f32 to vector<128x1xf32>
    %cst_49 = arith.constant dense<0x7F800000> : vector<128xf32>
    %129 = vector.multi_reduction <minimumf>, %105, %cst_49 [1] : vector<128x64xf32> to vector<128xf32>
    %130 = vector.shape_cast %129 : vector<128xf32> to vector<128x1xf32>
    %131 = arith.addf %128, %130 : vector<128x1xf32>
    %132 = vector.broadcast %130 : vector<128x1xf32> to vector<128x64xf32>
    %133 = arith.cmpf oeq, %105, %132 : vector<128x64xf32>
    %c64_i32_50 = arith.constant 64 : i32
    %134 = vector.shape_cast %2 : vector<1x64xi32> to vector<1x64xi32>
    %135 = vector.broadcast %134 : vector<1x64xi32> to vector<128x64xi32>
    %136 = vector.broadcast %c64_i32_50 : i32 to vector<128x64xi32>
    %137 = arith.select %133, %135, %136 : vector<128x64xi1>, vector<128x64xi32>
    %cst_51 = arith.constant dense<2147483647> : vector<128xi32>
    %138 = vector.multi_reduction <minsi>, %137, %cst_51 [1] : vector<128x64xi32> to vector<128xi32>
    %139 = vector.shape_cast %138 : vector<128xi32> to vector<128x1xi32>
    %140 = vector.broadcast %2 : vector<1x64xi32> to vector<128x64xi32>
    %141 = vector.broadcast %139 : vector<128x1xi32> to vector<128x64xi32>
    %142 = arith.cmpi eq, %140, %141 : vector<128x64xi32>
    %cst_52 = arith.constant 0x7F800000 : f32
    %143 = vector.broadcast %cst_52 : f32 to vector<128x64xf32>
    %144 = arith.select %142, %143, %105 : vector<128x64xi1>, vector<128x64xf32>
    %cst_53 = arith.constant dense<0x7F800000> : vector<128xf32>
    %145 = vector.multi_reduction <minimumf>, %144, %cst_53 [1] : vector<128x64xf32> to vector<128xf32>
    %146 = vector.shape_cast %145 : vector<128xf32> to vector<128x1xf32>
    %147 = arith.addf %131, %146 : vector<128x1xf32>
    %cst_54 = arith.constant 5.000000e-01 : f32
    %148 = vector.broadcast %cst_54 : f32 to vector<128x1xf32>
    %149 = arith.mulf %147, %148 : vector<128x1xf32>
    %150 = arith.addf %127, %149 : vector<128x1xf32>
    %cst_55 = arith.constant 5.000000e-01 : f32
    %151 = vector.broadcast %cst_55 : f32 to vector<128x1xf32>
    %152 = arith.mulf %150, %151 : vector<128x1xf32>
    %c3 = arith.constant 3 : index
    %c0_56 = arith.constant 0 : index
    %c0_57 = arith.constant 0 : index
    %153 = vector.load %arg1[%c3, %c0_56, %c0_57] : memref<4x32x64xf32, #tpu.memory_space<vmem>>, vector<1x32x64xf32>
    %154 = vector.shape_cast %153 : vector<1x32x64xf32> to vector<32x64xf32>
    %cst_58 = arith.constant dense<0.000000e+00> : vector<128x64xf32>
    %155 = tpu.matmul %0, %154, %cst_58 {dimension_numbers = #tpu.dot_dimension_numbers<[1], [0], [0], [1], [0, 0, 1, 1], [], []>} : vector<128x32xf32>, vector<32x64xf32>, vector<128x64xf32> -> vector<128x64xf32>
    %cst_59 = arith.constant 0.000000e+00 : f32
    %156 = vector.broadcast %cst_59 : f32 to vector<128x1xf32>
    %cst_60 = arith.constant dense<0xFF800000> : vector<128xf32>
    %157 = vector.multi_reduction <maximumf>, %155, %cst_60 [1] : vector<128x64xf32> to vector<128xf32>
    %158 = vector.shape_cast %157 : vector<128xf32> to vector<128x1xf32>
    %159 = arith.addf %156, %158 : vector<128x1xf32>
    %160 = vector.broadcast %158 : vector<128x1xf32> to vector<128x64xf32>
    %161 = arith.cmpf oeq, %155, %160 : vector<128x64xf32>
    %c64_i32_61 = arith.constant 64 : i32
    %162 = vector.shape_cast %2 : vector<1x64xi32> to vector<1x64xi32>
    %163 = vector.broadcast %162 : vector<1x64xi32> to vector<128x64xi32>
    %164 = vector.broadcast %c64_i32_61 : i32 to vector<128x64xi32>
    %165 = arith.select %161, %163, %164 : vector<128x64xi1>, vector<128x64xi32>
    %cst_62 = arith.constant dense<2147483647> : vector<128xi32>
    %166 = vector.multi_reduction <minsi>, %165, %cst_62 [1] : vector<128x64xi32> to vector<128xi32>
    %167 = vector.shape_cast %166 : vector<128xi32> to vector<128x1xi32>
    %168 = vector.broadcast %2 : vector<1x64xi32> to vector<128x64xi32>
    %169 = vector.broadcast %167 : vector<128x1xi32> to vector<128x64xi32>
    %170 = arith.cmpi eq, %168, %169 : vector<128x64xi32>
    %cst_63 = arith.constant 0xFF800000 : f32
    %171 = vector.broadcast %cst_63 : f32 to vector<128x64xf32>
    %172 = arith.select %170, %171, %155 : vector<128x64xi1>, vector<128x64xf32>
    %cst_64 = arith.constant dense<0xFF800000> : vector<128xf32>
    %173 = vector.multi_reduction <maximumf>, %172, %cst_64 [1] : vector<128x64xf32> to vector<128xf32>
    %174 = vector.shape_cast %173 : vector<128xf32> to vector<128x1xf32>
    %175 = arith.addf %159, %174 : vector<128x1xf32>
    %cst_65 = arith.constant 5.000000e-01 : f32
    %176 = vector.broadcast %cst_65 : f32 to vector<128x1xf32>
    %177 = arith.mulf %175, %176 : vector<128x1xf32>
    %cst_66 = arith.constant 0.000000e+00 : f32
    %178 = vector.broadcast %cst_66 : f32 to vector<128x1xf32>
    %cst_67 = arith.constant dense<0x7F800000> : vector<128xf32>
    %179 = vector.multi_reduction <minimumf>, %155, %cst_67 [1] : vector<128x64xf32> to vector<128xf32>
    %180 = vector.shape_cast %179 : vector<128xf32> to vector<128x1xf32>
    %181 = arith.addf %178, %180 : vector<128x1xf32>
    %182 = vector.broadcast %180 : vector<128x1xf32> to vector<128x64xf32>
    %183 = arith.cmpf oeq, %155, %182 : vector<128x64xf32>
    %c64_i32_68 = arith.constant 64 : i32
    %184 = vector.shape_cast %2 : vector<1x64xi32> to vector<1x64xi32>
    %185 = vector.broadcast %184 : vector<1x64xi32> to vector<128x64xi32>
    %186 = vector.broadcast %c64_i32_68 : i32 to vector<128x64xi32>
    %187 = arith.select %183, %185, %186 : vector<128x64xi1>, vector<128x64xi32>
    %cst_69 = arith.constant dense<2147483647> : vector<128xi32>
    %188 = vector.multi_reduction <minsi>, %187, %cst_69 [1] : vector<128x64xi32> to vector<128xi32>
    %189 = vector.shape_cast %188 : vector<128xi32> to vector<128x1xi32>
    %190 = vector.broadcast %2 : vector<1x64xi32> to vector<128x64xi32>
    %191 = vector.broadcast %189 : vector<128x1xi32> to vector<128x64xi32>
    %192 = arith.cmpi eq, %190, %191 : vector<128x64xi32>
    %cst_70 = arith.constant 0x7F800000 : f32
    %193 = vector.broadcast %cst_70 : f32 to vector<128x64xf32>
    %194 = arith.select %192, %193, %155 : vector<128x64xi1>, vector<128x64xf32>
    %cst_71 = arith.constant dense<0x7F800000> : vector<128xf32>
    %195 = vector.multi_reduction <minimumf>, %194, %cst_71 [1] : vector<128x64xf32> to vector<128xf32>
    %196 = vector.shape_cast %195 : vector<128xf32> to vector<128x1xf32>
    %197 = arith.addf %181, %196 : vector<128x1xf32>
    %cst_72 = arith.constant 5.000000e-01 : f32
    %198 = vector.broadcast %cst_72 : f32 to vector<128x1xf32>
    %199 = arith.mulf %197, %198 : vector<128x1xf32>
    %200 = arith.addf %177, %199 : vector<128x1xf32>
    %cst_73 = arith.constant 5.000000e-01 : f32
    %201 = vector.broadcast %cst_73 : f32 to vector<128x1xf32>
    %202 = arith.mulf %200, %201 : vector<128x1xf32>
    %203 = tpu.concatenate %52, %102, %152, %202 in 1 : vector<128x1xf32>, vector<128x1xf32>, vector<128x1xf32>, vector<128x1xf32> -> vector<128x4xf32>
    %204 = tpu.transpose %203, [1, 0] : vector<128x4xf32> -> vector<4x128xf32>
    %205 = vector.broadcast %1 : vector<1x128xf32> to vector<4x128xf32>
    %206 = arith.addf %204, %205 : vector<4x128xf32>
    %c0_74 = arith.constant 0 : index
    %c0_75 = arith.constant 0 : index
    %207 = vector.load %arg4[%c0_74, %c0_75] : memref<4x128xf32, #tpu.memory_space<vmem>>, vector<4x128xf32>
    tpu.vector_store %arg4[%c0_74, %c0_75], %206 {strides = array<i32>} : memref<4x128xf32, #tpu.memory_space<vmem>>, vector<4x128xf32>,
    return
  }
  func.func @transform_0(%arg0: i32) -> (i32, i32, i32) {
    %c0_i32 = arith.constant 0 : i32
    %c0_i32_0 = arith.constant 0 : i32
    %c0_i32_1 = arith.constant 0 : i32
    return %arg0, %c0_i32, %c0_i32_0 : i32, i32, i32
  }
  func.func @transform_1(%arg0: i32) -> (i32, i32) {
    %c0_i32 = arith.constant 0 : i32
    %c0_i32_0 = arith.constant 0 : i32
    %c0_i32_1 = arith.constant 0 : i32
    return %c0_i32, %c0_i32_0 : i32, i32
  }
  func.func @transform_2(%arg0: i32) -> (i32, i32) {
    %c0_i32 = arith.constant 0 : i32
    %c0_i32_0 = arith.constant 0 : i32
    %c0_i32_1 = arith.constant 0 : i32
    return %c0_i32, %c0_i32_0 : i32, i32
  }
  func.func @transform_3(%arg0: i32) -> (i32, i32) {
    %c0_i32 = arith.constant 0 : i32
    %c0_i32_0 = arith.constant 0 : i32
    return %arg0, %c0_i32 : i32, i32
  }
}

</mosaic_0001>

<llo_original>
// kernel: tpu_custom_call.1
$region0: #{tpu_custom_call.1}
  #allocation0 [shape = 'u32[]', space=smem, size = 0x4, offset = 0x4, fixed_abs, tag = 'smem constant byte address 0x4 - core index']
  #allocation1 [shape = 'u32[144,128]{1,0:T(1,128)}', space=vmem, size = 0x12000, scoped, tag = 'internal scratch']
  %s0 = inlined_call_operand.vmem [shape: f32[4,32,64], index: 0, kind: input, shape index: {}]
  %s1 = inlined_call_operand.vmem [shape: f32[128,32], index: 1, kind: input, shape index: {}]
  %s2 = inlined_call_operand.vmem [shape: f32[1,128], index: 2, kind: input, shape index: {}]
  %s3 = inlined_call_operand.hbm [shape: f32[4,128], index: 3, kind: output, shape index: {}]
  %s4 = sld [smem:[#allocation0]]
  $region22: #{tpu_custom_call.1} parent=0
    _
  %s6 = ssub.s32 1, %s4
  %s7 = scalar_select 0, %s6, %s4
  $region1: #{tpu_custom_call.1} parent=0
    #allocation2 [shape = 'u8[2048]{0}', space=vmem, size = 0x800, scoped, tag = 'output window, operand 0, single buffered']
    #allocation3 [shape = 's32[1]{0}', space=sflag, size = 0x4, scoped, tag = 'scoped memory for tpu_custom_call.1']
    %8 = vsyncpa [#allocation3], 0
    // Predicated region
    $region2: #{tpu_custom_call.1} parent=1 // pred_check
      _
    $region3: #{tpu_custom_call.1} parent=1 // pred_check_branch
      %10 = sbr.rel (0) target = $region5
    $region4: #{tpu_custom_call.1} parent=1 // pred_region
      _
    $region5: #{tpu_custom_call.1} parent=1 // pred_fallthru
      _
    // Predicated region
    $region6: #{tpu_custom_call.1} parent=1 // pred_check
      _
    $region7: #{tpu_custom_call.1} parent=1 // pred_check_branch
      %12 = sbr.rel (0) target = $region9
    $region8: #{tpu_custom_call.1} parent=1 // pred_region
      _
    $region9: #{tpu_custom_call.1} parent=1 // pred_fallthru
      _
    // Predicated region
    $region10: #{tpu_custom_call.1} parent=1 // pred_check
      _
    $region11: #{tpu_custom_call.1} parent=1 // pred_check_branch
      %14 = sbr.rel (0) target = $region13
    $region12: #{tpu_custom_call.1} parent=1 // pred_region
      _
    $region13: #{tpu_custom_call.1} parent=1 // pred_fallthru
      _
    %v15 = vld [vmem:[%s1] sm:$0xff]
    %v16 = vld [vmem:[%s1 + $0x8] sm:$0xff]
    %v17 = vld [vmem:[%s1 + $0x10] sm:$0xff]
    %v18 = vld [vmem:[%s1 + $0x18] sm:$0xff]
    %v19 = vld [vmem:[%s1 + $0x20] sm:$0xff]
    %v20 = vld [vmem:[%s1 + $0x28] sm:$0xff]
    %v21 = vld [vmem:[%s1 + $0x30] sm:$0xff]
    %v22 = vld [vmem:[%s1 + $0x38] sm:$0xff]
    %v23 = vld [vmem:[%s1 + $0x40] sm:$0xff]
    %v24 = vld [vmem:[%s1 + $0x48] sm:$0xff]
    %v25 = vld [vmem:[%s1 + $0x50] sm:$0xff]
    %v26 = vld [vmem:[%s1 + $0x58] sm:$0xff]
    %v27 = vld [vmem:[%s1 + $0x60] sm:$0xff]
    %v28 = vld [vmem:[%s1 + $0x68] sm:$0xff]
    %v29 = vld [vmem:[%s1 + $0x70] sm:$0xff]
    %v30 = vld [vmem:[%s1 + $0x78] sm:$0xff]
    %v31 = vld [vmem:[%s2] sm:$0x1]
    %v32 = vlaneseq
    %v33 = vand.u32 %v32, 127
    %v34 = vld [vmem:[%s0] sm:$0xff]
    %v35 = vld [vmem:[%s0 + $0x8] sm:$0xff]
    %v36 = vld [vmem:[%s0 + $0x10] sm:$0xff]
    %v37 = vld [vmem:[%s0 + $0x18] sm:$0xff]
    %vm38 = vcmask 261120
    %v40 = vsel %vm38, %v15, 0
    %v43 = vsel %vm38, %v16, 0
    %v46 = vsel %vm38, %v17, 0
    %v49 = vsel %vm38, %v18, 0
    %v52 = vsel %vm38, %v19, 0
    %v55 = vsel %vm38, %v20, 0
    %v58 = vsel %vm38, %v21, 0
    %v61 = vsel %vm38, %v22, 0
    %v64 = vsel %vm38, %v23, 0
    %v67 = vsel %vm38, %v24, 0
    %v70 = vsel %vm38, %v25, 0
    %v73 = vsel %vm38, %v26, 0
    %v76 = vsel %vm38, %v27, 0
    %v79 = vsel %vm38, %v28, 0
    %v82 = vsel %vm38, %v29, 0
    %v85 = vsel %vm38, %v30, 0
    %87 = vmatprep.subr.mxu0 0.0
    %88 = vmatpush1.msra.mxu0 %v34
    %89 = vmatprep.subr.mxu0 0.0
    %90 = vmatpush1.msra.mxu0 %v35
    %91 = vmatprep.subr.mxu0 0.0
    %92 = vmatpush1.msra.mxu0 %v36
    %93 = vmatprep.subr.mxu0 0.0
    %94 = vmatpush1.msra.mxu0 %v37
    %95 = vmatprep.subr.mxu0 0.0
    %96 = vmatpush1.msra.mxu0 0.0
    %97 = vmatprep.subr.mxu0 0.0
    %98 = vmatpush1.msra.mxu0 0.0
    %99 = vmatprep.subr.mxu0 0.0
    %100 = vmatpush1.msra.mxu0 0.0
    %101 = vmatprep.subr.mxu0 0.0
    %102 = vmatpush1.msra.mxu0 0.0
    %103 = vmatprep.subr.mxu0 0.0
    %104 = vmatpush1.msra.mxu0 0.0
    %105 = vmatprep.subr.mxu0 0.0
    %106 = vmatpush1.msra.mxu0 0.0
    %107 = vmatprep.subr.mxu0 0.0
    %108 = vmatpush1.msra.mxu0 0.0
    %109 = vmatprep.subr.mxu0 0.0
    %110 = vmatpush1.msra.mxu0 0.0
    %111 = vmatprep.subr.mxu0 0.0
    %112 = vmatpush1.msra.mxu0 0.0
    %113 = vmatprep.subr.mxu0 0.0
    %114 = vmatpush1.msra.mxu0 0.0
    %115 = vmatprep.subr.mxu0 0.0
    %116 = vmatpush1.msra.mxu0 0.0
    %117 = vmatprep.subr.mxu0 0.0
    %118 = vmatpush1.msra.mxu0 0.0
    %119 = vmatprep.subr.mxu0 0.0
    %120 = vmatpush1.msra.mxu0 0.0
    %121 = vmatprep.subr.mxu0 0.0
    %122 = vmatpush1.msra.mxu0 0.0
    %123 = vmatprep.subr.mxu0 0.0
    %124 = vmatpush1.msra.mxu0 0.0
    %125 = vmatprep.subr.mxu0 0.0
    %126 = vmatpush1.msra.mxu0 0.0
    %127 = vmatprep.subr.mxu0 0.0
    %128 = vmatpush1.msra.mxu0 0.0
    %129 = vmatprep.subr.mxu0 0.0
    %130 = vmatpush1.msra.mxu0 0.0
    %131 = vmatprep.subr.mxu0 0.0
    %132 = vmatpush1.msra.mxu0 0.0
    %133 = vmatprep.subr.mxu0 0.0
    %134 = vmatpush1.msra.mxu0 0.0
    %135 = vmatprep.subr.mxu0 0.0
    %136 = vmatpush1.msra.mxu0 0.0
    %137 = vmatprep.subr.mxu0 0.0
    %138 = vmatpush1.msra.mxu0 0.0
    %139 = vmatprep.subr.mxu0 0.0
    %140 = vmatpush1.msra.mxu0 0.0
    %141 = vmatprep.subr.mxu0 0.0
    %142 = vmatpush1.msra.mxu0 0.0
    %143 = vmatprep.subr.mxu0 0.0
    %144 = vmatpush1.msra.mxu0 0.0
    %145 = vmatprep.subr.mxu0 0.0
    %146 = vmatpush1.msra.mxu0 0.0
    %147 = vmatprep.subr.mxu0 0.0
    %148 = vmatpush1.msra.mxu0 0.0
    %149 = vmatprep.subr.mxu0 0.0
    %150 = vmatpush1.msra.mxu0 0.0
    %151 = vmatprep.mubr.f32.mxu0 0.0
    %152 = vmatmul.mubr.f32.gmra.mrb[0].mxu0 %v40
    %v153 = vpop.f32.mrb[0].mxu0
    %v154 = vadd.f32 0.0, %v153
    %v155 = vpop.f32.mrb[0].mxu0
    %156 = vmatprep.mubr.f32.mxu0 0.0
    %157 = vmatmul.mubr.f32.gmra.mrb[0].mxu0 %v43
    %v158 = vpop.f32.mrb[0].mxu0
    %v159 = vadd.f32 0.0, %v158
    %v160 = vpop.f32.mrb[0].mxu0
    %161 = vmatprep.mubr.f32.mxu0 0.0
    %162 = vmatmul.mubr.f32.gmra.mrb[0].mxu0 %v46
    %v163 = vpop.f32.mrb[0].mxu0
    %v164 = vadd.f32 0.0, %v163
    %v165 = vpop.f32.mrb[0].mxu0
    %166 = vmatprep.mubr.f32.mxu0 0.0
    %167 = vmatmul.mubr.f32.gmra.mrb[0].mxu0 %v49
    %v168 = vpop.f32.mrb[0].mxu0
    %v169 = vadd.f32 0.0, %v168
    %v170 = vpop.f32.mrb[0].mxu0
    %171 = vmatprep.mubr.f32.mxu0 0.0
    %172 = vmatmul.mubr.f32.gmra.mrb[0].mxu0 %v52
    %v173 = vpop.f32.mrb[0].mxu0
    %v174 = vadd.f32 0.0, %v173
    %v175 = vpop.f32.mrb[0].mxu0
    %176 = vmatprep.mubr.f32.mxu0 0.0
    %177 = vmatmul.mubr.f32.gmra.mrb[0].mxu0 %v55
    %v178 = vpop.f32.mrb[0].mxu0
    %v179 = vadd.f32 0.0, %v178
    %v180 = vpop.f32.mrb[0].mxu0
    %181 = vmatprep.mubr.f32.mxu0 0.0
    %182 = vmatmul.mubr.f32.gmra.mrb[0].mxu0 %v58
    %v183 = vpop.f32.mrb[0].mxu0
    %v184 = vadd.f32 0.0, %v183
    %v185 = vpop.f32.mrb[0].mxu0
    %186 = vmatprep.mubr.f32.mxu0 0.0
    %187 = vmatmul.mubr.f32.gmra.mrb[0].mxu0 %v61
    %v188 = vpop.f32.mrb[0].mxu0
    %v189 = vadd.f32 0.0, %v188
    %v190 = vpop.f32.mrb[0].mxu0
    %191 = vmatprep.mubr.f32.mxu0 0.0
    %192 = vmatmul.mubr.f32.gmra.mrb[0].mxu0 %v64
    %v193 = vpop.f32.mrb[0].mxu0
    %v194 = vadd.f32 0.0, %v193
    %v195 = vpop.f32.mrb[0].mxu0
    %196 = vmatprep.mubr.f32.mxu0 0.0
    %197 = vmatmul.mubr.f32.gmra.mrb[0].mxu0 %v67
    %v198 = vpop.f32.mrb[0].mxu0
    %v199 = vadd.f32 0.0, %v198
    %v200 = vpop.f32.mrb[0].mxu0
    %201 = vmatprep.mubr.f32.mxu0 0.0
    %202 = vmatmul.mubr.f32.gmra.mrb[0].mxu0 %v70
    %v203 = vpop.f32.mrb[0].mxu0
    %v204 = vadd.f32 0.0, %v203
    %v205 = vpop.f32.mrb[0].mxu0
    %206 = vmatprep.mubr.f32.mxu0 0.0
    %207 = vmatmul.mubr.f32.gmra.mrb[0].mxu0 %v73
    %v208 = vpop.f32.mrb[0].mxu0
    %v209 = vadd.f32 0.0, %v208
    %v210 = vpop.f32.mrb[0].mxu0
    %211 = vmatprep.mubr.f32.mxu0 0.0
    %212 = vmatmul.mubr.f32.gmra.mrb[0].mxu0 %v76
    %v213 = vpop.f32.mrb[0].mxu0
    %v214 = vadd.f32 0.0, %v213
    %v215 = vpop.f32.mrb[0].mxu0
    %216 = vmatprep.mubr.f32.mxu0 0.0
    %217 = vmatmul.mubr.f32.gmra.mrb[0].mxu0 %v79
    %v218 = vpop.f32.mrb[0].mxu0
    %v219 = vadd.f32 0.0, %v218
    %v220 = vpop.f32.mrb[0].mxu0
    %221 = vmatprep.mubr.f32.mxu0 0.0
    %222 = vmatmul.mubr.f32.gmra.mrb[0].mxu0 %v82
    %v223 = vpop.f32.mrb[0].mxu0
    %v224 = vadd.f32 0.0, %v223
    %v225 = vpop.f32.mrb[0].mxu0
    %226 = vmatprep.mubr.f32.mxu0 0.0
    %227 = vmatmul.mubr.f32.gmra.mrb[0].mxu0 %v85
    %v228 = vpop.f32.mrb[0].mxu0
    %v229 = vadd.f32 0.0, %v228
    %v230 = vpop.f32.mrb[0].mxu0
    %231 = vdwg.mxu0
    %vm232 = vcmask 523264
    %v233 = vsel %vm232, %v154, -inf
    %234 = vmax.xlane.f32.xlu0 %v233
    %v235 = vpop.xlane.xlu0 %234
    %v236 = vsel %vm232, %v159, -inf
    %237 = vmax.xlane.f32.xlu0 %v236
    %v238 = vpop.xlane.xlu0 %237
    %v239 = vsel %vm232, %v164, -inf
    %240 = vmax.xlane.f32.xlu0 %v239
    %v241 = vpop.xlane.xlu0 %240
    %v242 = vsel %vm232, %v169, -inf
    %243 = vmax.xlane.f32.xlu0 %v242
    %v244 = vpop.xlane.xlu0 %243
    %v245 = vsel %vm232, %v174, -inf
    %246 = vmax.xlane.f32.xlu0 %v245
    %v247 = vpop.xlane.xlu0 %246
    %v248 = vsel %vm232, %v179, -inf
    %249 = vmax.xlane.f32.xlu0 %v248
    %v250 = vpop.xlane.xlu0 %249
    %v251 = vsel %vm232, %v184, -inf
    %252 = vmax.xlane.f32.xlu0 %v251
    %v253 = vpop.xlane.xlu0 %252
    %v254 = vsel %vm232, %v189, -inf
    %255 = vmax.xlane.f32.xlu0 %v254
    %v256 = vpop.xlane.xlu0 %255
    %v257 = vsel %vm232, %v194, -inf
    %258 = vmax.xlane.f32.xlu0 %v257
    %v259 = vpop.xlane.xlu0 %258
    %v260 = vsel %vm232, %v199, -inf
    %261 = vmax.xlane.f32.xlu0 %v260
    %v262 = vpop.xlane.xlu0 %261
    %v263 = vsel %vm232, %v204, -inf
    %264 = vmax.xlane.f32.xlu0 %v263
    %v265 = vpop.xlane.xlu0 %264
    %v266 = vsel %vm232, %v209, -inf
    %267 = vmax.xlane.f32.xlu0 %v266
    %v268 = vpop.xlane.xlu0 %267
    %v269 = vsel %vm232, %v214, -inf
    %270 = vmax.xlane.f32.xlu0 %v269
    %v271 = vpop.xlane.xlu0 %270
    %v272 = vsel %vm232, %v219, -inf
    %273 = vmax.xlane.f32.xlu0 %v272
    %v274 = vpop.xlane.xlu0 %273
    %v275 = vsel %vm232, %v224, -inf
    %276 = vmax.xlane.f32.xlu0 %v275
    %v277 = vpop.xlane.xlu0 %276
    %v278 = vsel %vm232, %v229, -inf
    %279 = vmax.xlane.f32.xlu0 %v278
    %v280 = vpop.xlane.xlu0 %279
    %v281 = vadd.f32 %v235, 0.0
    %v282 = vadd.f32 %v238, 0.0
    %v283 = vadd.f32 %v241, 0.0
    %v284 = vadd.f32 %v244, 0.0
    %v285 = vadd.f32 %v247, 0.0
    %v286 = vadd.f32 %v250, 0.0
    %v287 = vadd.f32 %v253, 0.0
    %v288 = vadd.f32 %v256, 0.0
    %v289 = vadd.f32 %v259, 0.0
    %v290 = vadd.f32 %v262, 0.0
    %v291 = vadd.f32 %v265, 0.0
    %v292 = vadd.f32 %v268, 0.0
    %v293 = vadd.f32 %v271, 0.0
    %v294 = vadd.f32 %v274, 0.0
    %v295 = vadd.f32 %v277, 0.0
    %v296 = vadd.f32 %v280, 0.0
    %vm297 = vcmp.eq.f32.partialorder %v154, %v235
    %vm298 = vcmp.eq.f32.partialorder %v159, %v238
    %vm299 = vcmp.eq.f32.partialorder %v164, %v241
    %vm300 = vcmp.eq.f32.partialorder %v169, %v244
    %vm301 = vcmp.eq.f32.partialorder %v174, %v247
    %vm302 = vcmp.eq.f32.partialorder %v179, %v250
    %vm303 = vcmp.eq.f32.partialorder %v184, %v253
    %vm304 = vcmp.eq.f32.partialorder %v189, %v256
    %vm305 = vcmp.eq.f32.partialorder %v194, %v259
    %vm306 = vcmp.eq.f32.partialorder %v199, %v262
    %vm307 = vcmp.eq.f32.partialorder %v204, %v265
    %vm308 = vcmp.eq.f32.partialorder %v209, %v268
    %vm309 = vcmp.eq.f32.partialorder %v214, %v271
    %vm310 = vcmp.eq.f32.partialorder %v219, %v274
    %vm311 = vcmp.eq.f32.partialorder %v224, %v277
    %vm312 = vcmp.eq.f32.partialorder %v229, %v280
    %v313 = vsel %vm297, %v33, 64
    %v314 = vsel %vm298, %v33, 64
    %v315 = vsel %vm299, %v33, 64
    %v316 = vsel %vm300, %v33, 64
    %v317 = vsel %vm301, %v33, 64
    %v318 = vsel %vm302, %v33, 64
    %v319 = vsel %vm303, %v33, 64
    %v320 = vsel %vm304, %v33, 64
    %v321 = vsel %vm305, %v33, 64
    %v322 = vsel %vm306, %v33, 64
    %v323 = vsel %vm307, %v33, 64
    %v324 = vsel %vm308, %v33, 64
    %v325 = vsel %vm309, %v33, 64
    %v326 = vsel %vm310, %v33, 64
    %v327 = vsel %vm311, %v33, 64
    %v328 = vsel %vm312, %v33, 64
    %v329 = vsel %vm232, %v313, 2147483647
    %v330 = vand.u32 %v329, 65535
    %v331 = vshra.s32 %v329, 16
    %v332 = vcvt.s32.f32 %v330
    %v333 = vcvt.s32.f32 %v331
    %334 = vmin.xlane.f32.xlu0 %v333
    %v335 = vpop.xlane.xlu0 %334
    %vm336 = vcmp.eq.f32.partialorder %v333, %v335
    %v337 = vsel %vm336, %v332, inf
    %338 = vmin.xlane.f32.xlu0 %v337
    %v339 = vpop.xlane.xlu0 %338
    %v340 = vcvt.f32.s32 %v339
    %v341 = vcvt.f32.s32 %v335
    %v342 = vshll.u32 %v341, 16
    %v343 = vadd.s32 %v342, %v340
    %v344 = vsel %vm232, %v314, 2147483647
    %v345 = vand.u32 %v344, 65535
    %v346 = vshra.s32 %v344, 16
    %v347 = vcvt.s32.f32 %v345
    %v348 = vcvt.s32.f32 %v346
    %349 = vmin.xlane.f32.xlu0 %v348
    %v350 = vpop.xlane.xlu0 %349
    %vm351 = vcmp.eq.f32.partialorder %v348, %v350
    %v352 = vsel %vm351, %v347, inf
    %353 = vmin.xlane.f32.xlu0 %v352
    %v354 = vpop.xlane.xlu0 %353
    %v355 = vcvt.f32.s32 %v354
    %v356 = vcvt.f32.s32 %v350
    %v357 = vshll.u32 %v356, 16
    %v358 = vadd.s32 %v357, %v355
    %v359 = vsel %vm232, %v315, 2147483647
    %v360 = vand.u32 %v359, 65535
    %v361 = vshra.s32 %v359, 16
    %v362 = vcvt.s32.f32 %v360
    %v363 = vcvt.s32.f32 %v361
    %364 = vmin.xlane.f32.xlu0 %v363
    %v365 = vpop.xlane.xlu0 %364
    %vm366 = vcmp.eq.f32.partialorder %v363, %v365
    %v367 = vsel %vm366, %v362, inf
    %368 = vmin.xlane.f32.xlu0 %v367
    %v369 = vpop.xlane.xlu0 %368
    %v370 = vcvt.f32.s32 %v369
    %v371 = vcvt.f32.s32 %v365
    %v372 = vshll.u32 %v371, 16
    %v373 = vadd.s32 %v372, %v370
    %v374 = vsel %vm232, %v316, 2147483647
    %v375 = vand.u32 %v374, 65535
    %v376 = vshra.s32 %v374, 16
    %v377 = vcvt.s32.f32 %v375
    %v378 = vcvt.s32.f32 %v376
    %379 = vmin.xlane.f32.xlu0 %v378
    %v380 = vpop.xlane.xlu0 %379
    %vm381 = vcmp.eq.f32.partialorder %v378, %v380
    %v382 = vsel %vm381, %v377, inf
    %383 = vmin.xlane.f32.xlu0 %v382
    %v384 = vpop.xlane.xlu0 %383
    %v385 = vcvt.f32.s32 %v384
    %v386 = vcvt.f32.s32 %v380
    %v387 = vshll.u32 %v386, 16
    %v388 = vadd.s32 %v387, %v385
    %v389 = vsel %vm232, %v317, 2147483647
    %v390 = vand.u32 %v389, 65535
    %v391 = vshra.s32 %v389, 16
    %v392 = vcvt.s32.f32 %v390
    %v393 = vcvt.s32.f32 %v391
    %394 = vmin.xlane.f32.xlu0 %v393
    %v395 = vpop.xlane.xlu0 %394
    %vm396 = vcmp.eq.f32.partialorder %v393, %v395
    %v397 = vsel %vm396, %v392, inf
    %398 = vmin.xlane.f32.xlu0 %v397
    %v399 = vpop.xlane.xlu0 %398
    %v400 = vcvt.f32.s32 %v399
    %v401 = vcvt.f32.s32 %v395
    %v402 = vshll.u32 %v401, 16
    %v403 = vadd.s32 %v402, %v400
    %v404 = vsel %vm232, %v318, 2147483647
    %v405 = vand.u32 %v404, 65535
    %v406 = vshra.s32 %v404, 16
    %v407 = vcvt.s32.f32 %v405
    %v408 = vcvt.s32.f32 %v406
    %409 = vmin.xlane.f32.xlu0 %v408
    %v410 = vpop.xlane.xlu0 %409
    %vm411 = vcmp.eq.f32.partialorder %v408, %v410
    %v412 = vsel %vm411, %v407, inf
    %413 = vmin.xlane.f32.xlu0 %v412
    %v414 = vpop.xlane.xlu0 %413
    %v415 = vcvt.f32.s32 %v414
    %v416 = vcvt.f32.s32 %v410
    %v417 = vshll.u32 %v416, 16
    %v418 = vadd.s32 %v417, %v415
    %v419 = vsel %vm232, %v319, 2147483647
    %v420 = vand.u32 %v419, 65535
    %v421 = vshra.s32 %v419, 16
    %v422 = vcvt.s32.f32 %v420
    %v423 = vcvt.s32.f32 %v421
    %424 = vmin.xlane.f32.xlu0 %v423
    %v425 = vpop.xlane.xlu0 %424
    %vm426 = vcmp.eq.f32.partialorder %v423, %v425
    %v427 = vsel %vm426, %v422, inf
    %428 = vmin.xlane.f32.xlu0 %v427
    %v429 = vpop.xlane.xlu0 %428
    %v430 = vcvt.f32.s32 %v429
    %v431 = vcvt.f32.s32 %v425
    %v432 = vshll.u32 %v431, 16
    %v433 = vadd.s32 %v432, %v430
    %v434 = vsel %vm232, %v320, 2147483647
    %v435 = vand.u32 %v434, 65535
    %v436 = vshra.s32 %v434, 16
    %v437 = vcvt.s32.f32 %v435
    %v438 = vcvt.s32.f32 %v436
    %439 = vmin.xlane.f32.xlu0 %v438
    %v440 = vpop.xlane.xlu0 %439
    %vm441 = vcmp.eq.f32.partialorder %v438, %v440
    %v442 = vsel %vm441, %v437, inf
    %443 = vmin.xlane.f32.xlu0 %v442
    %v444 = vpop.xlane.xlu0 %443
    %v445 = vcvt.f32.s32 %v444
    %v446 = vcvt.f32.s32 %v440
    %v447 = vshll.u32 %v446, 16
    %v448 = vadd.s32 %v447, %v445
    %v449 = vsel %vm232, %v321, 2147483647
    %v450 = vand.u32 %v449, 65535
    %v451 = vshra.s32 %v449, 16
    %v452 = vcvt.s32.f32 %v450
    %v453 = vcvt.s32.f32 %v451
    %454 = vmin.xlane.f32.xlu0 %v453
    %v455 = vpop.xlane.xlu0 %454
    %vm456 = vcmp.eq.f32.partialorder %v453, %v455
    %v457 = vsel %vm456, %v452, inf
    %458 = vmin.xlane.f32.xlu0 %v457
    %v459 = vpop.xlane.xlu0 %458
    %v460 = vcvt.f32.s32 %v459
    %v461 = vcvt.f32.s32 %v455
    %v462 = vshll.u32 %v461, 16
    %v463 = vadd.s32 %v462, %v460
    %v464 = vsel %vm232, %v322, 2147483647
    %v465 = vand.u32 %v464, 65535
    %v466 = vshra.s32 %v464, 16
    %v467 = vcvt.s32.f32 %v465
    %v468 = vcvt.s32.f32 %v466
    %469 = vmin.xlane.f32.xlu0 %v468
    %v470 = vpop.xlane.xlu0 %469
    %vm471 = vcmp.eq.f32.partialorder %v468, %v470
    %v472 = vsel %vm471, %v467, inf
    %473 = vmin.xlane.f32.xlu0 %v472
    %v474 = vpop.xlane.xlu0 %473
    %v475 = vcvt.f32.s32 %v474
    %v476 = vcvt.f32.s32 %v470
    %v477 = vshll.u32 %v476, 16
    %v478 = vadd.s32 %v477, %v475
    %v479 = vsel %vm232, %v323, 2147483647
    %v480 = vand.u32 %v479, 65535
    %v481 = vshra.s32 %v479, 16
    %v482 = vcvt.s32.f32 %v480
    %v483 = vcvt.s32.f32 %v481
    %484 = vmin.xlane.f32.xlu0 %v483
    %v485 = vpop.xlane.xlu0 %484
    %vm486 = vcmp.eq.f32.partialorder %v483, %v485
    %v487 = vsel %vm486, %v482, inf
    %488 = vmin.xlane.f32.xlu0 %v487
    %v489 = vpop.xlane.xlu0 %488
    %v490 = vcvt.f32.s32 %v489
    %v491 = vcvt.f32.s32 %v485
    %v492 = vshll.u32 %v491, 16
    %v493 = vadd.s32 %v492, %v490
    %v494 = vsel %vm232, %v324, 2147483647
    %v495 = vand.u32 %v494, 65535
    %v496 = vshra.s32 %v494, 16
    %v497 = vcvt.s32.f32 %v495
    %v498 = vcvt.s32.f32 %v496
    %499 = vmin.xlane.f32.xlu0 %v498
    %v500 = vpop.xlane.xlu0 %499
    %vm501 = vcmp.eq.f32.partialorder %v498, %v500
    %v502 = vsel %vm501, %v497, inf
    %503 = vmin.xlane.f32.xlu0 %v502
    %v504 = vpop.xlane.xlu0 %503
    %v505 = vcvt.f32.s32 %v504
    %v506 = vcvt.f32.s32 %v500
    %v507 = vshll.u32 %v506, 16
    %v508 = vadd.s32 %v507, %v505
    %v509 = vsel %vm232, %v325, 2147483647
    %v510 = vand.u32 %v509, 65535
    %v511 = vshra.s32 %v509, 16
    %v512 = vcvt.s32.f32 %v510
    %v513 = vcvt.s32.f32 %v511
    %514 = vmin.xlane.f32.xlu0 %v513
    %v515 = vpop.xlane.xlu0 %514
    %vm516 = vcmp.eq.f32.partialorder %v513, %v515
    %v517 = vsel %vm516, %v512, inf
    %518 = vmin.xlane.f32.xlu0 %v517
    %v519 = vpop.xlane.xlu0 %518
    %v520 = vcvt.f32.s32 %v519
    %v521 = vcvt.f32.s32 %v515
    %v522 = vshll.u32 %v521, 16
    %v523 = vadd.s32 %v522, %v520
    %v524 = vsel %vm232, %v326, 2147483647
    %v525 = vand.u32 %v524, 65535
    %v526 = vshra.s32 %v524, 16
    %v527 = vcvt.s32.f32 %v525
    %v528 = vcvt.s32.f32 %v526
    %529 = vmin.xlane.f32.xlu0 %v528
    %v530 = vpop.xlane.xlu0 %529
    %vm531 = vcmp.eq.f32.partialorder %v528, %v530
    %v532 = vsel %vm531, %v527, inf
    %533 = vmin.xlane.f32.xlu0 %v532
    %v534 = vpop.xlane.xlu0 %533
    %v535 = vcvt.f32.s32 %v534
    %v536 = vcvt.f32.s32 %v530
    %v537 = vshll.u32 %v536, 16
    %v538 = vadd.s32 %v537, %v535
    %v539 = vsel %vm232, %v327, 2147483647
    %v540 = vand.u32 %v539, 65535
    %v541 = vshra.s32 %v539, 16
    %v542 = vcvt.s32.f32 %v540
    %v543 = vcvt.s32.f32 %v541
    %544 = vmin.xlane.f32.xlu0 %v543
    %v545 = vpop.xlane.xlu0 %544
    %vm546 = vcmp.eq.f32.partialorder %v543, %v545
    %v547 = vsel %vm546, %v542, inf
    %548 = vmin.xlane.f32.xlu0 %v547
    %v549 = vpop.xlane.xlu0 %548
    %v550 = vcvt.f32.s32 %v549
    %v551 = vcvt.f32.s32 %v545
    %v552 = vshll.u32 %v551, 16
    %v553 = vadd.s32 %v552, %v550
    %v554 = vsel %vm232, %v328, 2147483647
    %v555 = vand.u32 %v554, 65535
    %v556 = vshra.s32 %v554, 16
    %v557 = vcvt.s32.f32 %v555
    %v558 = vcvt.s32.f32 %v556
    %559 = vmin.xlane.f32.xlu0 %v558
    %v560 = vpop.xlane.xlu0 %559
    %vm561 = vcmp.eq.f32.partialorder %v558, %v560
    %v562 = vsel %vm561, %v557, inf
    %563 = vmin.xlane.f32.xlu0 %v562
    %v564 = vpop.xlane.xlu0 %563
    %v565 = vcvt.f32.s32 %v564
    %v566 = vcvt.f32.s32 %v560
    %v567 = vshll.u32 %v566, 16
    %v568 = vadd.s32 %v567, %v565
    %vm569 = vcmp.eq.s32.totalorder %v33, %v343
    %vm570 = vcmp.eq.s32.totalorder %v33, %v358
    %vm571 = vcmp.eq.s32.totalorder %v33, %v373
    %vm572 = vcmp.eq.s32.totalorder %v33, %v388
    %vm573 = vcmp.eq.s32.totalorder %v33, %v403
    %vm574 = vcmp.eq.s32.totalorder %v33, %v418
    %vm575 = vcmp.eq.s32.totalorder %v33, %v433
    %vm576 = vcmp.eq.s32.totalorder %v33, %v448
    %vm577 = vcmp.eq.s32.totalorder %v33, %v463
    %vm578 = vcmp.eq.s32.totalorder %v33, %v478
    %vm579 = vcmp.eq.s32.totalorder %v33, %v493
    %vm580 = vcmp.eq.s32.totalorder %v33, %v508
    %vm581 = vcmp.eq.s32.totalorder %v33, %v523
    %vm582 = vcmp.eq.s32.totalorder %v33, %v538
    %vm583 = vcmp.eq.s32.totalorder %v33, %v553
    %vm584 = vcmp.eq.s32.totalorder %v33, %v568
    %v585 = vsel %vm569, -inf, %v154
    %v586 = vsel %vm570, -inf, %v159
    %v587 = vsel %vm571, -inf, %v164
    %v588 = vsel %vm572, -inf, %v169
    %v589 = vsel %vm573, -inf, %v174
    %v590 = vsel %vm574, -inf, %v179
    %v591 = vsel %vm575, -inf, %v184
    %v592 = vsel %vm576, -inf, %v189
    %v593 = vsel %vm577, -inf, %v194
    %v594 = vsel %vm578, -inf, %v199
    %v595 = vsel %vm579, -inf, %v204
    %v596 = vsel %vm580, -inf, %v209
    %v597 = vsel %vm581, -inf, %v214
    %v598 = vsel %vm582, -inf, %v219
    %v599 = vsel %vm583, -inf, %v224
    %v600 = vsel %vm584, -inf, %v229
    %v601 = vsel %vm232, %v585, -inf
    %602 = vmax.xlane.f32.xlu0 %v601
    %v603 = vpop.xlane.xlu0 %602
    %v604 = vsel %vm232, %v586, -inf
    %605 = vmax.xlane.f32.xlu0 %v604
    %v606 = vpop.xlane.xlu0 %605
    %v607 = vsel %vm232, %v587, -inf
    %608 = vmax.xlane.f32.xlu0 %v607
    %v609 = vpop.xlane.xlu0 %608
    %v610 = vsel %vm232, %v588, -inf
    %611 = vmax.xlane.f32.xlu0 %v610
    %v612 = vpop.xlane.xlu0 %611
    %v613 = vsel %vm232, %v589, -inf
    %614 = vmax.xlane.f32.xlu0 %v613
    %v615 = vpop.xlane.xlu0 %614
    %v616 = vsel %vm232, %v590, -inf
    %617 = vmax.xlane.f32.xlu0 %v616
    %v618 = vpop.xlane.xlu0 %617
    %v619 = vsel %vm232, %v591, -inf
    %620 = vmax.xlane.f32.xlu0 %v619
    %v621 = vpop.xlane.xlu0 %620
    %v622 = vsel %vm232, %v592, -inf
    %623 = vmax.xlane.f32.xlu0 %v622
    %v624 = vpop.xlane.xlu0 %623
    %v625 = vsel %vm232, %v593, -inf
    %626 = vmax.xlane.f32.xlu0 %v625
    %v627 = vpop.xlane.xlu0 %626
    %v628 = vsel %vm232, %v594, -inf
    %629 = vmax.xlane.f32.xlu0 %v628
    %v630 = vpop.xlane.xlu0 %629
    %v631 = vsel %vm232, %v595, -inf
    %632 = vmax.xlane.f32.xlu0 %v631
    %v633 = vpop.xlane.xlu0 %632
    %v634 = vsel %vm232, %v596, -inf
    %635 = vmax.xlane.f32.xlu0 %v634
    %v636 = vpop.xlane.xlu0 %635
    %v637 = vsel %vm232, %v597, -inf
    %638 = vmax.xlane.f32.xlu0 %v637
    %v639 = vpop.xlane.xlu0 %638
    %v640 = vsel %vm232, %v598, -inf
    %641 = vmax.xlane.f32.xlu0 %v640
    %v642 = vpop.xlane.xlu0 %641
    %v643 = vsel %vm232, %v599, -inf
    %644 = vmax.xlane.f32.xlu0 %v643
    %v645 = vpop.xlane.xlu0 %644
    %v646 = vsel %vm232, %v600, -inf
    %647 = vmax.xlane.f32.xlu0 %v646
    %v648 = vpop.xlane.xlu0 %647
    %v649 = vadd.f32 %v281, %v603
    %v650 = vadd.f32 %v282, %v606
    %v651 = vadd.f32 %v283, %v609
    %v652 = vadd.f32 %v284, %v612
    %v653 = vadd.f32 %v285, %v615
    %v654 = vadd.f32 %v286, %v618
    %v655 = vadd.f32 %v287, %v621
    %v656 = vadd.f32 %v288, %v624
    %v657 = vadd.f32 %v289, %v627
    %v658 = vadd.f32 %v290, %v630
    %v659 = vadd.f32 %v291, %v633
    %v660 = vadd.f32 %v292, %v636
    %v661 = vadd.f32 %v293, %v639
    %v662 = vadd.f32 %v294, %v642
    %v663 = vadd.f32 %v295, %v645
    %v664 = vadd.f32 %v296, %v648
    %v665 = vmul.f32 %v649, 0.5
    %v666 = vmul.f32 %v650, 0.5
    %v667 = vmul.f32 %v651, 0.5
    %v668 = vmul.f32 %v652, 0.5
    %v669 = vmul.f32 %v653, 0.5
    %v670 = vmul.f32 %v654, 0.5
    %v671 = vmul.f32 %v655, 0.5
    %v672 = vmul.f32 %v656, 0.5
    %v673 = vmul.f32 %v657, 0.5
    %v674 = vmul.f32 %v658, 0.5
    %v675 = vmul.f32 %v659, 0.5
    %v676 = vmul.f32 %v660, 0.5
    %v677 = vmul.f32 %v661, 0.5
    %v678 = vmul.f32 %v662, 0.5
    %v679 = vmul.f32 %v663, 0.5
    %v680 = vmul.f32 %v664, 0.5
    %v681 = vsel %vm232, %v154, inf
    %682 = vmin.xlane.f32.xlu0 %v681
    %v683 = vpop.xlane.xlu0 %682
    %v684 = vsel %vm232, %v159, inf
    %685 = vmin.xlane.f32.xlu0 %v684
    %v686 = vpop.xlane.xlu0 %685
    %v687 = vsel %vm232, %v164, inf
    %688 = vmin.xlane.f32.xlu0 %v687
    %v689 = vpop.xlane.xlu0 %688
    %v690 = vsel %vm232, %v169, inf
    %691 = vmin.xlane.f32.xlu0 %v690
    %v692 = vpop.xlane.xlu0 %691
    %v693 = vsel %vm232, %v174, inf
    %694 = vmin.xlane.f32.xlu0 %v693
    %v695 = vpop.xlane.xlu0 %694
    %v696 = vsel %vm232, %v179, inf
    %697 = vmin.xlane.f32.xlu0 %v696
    %v698 = vpop.xlane.xlu0 %697
    %v699 = vsel %vm232, %v184, inf
    %700 = vmin.xlane.f32.xlu0 %v699
    %v701 = vpop.xlane.xlu0 %700
    %v702 = vsel %vm232, %v189, inf
    %703 = vmin.xlane.f32.xlu0 %v702
    %v704 = vpop.xlane.xlu0 %703
    %v705 = vsel %vm232, %v194, inf
    %706 = vmin.xlane.f32.xlu0 %v705
    %v707 = vpop.xlane.xlu0 %706
    %v708 = vsel %vm232, %v199, inf
    %709 = vmin.xlane.f32.xlu0 %v708
    %v710 = vpop.xlane.xlu0 %709
    %v711 = vsel %vm232, %v204, inf
    %712 = vmin.xlane.f32.xlu0 %v711
    %v713 = vpop.xlane.xlu0 %712
    %v714 = vsel %vm232, %v209, inf
    %715 = vmin.xlane.f32.xlu0 %v714
    %v716 = vpop.xlane.xlu0 %715
    %v717 = vsel %vm232, %v214, inf
    %718 = vmin.xlane.f32.xlu0 %v717
    %v719 = vpop.xlane.xlu0 %718
    %v720 = vsel %vm232, %v219, inf
    %721 = vmin.xlane.f32.xlu0 %v720
    %v722 = vpop.xlane.xlu0 %721
    %v723 = vsel %vm232, %v224, inf
    %724 = vmin.xlane.f32.xlu0 %v723
    %v725 = vpop.xlane.xlu0 %724
    %v726 = vsel %vm232, %v229, inf
    %727 = vmin.xlane.f32.xlu0 %v726
    %v728 = vpop.xlane.xlu0 %727
    %v729 = vadd.f32 %v683, 0.0
    %v730 = vadd.f32 %v686, 0.0
    %v731 = vadd.f32 %v689, 0.0
    %v732 = vadd.f32 %v692, 0.0
    %v733 = vadd.f32 %v695, 0.0
    %v734 = vadd.f32 %v698, 0.0
    %v735 = vadd.f32 %v701, 0.0
    %v736 = vadd.f32 %v704, 0.0
    %v737 = vadd.f32 %v707, 0.0
    %v738 = vadd.f32 %v710, 0.0
    %v739 = vadd.f32 %v713, 0.0
    %v740 = vadd.f32 %v716, 0.0
    %v741 = vadd.f32 %v719, 0.0
    %v742 = vadd.f32 %v722, 0.0
    %v743 = vadd.f32 %v725, 0.0
    %v744 = vadd.f32 %v728, 0.0
    %vm745 = vcmp.eq.f32.partialorder %v154, %v683
    %vm746 = vcmp.eq.f32.partialorder %v159, %v686
    %vm747 = vcmp.eq.f32.partialorder %v164, %v689
    %vm748 = vcmp.eq.f32.partialorder %v169, %v692
    %vm749 = vcmp.eq.f32.partialorder %v174, %v695
    %vm750 = vcmp.eq.f32.partialorder %v179, %v698
    %vm751 = vcmp.eq.f32.partialorder %v184, %v701
    %vm752 = vcmp.eq.f32.partialorder %v189, %v704
    %vm753 = vcmp.eq.f32.partialorder %v194, %v707
    %vm754 = vcmp.eq.f32.partialorder %v199, %v710
    %vm755 = vcmp.eq.f32.partialorder %v204, %v713
    %vm756 = vcmp.eq.f32.partialorder %v209, %v716
    %vm757 = vcmp.eq.f32.partialorder %v214, %v719
    %vm758 = vcmp.eq.f32.partialorder %v219, %v722
    %vm759 = vcmp.eq.f32.partialorder %v224, %v725
    %vm760 = vcmp.eq.f32.partialorder %v229, %v728
    %v761 = vsel %vm745, %v33, 64
    %v762 = vsel %vm746, %v33, 64
    %v763 = vsel %vm747, %v33, 64
    %v764 = vsel %vm748, %v33, 64
    %v765 = vsel %vm749, %v33, 64
    %v766 = vsel %vm750, %v33, 64
    %v767 = vsel %vm751, %v33, 64
    %v768 = vsel %vm752, %v33, 64
    %v769 = vsel %vm753, %v33, 64
    %v770 = vsel %vm754, %v33, 64
    %v771 = vsel %vm755, %v33, 64
    %v772 = vsel %vm756, %v33, 64
    %v773 = vsel %vm757, %v33, 64
    %v774 = vsel %vm758, %v33, 64
    %v775 = vsel %vm759, %v33, 64
    %v776 = vsel %vm760, %v33, 64
    %v777 = vsel %vm232, %v761, 2147483647
    %v778 = vand.u32 %v777, 65535
    %v779 = vshra.s32 %v777, 16
    %v780 = vcvt.s32.f32 %v778
    %v781 = vcvt.s32.f32 %v779
    %782 = vmin.xlane.f32.xlu0 %v781
    %v783 = vpop.xlane.xlu0 %782
    %vm784 = vcmp.eq.f32.partialorder %v781, %v783
    %v785 = vsel %vm784, %v780, inf
    %786 = vmin.xlane.f32.xlu0 %v785
    %v787 = vpop.xlane.xlu0 %786
    %v788 = vcvt.f32.s32 %v787
    %v789 = vcvt.f32.s32 %v783
    %v790 = vshll.u32 %v789, 16
    %v791 = vadd.s32 %v790, %v788
    %v792 = vsel %vm232, %v762, 2147483647
    %v793 = vand.u32 %v792, 65535
    %v794 = vshra.s32 %v792, 16
    %v795 = vcvt.s32.f32 %v793
    %v796 = vcvt.s32.f32 %v794
    %797 = vmin.xlane.f32.xlu0 %v796
    %v798 = vpop.xlane.xlu0 %797
    %vm799 = vcmp.eq.f32.partialorder %v796, %v798
    %v800 = vsel %vm799, %v795, inf
    %801 = vmin.xlane.f32.xlu0 %v800
    %v802 = vpop.xlane.xlu0 %801
    %v803 = vcvt.f32.s32 %v802
    %v804 = vcvt.f32.s32 %v798
    %v805 = vshll.u32 %v804, 16
    %v806 = vadd.s32 %v805, %v803
    %v807 = vsel %vm232, %v763, 2147483647
    %v808 = vand.u32 %v807, 65535
    %v809 = vshra.s32 %v807, 16
    %v810 = vcvt.s32.f32 %v808
    %v811 = vcvt.s32.f32 %v809
    %812 = vmin.xlane.f32.xlu0 %v811
    %v813 = vpop.xlane.xlu0 %812
    %vm814 = vcmp.eq.f32.partialorder %v811, %v813
    %v815 = vsel %vm814, %v810, inf
    %816 = vmin.xlane.f32.xlu0 %v815
    %v817 = vpop.xlane.xlu0 %816
    %v818 = vcvt.f32.s32 %v817
    %v819 = vcvt.f32.s32 %v813
    %v820 = vshll.u32 %v819, 16
    %v821 = vadd.s32 %v820, %v818
    %v822 = vsel %vm232, %v764, 2147483647
    %v823 = vand.u32 %v822, 65535
    %v824 = vshra.s32 %v822, 16
    %v825 = vcvt.s32.f32 %v823
    %v826 = vcvt.s32.f32 %v824
    %827 = vmin.xlane.f32.xlu0 %v826
    %v828 = vpop.xlane.xlu0 %827
    %vm829 = vcmp.eq.f32.partialorder %v826, %v828
    %v830 = vsel %vm829, %v825, inf
    %831 = vmin.xlane.f32.xlu0 %v830
    %v832 = vpop.xlane.xlu0 %831
    %v833 = vcvt.f32.s32 %v832
    %v834 = vcvt.f32.s32 %v828
    %v835 = vshll.u32 %v834, 16
    %v836 = vadd.s32 %v835, %v833
    %v837 = vsel %vm232, %v765, 2147483647
    %v838 = vand.u32 %v837, 65535
    %v839 = vshra.s32 %v837, 16
    %v840 = vcvt.s32.f32 %v838
    %v841 = vcvt.s32.f32 %v839
    %842 = vmin.xlane.f32.xlu0 %v841
    %v843 = vpop.xlane.xlu0 %842
    %vm844 = vcmp.eq.f32.partialorder %v841, %v843
    %v845 = vsel %vm844, %v840, inf
    %846 = vmin.xlane.f32.xlu0 %v845
    %v847 = vpop.xlane.xlu0 %846
    %v848 = vcvt.f32.s32 %v847
    %v849 = vcvt.f32.s32 %v843
    %v850 = vshll.u32 %v849, 16
    %v851 = vadd.s32 %v850, %v848
    %v852 = vsel %vm232, %v766, 2147483647
    %v853 = vand.u32 %v852, 65535
    %v854 = vshra.s32 %v852, 16
    %v855 = vcvt.s32.f32 %v853
    %v856 = vcvt.s32.f32 %v854
    %857 = vmin.xlane.f32.xlu0 %v856
    %v858 = vpop.xlane.xlu0 %857
    %vm859 = vcmp.eq.f32.partialorder %v856, %v858
    %v860 = vsel %vm859, %v855, inf
    %861 = vmin.xlane.f32.xlu0 %v860
    %v862 = vpop.xlane.xlu0 %861
    %v863 = vcvt.f32.s32 %v862
    %v864 = vcvt.f32.s32 %v858
    %v865 = vshll.u32 %v864, 16
    %v866 = vadd.s32 %v865, %v863
    %v867 = vsel %vm232, %v767, 2147483647
    %v868 = vand.u32 %v867, 65535
    %v869 = vshra.s32 %v867, 16
    %v870 = vcvt.s32.f32 %v868
    %v871 = vcvt.s32.f32 %v869
    %872 = vmin.xlane.f32.xlu0 %v871
    %v873 = vpop.xlane.xlu0 %872
    %vm874 = vcmp.eq.f32.partialorder %v871, %v873
    %v875 = vsel %vm874, %v870, inf
    %876 = vmin.xlane.f32.xlu0 %v875
    %v877 = vpop.xlane.xlu0 %876
    %v878 = vcvt.f32.s32 %v877
    %v879 = vcvt.f32.s32 %v873
    %v880 = vshll.u32 %v879, 16
    %v881 = vadd.s32 %v880, %v878
    %v882 = vsel %vm232, %v768, 2147483647
    %v883 = vand.u32 %v882, 65535
    %v884 = vshra.s32 %v882, 16
    %v885 = vcvt.s32.f32 %v883
    %v886 = vcvt.s32.f32 %v884
    %887 = vmin.xlane.f32.xlu0 %v886
    %v888 = vpop.xlane.xlu0 %887
    %vm889 = vcmp.eq.f32.partialorder %v886, %v888
    %v890 = vsel %vm889, %v885, inf
    %891 = vmin.xlane.f32.xlu0 %v890
    %v892 = vpop.xlane.xlu0 %891
    %v893 = vcvt.f32.s32 %v892
    %v894 = vcvt.f32.s32 %v888
    %v895 = vshll.u32 %v894, 16
    %v896 = vadd.s32 %v895, %v893
    %v897 = vsel %vm232, %v769, 2147483647
    %v898 = vand.u32 %v897, 65535
    %v899 = vshra.s32 %v897, 16
    %v900 = vcvt.s32.f32 %v898
    %v901 = vcvt.s32.f32 %v899
    %902 = vmin.xlane.f32.xlu0 %v901
    %v903 = vpop.xlane.xlu0 %902
    %vm904 = vcmp.eq.f32.partialorder %v901, %v903
    %v905 = vsel %vm904, %v900, inf
    %906 = vmin.xlane.f32.xlu0 %v905
    %v907 = vpop.xlane.xlu0 %906
    %v908 = vcvt.f32.s32 %v907
    %v909 = vcvt.f32.s32 %v903
    %v910 = vshll.u32 %v909, 16
    %v911 = vadd.s32 %v910, %v908
    %v912 = vsel %vm232, %v770, 2147483647
    %v913 = vand.u32 %v912, 65535
    %v914 = vshra.s32 %v912, 16
    %v915 = vcvt.s32.f32 %v913
    %v916 = vcvt.s32.f32 %v914
    %917 = vmin.xlane.f32.xlu0 %v916
    %v918 = vpop.xlane.xlu0 %917
    %vm919 = vcmp.eq.f32.partialorder %v916, %v918
    %v920 = vsel %vm919, %v915, inf
    %921 = vmin.xlane.f32.xlu0 %v920
    %v922 = vpop.xlane.xlu0 %921
    %v923 = vcvt.f32.s32 %v922
    %v924 = vcvt.f32.s32 %v918
    %v925 = vshll.u32 %v924, 16
    %v926 = vadd.s32 %v925, %v923
    %v927 = vsel %vm232, %v771, 2147483647
    %v928 = vand.u32 %v927, 65535
    %v929 = vshra.s32 %v927, 16
    %v930 = vcvt.s32.f32 %v928
    %v931 = vcvt.s32.f32 %v929
    %932 = vmin.xlane.f32.xlu0 %v931
    %v933 = vpop.xlane.xlu0 %932
    %vm934 = vcmp.eq.f32.partialorder %v931, %v933
    %v935 = vsel %vm934, %v930, inf
    %936 = vmin.xlane.f32.xlu0 %v935
    %v937 = vpop.xlane.xlu0 %936
    %v938 = vcvt.f32.s32 %v937
    %v939 = vcvt.f32.s32 %v933
    %v940 = vshll.u32 %v939, 16
    %v941 = vadd.s32 %v940, %v938
    %v942 = vsel %vm232, %v772, 2147483647
    %v943 = vand.u32 %v942, 65535
    %v944 = vshra.s32 %v942, 16
    %v945 = vcvt.s32.f32 %v943
    %v946 = vcvt.s32.f32 %v944
    %947 = vmin.xlane.f32.xlu0 %v946
    %v948 = vpop.xlane.xlu0 %947
    %vm949 = vcmp.eq.f32.partialorder %v946, %v948
    %v950 = vsel %vm949, %v945, inf
    %951 = vmin.xlane.f32.xlu0 %v950
    %v952 = vpop.xlane.xlu0 %951
    %v953 = vcvt.f32.s32 %v952
    %v954 = vcvt.f32.s32 %v948
    %v955 = vshll.u32 %v954, 16
    %v956 = vadd.s32 %v955, %v953
    %v957 = vsel %vm232, %v773, 2147483647
    %v958 = vand.u32 %v957, 65535
    %v959 = vshra.s32 %v957, 16
    %v960 = vcvt.s32.f32 %v958
    %v961 = vcvt.s32.f32 %v959
    %962 = vmin.xlane.f32.xlu0 %v961
    %v963 = vpop.xlane.xlu0 %962
    %vm964 = vcmp.eq.f32.partialorder %v961, %v963
    %v965 = vsel %vm964, %v960, inf
    %966 = vmin.xlane.f32.xlu0 %v965
    %v967 = vpop.xlane.xlu0 %966
    %v968 = vcvt.f32.s32 %v967
    %v969 = vcvt.f32.s32 %v963
    %v970 = vshll.u32 %v969, 16
    %v971 = vadd.s32 %v970, %v968
    %v972 = vsel %vm232, %v774, 2147483647
    %v973 = vand.u32 %v972, 65535
    %v974 = vshra.s32 %v972, 16
    %v975 = vcvt.s32.f32 %v973
    %v976 = vcvt.s32.f32 %v974
    %977 = vmin.xlane.f32.xlu0 %v976
    %v978 = vpop.xlane.xlu0 %977
    %vm979 = vcmp.eq.f32.partialorder %v976, %v978
    %v980 = vsel %vm979, %v975, inf
    %981 = vmin.xlane.f32.xlu0 %v980
    %v982 = vpop.xlane.xlu0 %981
    %v983 = vcvt.f32.s32 %v982
    %v984 = vcvt.f32.s32 %v978
    %v985 = vshll.u32 %v984, 16
    %v986 = vadd.s32 %v985, %v983
    %v987 = vsel %vm232, %v775, 2147483647
    %v988 = vand.u32 %v987, 65535
    %v989 = vshra.s32 %v987, 16
    %v990 = vcvt.s32.f32 %v988
    %v991 = vcvt.s32.f32 %v989
    %992 = vmin.xlane.f32.xlu0 %v991
    %v993 = vpop.xlane.xlu0 %992
    %vm994 = vcmp.eq.f32.partialorder %v991, %v993
    %v995 = vsel %vm994, %v990, inf
    %996 = vmin.xlane.f32.xlu0 %v995
    %v997 = vpop.xlane.xlu0 %996
    %v998 = vcvt.f32.s32 %v997
    %v999 = vcvt.f32.s32 %v993
    %v1000 = vshll.u32 %v999, 16
    %v1001 = vadd.s32 %v1000, %v998
    %v1002 = vsel %vm232, %v776, 2147483647
    %v1003 = vand.u32 %v1002, 65535
    %v1004 = vshra.s32 %v1002, 16
    %v1005 = vcvt.s32.f32 %v1003
    %v1006 = vcvt.s32.f32 %v1004
    %1007 = vmin.xlane.f32.xlu0 %v1006
    %v1008 = vpop.xlane.xlu0 %1007
    %vm1009 = vcmp.eq.f32.partialorder %v1006, %v1008
    %v1010 = vsel %vm1009, %v1005, inf
    %1011 = vmin.xlane.f32.xlu0 %v1010
    %v1012 = vpop.xlane.xlu0 %1011
    %v1013 = vcvt.f32.s32 %v1012
    %v1014 = vcvt.f32.s32 %v1008
    %v1015 = vshll.u32 %v1014, 16
    %v1016 = vadd.s32 %v1015, %v1013
    %vm1017 = vcmp.eq.s32.totalorder %v33, %v791
    %vm1018 = vcmp.eq.s32.totalorder %v33, %v806
    %vm1019 = vcmp.eq.s32.totalorder %v33, %v821
    %vm1020 = vcmp.eq.s32.totalorder %v33, %v836
    %vm1021 = vcmp.eq.s32.totalorder %v33, %v851
    %vm1022 = vcmp.eq.s32.totalorder %v33, %v866
    %vm1023 = vcmp.eq.s32.totalorder %v33, %v881
    %vm1024 = vcmp.eq.s32.totalorder %v33, %v896
    %vm1025 = vcmp.eq.s32.totalorder %v33, %v911
    %vm1026 = vcmp.eq.s32.totalorder %v33, %v926
    %vm1027 = vcmp.eq.s32.totalorder %v33, %v941
    %vm1028 = vcmp.eq.s32.totalorder %v33, %v956
    %vm1029 = vcmp.eq.s32.totalorder %v33, %v971
    %vm1030 = vcmp.eq.s32.totalorder %v33, %v986
    %vm1031 = vcmp.eq.s32.totalorder %v33, %v1001
    %vm1032 = vcmp.eq.s32.totalorder %v33, %v1016
    %v1033 = vsel %vm1017, inf, %v154
    %v1034 = vsel %vm1018, inf, %v159
    %v1035 = vsel %vm1019, inf, %v164
    %v1036 = vsel %vm1020, inf, %v169
    %v1037 = vsel %vm1021, inf, %v174
    %v1038 = vsel %vm1022, inf, %v179
    %v1039 = vsel %vm1023, inf, %v184
    %v1040 = vsel %vm1024, inf, %v189
    %v1041 = vsel %vm1025, inf, %v194
    %v1042 = vsel %vm1026, inf, %v199
    %v1043 = vsel %vm1027, inf, %v204
    %v1044 = vsel %vm1028, inf, %v209
    %v1045 = vsel %vm1029, inf, %v214
    %v1046 = vsel %vm1030, inf, %v219
    %v1047 = vsel %vm1031, inf, %v224
    %v1048 = vsel %vm1032, inf, %v229
    %v1049 = vsel %vm232, %v1033, inf
    %1050 = vmin.xlane.f32.xlu0 %v1049
    %v1051 = vpop.xlane.xlu0 %1050
    %v1052 = vsel %vm232, %v1034, inf
    %1053 = vmin.xlane.f32.xlu0 %v1052
    %v1054 = vpop.xlane.xlu0 %1053
    %v1055 = vsel %vm232, %v1035, inf
    %1056 = vmin.xlane.f32.xlu0 %v1055
    %v1057 = vpop.xlane.xlu0 %1056
    %v1058 = vsel %vm232, %v1036, inf
    %1059 = vmin.xlane.f32.xlu0 %v1058
    %v1060 = vpop.xlane.xlu0 %1059
    %v1061 = vsel %vm232, %v1037, inf
    %1062 = vmin.xlane.f32.xlu0 %v1061
    %v1063 = vpop.xlane.xlu0 %1062
    %v1064 = vsel %vm232, %v1038, inf
    %1065 = vmin.xlane.f32.xlu0 %v1064
    %v1066 = vpop.xlane.xlu0 %1065
    %v1067 = vsel %vm232, %v1039, inf
    %1068 = vmin.xlane.f32.xlu0 %v1067
    %v1069 = vpop.xlane.xlu0 %1068
    %v1070 = vsel %vm232, %v1040, inf
    %1071 = vmin.xlane.f32.xlu0 %v1070
    %v1072 = vpop.xlane.xlu0 %1071
    %v1073 = vsel %vm232, %v1041, inf
    %1074 = vmin.xlane.f32.xlu0 %v1073
    %v1075 = vpop.xlane.xlu0 %1074
    %v1076 = vsel %vm232, %v1042, inf
    %1077 = vmin.xlane.f32.xlu0 %v1076
    %v1078 = vpop.xlane.xlu0 %1077
    %v1079 = vsel %vm232, %v1043, inf
    %1080 = vmin.xlane.f32.xlu0 %v1079
    %v1081 = vpop.xlane.xlu0 %1080
    %v1082 = vsel %vm232, %v1044, inf
    %1083 = vmin.xlane.f32.xlu0 %v1082
    %v1084 = vpop.xlane.xlu0 %1083
    %v1085 = vsel %vm232, %v1045, inf
    %1086 = vmin.xlane.f32.xlu0 %v1085
    %v1087 = vpop.xlane.xlu0 %1086
    %v1088 = vsel %vm232, %v1046, inf
    %1089 = vmin.xlane.f32.xlu0 %v1088
    %v1090 = vpop.xlane.xlu0 %1089
    %v1091 = vsel %vm232, %v1047, inf
    %1092 = vmin.xlane.f32.xlu0 %v1091
    %v1093 = vpop.xlane.xlu0 %1092
    %v1094 = vsel %vm232, %v1048, inf
    %1095 = vmin.xlane.f32.xlu0 %v1094
    %v1096 = vpop.xlane.xlu0 %1095
    %v1097 = vadd.f32 %v729, %v1051
    %v1098 = vadd.f32 %v730, %v1054
    %v1099 = vadd.f32 %v731, %v1057
    %v1100 = vadd.f32 %v732, %v1060
    %v1101 = vadd.f32 %v733, %v1063
    %v1102 = vadd.f32 %v734, %v1066
    %v1103 = vadd.f32 %v735, %v1069
    %v1104 = vadd.f32 %v736, %v1072
    %v1105 = vadd.f32 %v737, %v1075
    %v1106 = vadd.f32 %v738, %v1078
    %v1107 = vadd.f32 %v739, %v1081
    %v1108 = vadd.f32 %v740, %v1084
    %v1109 = vadd.f32 %v741, %v1087
    %v1110 = vadd.f32 %v742, %v1090
    %v1111 = vadd.f32 %v743, %v1093
    %v1112 = vadd.f32 %v744, %v1096
    %v1113 = vmul.f32 %v1097, 0.5
    %v1114 = vmul.f32 %v1098, 0.5
    %v1115 = vmul.f32 %v1099, 0.5
    %v1116 = vmul.f32 %v1100, 0.5
    %v1117 = vmul.f32 %v1101, 0.5
    %v1118 = vmul.f32 %v1102, 0.5
    %v1119 = vmul.f32 %v1103, 0.5
    %v1120 = vmul.f32 %v1104, 0.5
    %v1121 = vmul.f32 %v1105, 0.5
    %v1122 = vmul.f32 %v1106, 0.5
    %v1123 = vmul.f32 %v1107, 0.5
    %v1124 = vmul.f32 %v1108, 0.5
    %v1125 = vmul.f32 %v1109, 0.5
    %v1126 = vmul.f32 %v1110, 0.5
    %v1127 = vmul.f32 %v1111, 0.5
    %v1128 = vmul.f32 %v1112, 0.5
    %v1129 = vadd.f32 %v665, %v1113
    %v1130 = vadd.f32 %v666, %v1114
    %v1131 = vadd.f32 %v667, %v1115
    %v1132 = vadd.f32 %v668, %v1116
    %v1133 = vadd.f32 %v669, %v1117
    %v1134 = vadd.f32 %v670, %v1118
    %v1135 = vadd.f32 %v671, %v1119
    %v1136 = vadd.f32 %v672, %v1120
    %v1137 = vadd.f32 %v673, %v1121
    %v1138 = vadd.f32 %v674, %v1122
    %v1139 = vadd.f32 %v675, %v1123
    %v1140 = vadd.f32 %v676, %v1124
    %v1141 = vadd.f32 %v677, %v1125
    %v1142 = vadd.f32 %v678, %v1126
    %v1143 = vadd.f32 %v679, %v1127
    %v1144 = vadd.f32 %v680, %v1128
    %v1145 = vmul.f32 %v1129, 0.5
    %v1146 = vmul.f32 %v1130, 0.5
    %v1147 = vmul.f32 %v1131, 0.5
    %v1148 = vmul.f32 %v1132, 0.5
    %v1149 = vmul.f32 %v1133, 0.5
    %v1150 = vmul.f32 %v1134, 0.5
    %v1151 = vmul.f32 %v1135, 0.5
    %v1152 = vmul.f32 %v1136, 0.5
    %v1153 = vmul.f32 %v1137, 0.5
    %v1154 = vmul.f32 %v1138, 0.5
    %v1155 = vmul.f32 %v1139, 0.5
    %v1156 = vmul.f32 %v1140, 0.5
    %v1157 = vmul.f32 %v1141, 0.5
    %v1158 = vmul.f32 %v1142, 0.5
    %v1159 = vmul.f32 %v1143, 0.5
    %v1160 = vmul.f32 %v1144, 0.5
    %s1161 = scalar_lea.vmem %s0, 32
    %v1162 = vld [vmem:[%s1161] sm:$0xff]
    %v1163 = vld [vmem:[%s1161 + $0x8] sm:$0xff]
    %v1164 = vld [vmem:[%s1161 + $0x10] sm:$0xff]
    %v1165 = vld [vmem:[%s1161 + $0x18] sm:$0xff]
    %1166 = vmatprep.subr.mxu0 0.0
    %1167 = vmatpush1.msra.mxu0 %v1162
    %1168 = vmatprep.subr.mxu0 0.0
    %1169 = vmatpush1.msra.mxu0 %v1163
    %1170 = vmatprep.subr.mxu0 0.0
    %1171 = vmatpush1.msra.mxu0 %v1164
    %1172 = vmatprep.subr.mxu0 0.0
    %1173 = vmatpush1.msra.mxu0 %v1165
    %1174 = vmatprep.subr.mxu0 0.0
    %1175 = vmatpush1.msra.mxu0 0.0
    %1176 = vmatprep.subr.mxu0 0.0
    %1177 = vmatpush1.msra.mxu0 0.0
    %1178 = vmatprep.subr.mxu0 0.0
    %1179 = vmatpush1.msra.mxu0 0.0
    %1180 = vmatprep.subr.mxu0 0.0
    %1181 = vmatpush1.msra.mxu0 0.0
    %1182 = vmatprep.subr.mxu0 0.0
    %1183 = vmatpush1.msra.mxu0 0.0
    %1184 = vmatprep.subr.mxu0 0.0
    %1185 = vmatpush1.msra.mxu0 0.0
    %1186 = vmatprep.subr.mxu0 0.0
    %1187 = vmatpush1.msra.mxu0 0.0
    %1188 = vmatprep.subr.mxu0 0.0
    %1189 = vmatpush1.msra.mxu0 0.0
    %1190 = vmatprep.subr.mxu0 0.0
    %1191 = vmatpush1.msra.mxu0 0.0
    %1192 = vmatprep.subr.mxu0 0.0
    %1193 = vmatpush1.msra.mxu0 0.0
    %1194 = vmatprep.subr.mxu0 0.0
    %1195 = vmatpush1.msra.mxu0 0.0
    %1196 = vmatprep.subr.mxu0 0.0
    %1197 = vmatpush1.msra.mxu0 0.0
    %1198 = vmatprep.subr.mxu0 0.0
    %1199 = vmatpush1.msra.mxu0 0.0
    %1200 = vmatprep.subr.mxu0 0.0
    %1201 = vmatpush1.msra.mxu0 0.0
    %1202 = vmatprep.subr.mxu0 0.0
    %1203 = vmatpush1.msra.mxu0 0.0
    %1204 = vmatprep.subr.mxu0 0.0
    %1205 = vmatpush1.msra.mxu0 0.0
    %1206 = vmatprep.subr.mxu0 0.0
    %1207 = vmatpush1.msra.mxu0 0.0
    %1208 = vmatprep.subr.mxu0 0.0
    %1209 = vmatpush1.msra.mxu0 0.0
    %1210 = vmatprep.subr.mxu0 0.0
    %1211 = vmatpush1.msra.mxu0 0.0
    %1212 = vmatprep.subr.mxu0 0.0
    %1213 = vmatpush1.msra.mxu0 0.0
    %1214 = vmatprep.subr.mxu0 0.0
    %1215 = vmatpush1.msra.mxu0 0.0
    %1216 = vmatprep.subr.mxu0 0.0
    %1217 = vmatpush1.msra.mxu0 0.0
    %1218 = vmatprep.subr.mxu0 0.0
    %1219 = vmatpush1.msra.mxu0 0.0
    %1220 = vmatprep.subr.mxu0 0.0
    %1221 = vmatpush1.msra.mxu0 0.0
    %1222 = vmatprep.subr.mxu0 0.0
    %1223 = vmatpush1.msra.mxu0 0.0
    %1224 = vmatprep.subr.mxu0 0.0
    %1225 = vmatpush1.msra.mxu0 0.0
    %1226 = vmatprep.subr.mxu0 0.0
    %1227 = vmatpush1.msra.mxu0 0.0
    %1228 = vmatprep.subr.mxu0 0.0
    %1229 = vmatpush1.msra.mxu0 0.0
    %1230 = vmatprep.mubr.f32.mxu0 0.0
    %1231 = vmatmul.mubr.f32.gmra.mrb[0].mxu0 %v40
    %v1232 = vpop.f32.mrb[0].mxu0
    %v1233 = vadd.f32 0.0, %v1232
    %v1234 = vpop.f32.mrb[0].mxu0
    %1235 = vmatprep.mubr.f32.mxu0 0.0
    %1236 = vmatmul.mubr.f32.gmra.mrb[0].mxu0 %v43
    %v1237 = vpop.f32.mrb[0].mxu0
    %v1238 = vadd.f32 0.0, %v1237
    %v1239 = vpop.f32.mrb[0].mxu0
    %1240 = vmatprep.mubr.f32.mxu0 0.0
    %1241 = vmatmul.mubr.f32.gmra.mrb[0].mxu0 %v46
    %v1242 = vpop.f32.mrb[0].mxu0
    %v1243 = vadd.f32 0.0, %v1242
    %v1244 = vpop.f32.mrb[0].mxu0
    %1245 = vmatprep.mubr.f32.mxu0 0.0
    %1246 = vmatmul.mubr.f32.gmra.mrb[0].mxu0 %v49
    %v1247 = vpop.f32.mrb[0].mxu0
    %v1248 = vadd.f32 0.0, %v1247
    %v1249 = vpop.f32.mrb[0].mxu0
    %1250 = vmatprep.mubr.f32.mxu0 0.0
    %1251 = vmatmul.mubr.f32.gmra.mrb[0].mxu0 %v52
    %v1252 = vpop.f32.mrb[0].mxu0
    %v1253 = vadd.f32 0.0, %v1252
    %v1254 = vpop.f32.mrb[0].mxu0
    %1255 = vmatprep.mubr.f32.mxu0 0.0
    %1256 = vmatmul.mubr.f32.gmra.mrb[0].mxu0 %v55
    %v1257 = vpop.f32.mrb[0].mxu0
    %v1258 = vadd.f32 0.0, %v1257
    %v1259 = vpop.f32.mrb[0].mxu0
    %1260 = vmatprep.mubr.f32.mxu0 0.0
    %1261 = vmatmul.mubr.f32.gmra.mrb[0].mxu0 %v58
    %v1262 = vpop.f32.mrb[0].mxu0
    %v1263 = vadd.f32 0.0, %v1262
    %v1264 = vpop.f32.mrb[0].mxu0
    %1265 = vmatprep.mubr.f32.mxu0 0.0
    %1266 = vmatmul.mubr.f32.gmra.mrb[0].mxu0 %v61
    %v1267 = vpop.f32.mrb[0].mxu0
    %v1268 = vadd.f32 0.0, %v1267
    %v1269 = vpop.f32.mrb[0].mxu0
    %1270 = vmatprep.mubr.f32.mxu0 0.0
    %1271 = vmatmul.mubr.f32.gmra.mrb[0].mxu0 %v64
    %v1272 = vpop.f32.mrb[0].mxu0
    %v1273 = vadd.f32 0.0, %v1272
    %v1274 = vpop.f32.mrb[0].mxu0
    %1275 = vmatprep.mubr.f32.mxu0 0.0
    %1276 = vmatmul.mubr.f32.gmra.mrb[0].mxu0 %v67
    %v1277 = vpop.f32.mrb[0].mxu0
    %v1278 = vadd.f32 0.0, %v1277
    %v1279 = vpop.f32.mrb[0].mxu0
    %1280 = vmatprep.mubr.f32.mxu0 0.0
    %1281 = vmatmul.mubr.f32.gmra.mrb[0].mxu0 %v70
    %v1282 = vpop.f32.mrb[0].mxu0
    %v1283 = vadd.f32 0.0, %v1282
    %v1284 = vpop.f32.mrb[0].mxu0
    %1285 = vmatprep.mubr.f32.mxu0 0.0
    %1286 = vmatmul.mubr.f32.gmra.mrb[0].mxu0 %v73
    %v1287 = vpop.f32.mrb[0].mxu0
    %v1288 = vadd.f32 0.0, %v1287
    %v1289 = vpop.f32.mrb[0].mxu0
    %1290 = vmatprep.mubr.f32.mxu0 0.0
    %1291 = vmatmul.mubr.f32.gmra.mrb[0].mxu0 %v76
    %v1292 = vpop.f32.mrb[0].mxu0
    %v1293 = vadd.f32 0.0, %v1292
    %v1294 = vpop.f32.mrb[0].mxu0
    %1295 = vmatprep.mubr.f32.mxu0 0.0
    %1296 = vmatmul.mubr.f32.gmra.mrb[0].mxu0 %v79
    %v1297 = vpop.f32.mrb[0].mxu0
    %v1298 = vadd.f32 0.0, %v1297
    %v1299 = vpop.f32.mrb[0].mxu0
    %1300 = vmatprep.mubr.f32.mxu0 0.0
    %1301 = vmatmul.mubr.f32.gmra.mrb[0].mxu0 %v82
    %v1302 = vpop.f32.mrb[0].mxu0
    %v1303 = vadd.f32 0.0, %v1302
    %v1304 = vpop.f32.mrb[0].mxu0
    %1305 = vmatprep.mubr.f32.mxu0 0.0
    %1306 = vmatmul.mubr.f32.gmra.mrb[0].mxu0 %v85
    %v1307 = vpop.f32.mrb[0].mxu0
    %v1308 = vadd.f32 0.0, %v1307
    %v1309 = vpop.f32.mrb[0].mxu0
    %1310 = vdwg.mxu0
    %v1311 = vsel %vm232, %v1233, -inf
    %1312 = vmax.xlane.f32.xlu0 %v1311
    %v1313 = vpop.xlane.xlu0 %1312
    %v1314 = vsel %vm232, %v1238, -inf
    %1315 = vmax.xlane.f32.xlu0 %v1314
    %v1316 = vpop.xlane.xlu0 %1315
    %v1317 = vsel %vm232, %v1243, -inf
    %1318 = vmax.xlane.f32.xlu0 %v1317
    %v1319 = vpop.xlane.xlu0 %1318
    %v1320 = vsel %vm232, %v1248, -inf
    %1321 = vmax.xlane.f32.xlu0 %v1320
    %v1322 = vpop.xlane.xlu0 %1321
    %v1323 = vsel %vm232, %v1253, -inf
    %1324 = vmax.xlane.f32.xlu0 %v1323
    %v1325 = vpop.xlane.xlu0 %1324
    %v1326 = vsel %vm232, %v1258, -inf
    %1327 = vmax.xlane.f32.xlu0 %v1326
    %v1328 = vpop.xlane.xlu0 %1327
    %v1329 = vsel %vm232, %v1263, -inf
    %1330 = vmax.xlane.f32.xlu0 %v1329
    %v1331 = vpop.xlane.xlu0 %1330
    %v1332 = vsel %vm232, %v1268, -inf
    %1333 = vmax.xlane.f32.xlu0 %v1332
    %v1334 = vpop.xlane.xlu0 %1333
    %v1335 = vsel %vm232, %v1273, -inf
    %1336 = vmax.xlane.f32.xlu0 %v1335
    %v1337 = vpop.xlane.xlu0 %1336
    %v1338 = vsel %vm232, %v1278, -inf
    %1339 = vmax.xlane.f32.xlu0 %v1338
    %v1340 = vpop.xlane.xlu0 %1339
    %v1341 = vsel %vm232, %v1283, -inf
    %1342 = vmax.xlane.f32.xlu0 %v1341
    %v1343 = vpop.xlane.xlu0 %1342
    %v1344 = vsel %vm232, %v1288, -inf
    %1345 = vmax.xlane.f32.xlu0 %v1344
    %v1346 = vpop.xlane.xlu0 %1345
    %v1347 = vsel %vm232, %v1293, -inf
    %1348 = vmax.xlane.f32.xlu0 %v1347
    %v1349 = vpop.xlane.xlu0 %1348
    %v1350 = vsel %vm232, %v1298, -inf
    %1351 = vmax.xlane.f32.xlu0 %v1350
    %v1352 = vpop.xlane.xlu0 %1351
    %v1353 = vsel %vm232, %v1303, -inf
    %1354 = vmax.xlane.f32.xlu0 %v1353
    %v1355 = vpop.xlane.xlu0 %1354
    %v1356 = vsel %vm232, %v1308, -inf
    %1357 = vmax.xlane.f32.xlu0 %v1356
    %v1358 = vpop.xlane.xlu0 %1357
    %v1359 = vadd.f32 %v1313, 0.0
    %v1360 = vadd.f32 %v1316, 0.0
    %v1361 = vadd.f32 %v1319, 0.0
    %v1362 = vadd.f32 %v1322, 0.0
    %v1363 = vadd.f32 %v1325, 0.0
    %v1364 = vadd.f32 %v1328, 0.0
    %v1365 = vadd.f32 %v1331, 0.0
    %v1366 = vadd.f32 %v1334, 0.0
    %v1367 = vadd.f32 %v1337, 0.0
    %v1368 = vadd.f32 %v1340, 0.0
    %v1369 = vadd.f32 %v1343, 0.0
    %v1370 = vadd.f32 %v1346, 0.0
    %v1371 = vadd.f32 %v1349, 0.0
    %v1372 = vadd.f32 %v1352, 0.0
    %v1373 = vadd.f32 %v1355, 0.0
    %v1374 = vadd.f32 %v1358, 0.0
    %vm1375 = vcmp.eq.f32.partialorder %v1233, %v1313
    %vm1376 = vcmp.eq.f32.partialorder %v1238, %v1316
    %vm1377 = vcmp.eq.f32.partialorder %v1243, %v1319
    %vm1378 = vcmp.eq.f32.partialorder %v1248, %v1322
    %vm1379 = vcmp.eq.f32.partialorder %v1253, %v1325
    %vm1380 = vcmp.eq.f32.partialorder %v1258, %v1328
    %vm1381 = vcmp.eq.f32.partialorder %v1263, %v1331
    %vm1382 = vcmp.eq.f32.partialorder %v1268, %v1334
    %vm1383 = vcmp.eq.f32.partialorder %v1273, %v1337
    %vm1384 = vcmp.eq.f32.partialorder %v1278, %v1340
    %vm1385 = vcmp.eq.f32.partialorder %v1283, %v1343
    %vm1386 = vcmp.eq.f32.partialorder %v1288, %v1346
    %vm1387 = vcmp.eq.f32.partialorder %v1293, %v1349
    %vm1388 = vcmp.eq.f32.partialorder %v1298, %v1352
    %vm1389 = vcmp.eq.f32.partialorder %v1303, %v1355
    %vm1390 = vcmp.eq.f32.partialorder %v1308, %v1358
    %v1391 = vsel %vm1375, %v33, 64
    %v1392 = vsel %vm1376, %v33, 64
    %v1393 = vsel %vm1377, %v33, 64
    %v1394 = vsel %vm1378, %v33, 64
    %v1395 = vsel %vm1379, %v33, 64
    %v1396 = vsel %vm1380, %v33, 64
    %v1397 = vsel %vm1381, %v33, 64
    %v1398 = vsel %vm1382, %v33, 64
    %v1399 = vsel %vm1383, %v33, 64
    %v1400 = vsel %vm1384, %v33, 64
    %v1401 = vsel %vm1385, %v33, 64
    %v1402 = vsel %vm1386, %v33, 64
    %v1403 = vsel %vm1387, %v33, 64
    %v1404 = vsel %vm1388, %v33, 64
    %v1405 = vsel %vm1389, %v33, 64
    %v1406 = vsel %vm1390, %v33, 64
    %v1407 = vsel %vm232, %v1391, 2147483647
    %v1408 = vand.u32 %v1407, 65535
    %v1409 = vshra.s32 %v1407, 16
    %v1410 = vcvt.s32.f32 %v1408
    %v1411 = vcvt.s32.f32 %v1409
    %1412 = vmin.xlane.f32.xlu0 %v1411
    %v1413 = vpop.xlane.xlu0 %1412
    %vm1414 = vcmp.eq.f32.partialorder %v1411, %v1413
    %v1415 = vsel %vm1414, %v1410, inf
    %1416 = vmin.xlane.f32.xlu0 %v1415
    %v1417 = vpop.xlane.xlu0 %1416
    %v1418 = vcvt.f32.s32 %v1417
    %v1419 = vcvt.f32.s32 %v1413
    %v1420 = vshll.u32 %v1419, 16
    %v1421 = vadd.s32 %v1420, %v1418
    %v1422 = vsel %vm232, %v1392, 2147483647
    %v1423 = vand.u32 %v1422, 65535
    %v1424 = vshra.s32 %v1422, 16
    %v1425 = vcvt.s32.f32 %v1423
    %v1426 = vcvt.s32.f32 %v1424
    %1427 = vmin.xlane.f32.xlu0 %v1426
    %v1428 = vpop.xlane.xlu0 %1427
    %vm1429 = vcmp.eq.f32.partialorder %v1426, %v1428
    %v1430 = vsel %vm1429, %v1425, inf
    %1431 = vmin.xlane.f32.xlu0 %v1430
    %v1432 = vpop.xlane.xlu0 %1431
    %v1433 = vcvt.f32.s32 %v1432
    %v1434 = vcvt.f32.s32 %v1428
    %v1435 = vshll.u32 %v1434, 16
    %v1436 = vadd.s32 %v1435, %v1433
    %v1437 = vsel %vm232, %v1393, 2147483647
    %v1438 = vand.u32 %v1437, 65535
    %v1439 = vshra.s32 %v1437, 16
    %v1440 = vcvt.s32.f32 %v1438
    %v1441 = vcvt.s32.f32 %v1439
    %1442 = vmin.xlane.f32.xlu0 %v1441
    %v1443 = vpop.xlane.xlu0 %1442
    %vm1444 = vcmp.eq.f32.partialorder %v1441, %v1443
    %v1445 = vsel %vm1444, %v1440, inf
    %1446 = vmin.xlane.f32.xlu0 %v1445
    %v1447 = vpop.xlane.xlu0 %1446
    %v1448 = vcvt.f32.s32 %v1447
    %v1449 = vcvt.f32.s32 %v1443
    %v1450 = vshll.u32 %v1449, 16
    %v1451 = vadd.s32 %v1450, %v1448
    %v1452 = vsel %vm232, %v1394, 2147483647
    %v1453 = vand.u32 %v1452, 65535
    %v1454 = vshra.s32 %v1452, 16
    %v1455 = vcvt.s32.f32 %v1453
    %v1456 = vcvt.s32.f32 %v1454
    %1457 = vmin.xlane.f32.xlu0 %v1456
    %v1458 = vpop.xlane.xlu0 %1457
    %vm1459 = vcmp.eq.f32.partialorder %v1456, %v1458
    %v1460 = vsel %vm1459, %v1455, inf
    %1461 = vmin.xlane.f32.xlu0 %v1460
    %v1462 = vpop.xlane.xlu0 %1461
    %v1463 = vcvt.f32.s32 %v1462
    %v1464 = vcvt.f32.s32 %v1458
    %v1465 = vshll.u32 %v1464, 16
    %v1466 = vadd.s32 %v1465, %v1463
    %v1467 = vsel %vm232, %v1395, 2147483647
    %v1468 = vand.u32 %v1467, 65535
    %v1469 = vshra.s32 %v1467, 16
    %v1470 = vcvt.s32.f32 %v1468
    %v1471 = vcvt.s32.f32 %v1469
    %1472 = vmin.xlane.f32.xlu0 %v1471
    %v1473 = vpop.xlane.xlu0 %1472
    %vm1474 = vcmp.eq.f32.partialorder %v1471, %v1473
    %v1475 = vsel %vm1474, %v1470, inf
    %1476 = vmin.xlane.f32.xlu0 %v1475
    %v1477 = vpop.xlane.xlu0 %1476
    %v1478 = vcvt.f32.s32 %v1477
    %v1479 = vcvt.f32.s32 %v1473
    %v1480 = vshll.u32 %v1479, 16
    %v1481 = vadd.s32 %v1480, %v1478
    %v1482 = vsel %vm232, %v1396, 2147483647
    %v1483 = vand.u32 %v1482, 65535
    %v1484 = vshra.s32 %v1482, 16
    %v1485 = vcvt.s32.f32 %v1483
    %v1486 = vcvt.s32.f32 %v1484
    %1487 = vmin.xlane.f32.xlu0 %v1486
    %v1488 = vpop.xlane.xlu0 %1487
    %vm1489 = vcmp.eq.f32.partialorder %v1486, %v1488
    %v1490 = vsel %vm1489, %v1485, inf
    %1491 = vmin.xlane.f32.xlu0 %v1490
    %v1492 = vpop.xlane.xlu0 %1491
    %v1493 = vcvt.f32.s32 %v1492
    %v1494 = vcvt.f32.s32 %v1488
    %v1495 = vshll.u32 %v1494, 16
    %v1496 = vadd.s32 %v1495, %v1493
    %v1497 = vsel %vm232, %v1397, 2147483647
    %v1498 = vand.u32 %v1497, 65535
    %v1499 = vshra.s32 %v1497, 16
    %v1500 = vcvt.s32.f32 %v1498
    %v1501 = vcvt.s32.f32 %v1499
    %1502 = vmin.xlane.f32.xlu0 %v1501
    %v1503 = vpop.xlane.xlu0 %1502
    %vm1504 = vcmp.eq.f32.partialorder %v1501, %v1503
    %v1505 = vsel %vm1504, %v1500, inf
    %1506 = vmin.xlane.f32.xlu0 %v1505
    %v1507 = vpop.xlane.xlu0 %1506
    %v1508 = vcvt.f32.s32 %v1507
    %v1509 = vcvt.f32.s32 %v1503
    %v1510 = vshll.u32 %v1509, 16
    %v1511 = vadd.s32 %v1510, %v1508
    %v1512 = vsel %vm232, %v1398, 2147483647
    %v1513 = vand.u32 %v1512, 65535
    %v1514 = vshra.s32 %v1512, 16
    %v1515 = vcvt.s32.f32 %v1513
    %v1516 = vcvt.s32.f32 %v1514
    %1517 = vmin.xlane.f32.xlu0 %v1516
    %v1518 = vpop.xlane.xlu0 %1517
    %vm1519 = vcmp.eq.f32.partialorder %v1516, %v1518
    %v1520 = vsel %vm1519, %v1515, inf
    %1521 = vmin.xlane.f32.xlu0 %v1520
    %v1522 = vpop.xlane.xlu0 %1521
    %v1523 = vcvt.f32.s32 %v1522
    %v1524 = vcvt.f32.s32 %v1518
    %v1525 = vshll.u32 %v1524, 16
    %v1526 = vadd.s32 %v1525, %v1523
    %v1527 = vsel %vm232, %v1399, 2147483647
    %v1528 = vand.u32 %v1527, 65535
    %v1529 = vshra.s32 %v1527, 16
    %v1530 = vcvt.s32.f32 %v1528
    %v1531 = vcvt.s32.f32 %v1529
    %1532 = vmin.xlane.f32.xlu0 %v1531
    %v1533 = vpop.xlane.xlu0 %1532
    %vm1534 = vcmp.eq.f32.partialorder %v1531, %v1533
    %v1535 = vsel %vm1534, %v1530, inf
    %1536 = vmin.xlane.f32.xlu0 %v1535
    %v1537 = vpop.xlane.xlu0 %1536
    %v1538 = vcvt.f32.s32 %v1537
    %v1539 = vcvt.f32.s32 %v1533
    %v1540 = vshll.u32 %v1539, 16
    %v1541 = vadd.s32 %v1540, %v1538
    %v1542 = vsel %vm232, %v1400, 2147483647
    %v1543 = vand.u32 %v1542, 65535
    %v1544 = vshra.s32 %v1542, 16
    %v1545 = vcvt.s32.f32 %v1543
    %v1546 = vcvt.s32.f32 %v1544
    %1547 = vmin.xlane.f32.xlu0 %v1546
    %v1548 = vpop.xlane.xlu0 %1547
    %vm1549 = vcmp.eq.f32.partialorder %v1546, %v1548
    %v1550 = vsel %vm1549, %v1545, inf
    %1551 = vmin.xlane.f32.xlu0 %v1550
    %v1552 = vpop.xlane.xlu0 %1551
    %v1553 = vcvt.f32.s32 %v1552
    %v1554 = vcvt.f32.s32 %v1548
    %v1555 = vshll.u32 %v1554, 16
    %v1556 = vadd.s32 %v1555, %v1553
    %v1557 = vsel %vm232, %v1401, 2147483647
    %v1558 = vand.u32 %v1557, 65535
    %v1559 = vshra.s32 %v1557, 16
    %v1560 = vcvt.s32.f32 %v1558
    %v1561 = vcvt.s32.f32 %v1559
    %1562 = vmin.xlane.f32.xlu0 %v1561
    %v1563 = vpop.xlane.xlu0 %1562
    %vm1564 = vcmp.eq.f32.partialorder %v1561, %v1563
    %v1565 = vsel %vm1564, %v1560, inf
    %1566 = vmin.xlane.f32.xlu0 %v1565
    %v1567 = vpop.xlane.xlu0 %1566
    %v1568 = vcvt.f32.s32 %v1567
    %v1569 = vcvt.f32.s32 %v1563
    %v1570 = vshll.u32 %v1569, 16
    %v1571 = vadd.s32 %v1570, %v1568
    %v1572 = vsel %vm232, %v1402, 2147483647
    %v1573 = vand.u32 %v1572, 65535
    %v1574 = vshra.s32 %v1572, 16
    %v1575 = vcvt.s32.f32 %v1573
    %v1576 = vcvt.s32.f32 %v1574
    %1577 = vmin.xlane.f32.xlu0 %v1576
    %v1578 = vpop.xlane.xlu0 %1577
    %vm1579 = vcmp.eq.f32.partialorder %v1576, %v1578
    %v1580 = vsel %vm1579, %v1575, inf
    %1581 = vmin.xlane.f32.xlu0 %v1580
    %v1582 = vpop.xlane.xlu0 %1581
    %v1583 = vcvt.f32.s32 %v1582
    %v1584 = vcvt.f32.s32 %v1578
    %v1585 = vshll.u32 %v1584, 16
    %v1586 = vadd.s32 %v1585, %v1583
    %v1587 = vsel %vm232, %v1403, 2147483647
    %v1588 = vand.u32 %v1587, 65535
    %v1589 = vshra.s32 %v1587, 16
    %v1590 = vcvt.s32.f32 %v1588
    %v1591 = vcvt.s32.f32 %v1589
    %1592 = vmin.xlane.f32.xlu0 %v1591
    %v1593 = vpop.xlane.xlu0 %1592
    %vm1594 = vcmp.eq.f32.partialorder %v1591, %v1593
    %v1595 = vsel %vm1594, %v1590, inf
    %1596 = vmin.xlane.f32.xlu0 %v1595
    %v1597 = vpop.xlane.xlu0 %1596
    %v1598 = vcvt.f32.s32 %v1597
    %v1599 = vcvt.f32.s32 %v1593
    %v1600 = vshll.u32 %v1599, 16
    %v1601 = vadd.s32 %v1600, %v1598
    %v1602 = vsel %vm232, %v1404, 2147483647
    %v1603 = vand.u32 %v1602, 65535
    %v1604 = vshra.s32 %v1602, 16
    %v1605 = vcvt.s32.f32 %v1603
    %v1606 = vcvt.s32.f32 %v1604
    %1607 = vmin.xlane.f32.xlu0 %v1606
    %v1608 = vpop.xlane.xlu0 %1607
    %vm1609 = vcmp.eq.f32.partialorder %v1606, %v1608
    %v1610 = vsel %vm1609, %v1605, inf
    %1611 = vmin.xlane.f32.xlu0 %v1610
    %v1612 = vpop.xlane.xlu0 %1611
    %v1613 = vcvt.f32.s32 %v1612
    %v1614 = vcvt.f32.s32 %v1608
    %v1615 = vshll.u32 %v1614, 16
    %v1616 = vadd.s32 %v1615, %v1613
    %v1617 = vsel %vm232, %v1405, 2147483647
    %v1618 = vand.u32 %v1617, 65535
    %v1619 = vshra.s32 %v1617, 16
    %v1620 = vcvt.s32.f32 %v1618
    %v1621 = vcvt.s32.f32 %v1619
    %1622 = vmin.xlane.f32.xlu0 %v1621
    %v1623 = vpop.xlane.xlu0 %1622
    %vm1624 = vcmp.eq.f32.partialorder %v1621, %v1623
    %v1625 = vsel %vm1624, %v1620, inf
    %1626 = vmin.xlane.f32.xlu0 %v1625
    %v1627 = vpop.xlane.xlu0 %1626
    %v1628 = vcvt.f32.s32 %v1627
    %v1629 = vcvt.f32.s32 %v1623
    %v1630 = vshll.u32 %v1629, 16
    %v1631 = vadd.s32 %v1630, %v1628
    %v1632 = vsel %vm232, %v1406, 2147483647
    %v1633 = vand.u32 %v1632, 65535
    %v1634 = vshra.s32 %v1632, 16
    %v1635 = vcvt.s32.f32 %v1633
    %v1636 = vcvt.s32.f32 %v1634
    %1637 = vmin.xlane.f32.xlu0 %v1636
    %v1638 = vpop.xlane.xlu0 %1637
    %vm1639 = vcmp.eq.f32.partialorder %v1636, %v1638
    %v1640 = vsel %vm1639, %v1635, inf
    %1641 = vmin.xlane.f32.xlu0 %v1640
    %v1642 = vpop.xlane.xlu0 %1641
    %v1643 = vcvt.f32.s32 %v1642
    %v1644 = vcvt.f32.s32 %v1638
    %v1645 = vshll.u32 %v1644, 16
    %v1646 = vadd.s32 %v1645, %v1643
    %vm1647 = vcmp.eq.s32.totalorder %v33, %v1421
    %vm1648 = vcmp.eq.s32.totalorder %v33, %v1436
    %vm1649 = vcmp.eq.s32.totalorder %v33, %v1451
    %vm1650 = vcmp.eq.s32.totalorder %v33, %v1466
    %vm1651 = vcmp.eq.s32.totalorder %v33, %v1481
    %vm1652 = vcmp.eq.s32.totalorder %v33, %v1496
    %vm1653 = vcmp.eq.s32.totalorder %v33, %v1511
    %vm1654 = vcmp.eq.s32.totalorder %v33, %v1526
    %vm1655 = vcmp.eq.s32.totalorder %v33, %v1541
    %vm1656 = vcmp.eq.s32.totalorder %v33, %v1556
    %vm1657 = vcmp.eq.s32.totalorder %v33, %v1571
    %vm1658 = vcmp.eq.s32.totalorder %v33, %v1586
    %vm1659 = vcmp.eq.s32.totalorder %v33, %v1601
    %vm1660 = vcmp.eq.s32.totalorder %v33, %v1616
    %vm1661 = vcmp.eq.s32.totalorder %v33, %v1631
    %vm1662 = vcmp.eq.s32.totalorder %v33, %v1646
    %v1663 = vsel %vm1647, -inf, %v1233
    %v1664 = vsel %vm1648, -inf, %v1238
    %v1665 = vsel %vm1649, -inf, %v1243
    %v1666 = vsel %vm1650, -inf, %v1248
    %v1667 = vsel %vm1651, -inf, %v1253
    %v1668 = vsel %vm1652, -inf, %v1258
    %v1669 = vsel %vm1653, -inf, %v1263
    %v1670 = vsel %vm1654, -inf, %v1268
    %v1671 = vsel %vm1655, -inf, %v1273
    %v1672 = vsel %vm1656, -inf, %v1278
    %v1673 = vsel %vm1657, -inf, %v1283
    %v1674 = vsel %vm1658, -inf, %v1288
    %v1675 = vsel %vm1659, -inf, %v1293
    %v1676 = vsel %vm1660, -inf, %v1298
    %v1677 = vsel %vm1661, -inf, %v1303
    %v1678 = vsel %vm1662, -inf, %v1308
    %v1679 = vsel %vm232, %v1663, -inf
    %1680 = vmax.xlane.f32.xlu0 %v1679
    %v1681 = vpop.xlane.xlu0 %1680
    %v1682 = vsel %vm232, %v1664, -inf
    %1683 = vmax.xlane.f32.xlu0 %v1682
    %v1684 = vpop.xlane.xlu0 %1683
    %v1685 = vsel %vm232, %v1665, -inf
    %1686 = vmax.xlane.f32.xlu0 %v1685
    %v1687 = vpop.xlane.xlu0 %1686
    %v1688 = vsel %vm232, %v1666, -inf
    %1689 = vmax.xlane.f32.xlu0 %v1688
    %v1690 = vpop.xlane.xlu0 %1689
    %v1691 = vsel %vm232, %v1667, -inf
    %1692 = vmax.xlane.f32.xlu0 %v1691
    %v1693 = vpop.xlane.xlu0 %1692
    %v1694 = vsel %vm232, %v1668, -inf
    %1695 = vmax.xlane.f32.xlu0 %v1694
    %v1696 = vpop.xlane.xlu0 %1695
    %v1697 = vsel %vm232, %v1669, -inf
    %1698 = vmax.xlane.f32.xlu0 %v1697
    %v1699 = vpop.xlane.xlu0 %1698
    %v1700 = vsel %vm232, %v1670, -inf
    %1701 = vmax.xlane.f32.xlu0 %v1700
    %v1702 = vpop.xlane.xlu0 %1701
    %v1703 = vsel %vm232, %v1671, -inf
    %1704 = vmax.xlane.f32.xlu0 %v1703
    %v1705 = vpop.xlane.xlu0 %1704
    %v1706 = vsel %vm232, %v1672, -inf
    %1707 = vmax.xlane.f32.xlu0 %v1706
    %v1708 = vpop.xlane.xlu0 %1707
    %v1709 = vsel %vm232, %v1673, -inf
    %1710 = vmax.xlane.f32.xlu0 %v1709
    %v1711 = vpop.xlane.xlu0 %1710
    %v1712 = vsel %vm232, %v1674, -inf
    %1713 = vmax.xlane.f32.xlu0 %v1712
    %v1714 = vpop.xlane.xlu0 %1713
    %v1715 = vsel %vm232, %v1675, -inf
    %1716 = vmax.xlane.f32.xlu0 %v1715
    %v1717 = vpop.xlane.xlu0 %1716
    %v1718 = vsel %vm232, %v1676, -inf
    %1719 = vmax.xlane.f32.xlu0 %v1718
    %v1720 = vpop.xlane.xlu0 %1719
    %v1721 = vsel %vm232, %v1677, -inf
    %1722 = vmax.xlane.f32.xlu0 %v1721
    %v1723 = vpop.xlane.xlu0 %1722
    %v1724 = vsel %vm232, %v1678, -inf
    %1725 = vmax.xlane.f32.xlu0 %v1724
    %v1726 = vpop.xlane.xlu0 %1725
    %v1727 = vadd.f32 %v1359, %v1681
    %v1728 = vadd.f32 %v1360, %v1684
    %v1729 = vadd.f32 %v1361, %v1687
    %v1730 = vadd.f32 %v1362, %v1690
    %v1731 = vadd.f32 %v1363, %v1693
    %v1732 = vadd.f32 %v1364, %v1696
    %v1733 = vadd.f32 %v1365, %v1699
    %v1734 = vadd.f32 %v1366, %v1702
    %v1735 = vadd.f32 %v1367, %v1705
    %v1736 = vadd.f32 %v1368, %v1708
    %v1737 = vadd.f32 %v1369, %v1711
    %v1738 = vadd.f32 %v1370, %v1714
    %v1739 = vadd.f32 %v1371, %v1717
    %v1740 = vadd.f32 %v1372, %v1720
    %v1741 = vadd.f32 %v1373, %v1723
    %v1742 = vadd.f32 %v1374, %v1726
    %v1743 = vmul.f32 %v1727, 0.5
    %v1744 = vmul.f32 %v1728, 0.5
    %v1745 = vmul.f32 %v1729, 0.5
    %v1746 = vmul.f32 %v1730, 0.5
    %v1747 = vmul.f32 %v1731, 0.5
    %v1748 = vmul.f32 %v1732, 0.5
    %v1749 = vmul.f32 %v1733, 0.5
    %v1750 = vmul.f32 %v1734, 0.5
    %v1751 = vmul.f32 %v1735, 0.5
    %v1752 = vmul.f32 %v1736, 0.5
    %v1753 = vmul.f32 %v1737, 0.5
    %v1754 = vmul.f32 %v1738, 0.5
    %v1755 = vmul.f32 %v1739, 0.5
    %v1756 = vmul.f32 %v1740, 0.5
    %v1757 = vmul.f32 %v1741, 0.5
    %v1758 = vmul.f32 %v1742, 0.5
    %v1759 = vsel %vm232, %v1233, inf
    %1760 = vmin.xlane.f32.xlu0 %v1759
    %v1761 = vpop.xlane.xlu0 %1760
    %v1762 = vsel %vm232, %v1238, inf
    %1763 = vmin.xlane.f32.xlu0 %v1762
    %v1764 = vpop.xlane.xlu0 %1763
    %v1765 = vsel %vm232, %v1243, inf
    %1766 = vmin.xlane.f32.xlu0 %v1765
    %v1767 = vpop.xlane.xlu0 %1766
    %v1768 = vsel %vm232, %v1248, inf
    %1769 = vmin.xlane.f32.xlu0 %v1768
    %v1770 = vpop.xlane.xlu0 %1769
    %v1771 = vsel %vm232, %v1253, inf
    %1772 = vmin.xlane.f32.xlu0 %v1771
    %v1773 = vpop.xlane.xlu0 %1772
    %v1774 = vsel %vm232, %v1258, inf
    %1775 = vmin.xlane.f32.xlu0 %v1774
    %v1776 = vpop.xlane.xlu0 %1775
    %v1777 = vsel %vm232, %v1263, inf
    %1778 = vmin.xlane.f32.xlu0 %v1777
    %v1779 = vpop.xlane.xlu0 %1778
    %v1780 = vsel %vm232, %v1268, inf
    %1781 = vmin.xlane.f32.xlu0 %v1780
    %v1782 = vpop.xlane.xlu0 %1781
    %v1783 = vsel %vm232, %v1273, inf
    %1784 = vmin.xlane.f32.xlu0 %v1783
    %v1785 = vpop.xlane.xlu0 %1784
    %v1786 = vsel %vm232, %v1278, inf
    %1787 = vmin.xlane.f32.xlu0 %v1786
    %v1788 = vpop.xlane.xlu0 %1787
    %v1789 = vsel %vm232, %v1283, inf
    %1790 = vmin.xlane.f32.xlu0 %v1789
    %v1791 = vpop.xlane.xlu0 %1790
    %v1792 = vsel %vm232, %v1288, inf
    %1793 = vmin.xlane.f32.xlu0 %v1792
    %v1794 = vpop.xlane.xlu0 %1793
    %v1795 = vsel %vm232, %v1293, inf
    %1796 = vmin.xlane.f32.xlu0 %v1795
    %v1797 = vpop.xlane.xlu0 %1796
    %v1798 = vsel %vm232, %v1298, inf
    %1799 = vmin.xlane.f32.xlu0 %v1798
    %v1800 = vpop.xlane.xlu0 %1799
    %v1801 = vsel %vm232, %v1303, inf
    %1802 = vmin.xlane.f32.xlu0 %v1801
    %v1803 = vpop.xlane.xlu0 %1802
    %v1804 = vsel %vm232, %v1308, inf
    %1805 = vmin.xlane.f32.xlu0 %v1804
    %v1806 = vpop.xlane.xlu0 %1805
    %v1807 = vadd.f32 %v1761, 0.0
    %v1808 = vadd.f32 %v1764, 0.0
    %v1809 = vadd.f32 %v1767, 0.0
    %v1810 = vadd.f32 %v1770, 0.0
    %v1811 = vadd.f32 %v1773, 0.0
    %v1812 = vadd.f32 %v1776, 0.0
    %v1813 = vadd.f32 %v1779, 0.0
    %v1814 = vadd.f32 %v1782, 0.0
    %v1815 = vadd.f32 %v1785, 0.0
    %v1816 = vadd.f32 %v1788, 0.0
    %v1817 = vadd.f32 %v1791, 0.0
    %v1818 = vadd.f32 %v1794, 0.0
    %v1819 = vadd.f32 %v1797, 0.0
    %v1820 = vadd.f32 %v1800, 0.0
    %v1821 = vadd.f32 %v1803, 0.0
    %v1822 = vadd.f32 %v1806, 0.0
    %vm1823 = vcmp.eq.f32.partialorder %v1233, %v1761
    %vm1824 = vcmp.eq.f32.partialorder %v1238, %v1764
    %vm1825 = vcmp.eq.f32.partialorder %v1243, %v1767
    %vm1826 = vcmp.eq.f32.partialorder %v1248, %v1770
    %vm1827 = vcmp.eq.f32.partialorder %v1253, %v1773
    %vm1828 = vcmp.eq.f32.partialorder %v1258, %v1776
    %vm1829 = vcmp.eq.f32.partialorder %v1263, %v1779
    %vm1830 = vcmp.eq.f32.partialorder %v1268, %v1782
    %vm1831 = vcmp.eq.f32.partialorder %v1273, %v1785
    %vm1832 = vcmp.eq.f32.partialorder %v1278, %v1788
    %vm1833 = vcmp.eq.f32.partialorder %v1283, %v1791
    %vm1834 = vcmp.eq.f32.partialorder %v1288, %v1794
    %vm1835 = vcmp.eq.f32.partialorder %v1293, %v1797
    %vm1836 = vcmp.eq.f32.partialorder %v1298, %v1800
    %vm1837 = vcmp.eq.f32.partialorder %v1303, %v1803
    %vm1838 = vcmp.eq.f32.partialorder %v1308, %v1806
    %v1839 = vsel %vm1823, %v33, 64
    %v1840 = vsel %vm1824, %v33, 64
    %v1841 = vsel %vm1825, %v33, 64
    %v1842 = vsel %vm1826, %v33, 64
    %v1843 = vsel %vm1827, %v33, 64
    %v1844 = vsel %vm1828, %v33, 64
    %v1845 = vsel %vm1829, %v33, 64
    %v1846 = vsel %vm1830, %v33, 64
    %v1847 = vsel %vm1831, %v33, 64
    %v1848 = vsel %vm1832, %v33, 64
    %v1849 = vsel %vm1833, %v33, 64
    %v1850 = vsel %vm1834, %v33, 64
    %v1851 = vsel %vm1835, %v33, 64
    %v1852 = vsel %vm1836, %v33, 64
    %v1853 = vsel %vm1837, %v33, 64
    %v1854 = vsel %vm1838, %v33, 64
    %v1855 = vsel %vm232, %v1839, 2147483647
    %v1856 = vand.u32 %v1855, 65535
    %v1857 = vshra.s32 %v1855, 16
    %v1858 = vcvt.s32.f32 %v1856
    %v1859 = vcvt.s32.f32 %v1857
    %1860 = vmin.xlane.f32.xlu0 %v1859
    %v1861 = vpop.xlane.xlu0 %1860
    %vm1862 = vcmp.eq.f32.partialorder %v1859, %v1861
    %v1863 = vsel %vm1862, %v1858, inf
    %1864 = vmin.xlane.f32.xlu0 %v1863
    %v1865 = vpop.xlane.xlu0 %1864
    %v1866 = vcvt.f32.s32 %v1865
    %v1867 = vcvt.f32.s32 %v1861
    %v1868 = vshll.u32 %v1867, 16
    %v1869 = vadd.s32 %v1868, %v1866
    %v1870 = vsel %vm232, %v1840, 2147483647
    %v1871 = vand.u32 %v1870, 65535
    %v1872 = vshra.s32 %v1870, 16
    %v1873 = vcvt.s32.f32 %v1871
    %v1874 = vcvt.s32.f32 %v1872
    %1875 = vmin.xlane.f32.xlu0 %v1874
    %v1876 = vpop.xlane.xlu0 %1875
    %vm1877 = vcmp.eq.f32.partialorder %v1874, %v1876
    %v1878 = vsel %vm1877, %v1873, inf
    %1879 = vmin.xlane.f32.xlu0 %v1878
    %v1880 = vpop.xlane.xlu0 %1879
    %v1881 = vcvt.f32.s32 %v1880
    %v1882 = vcvt.f32.s32 %v1876
    %v1883 = vshll.u32 %v1882, 16
    %v1884 = vadd.s32 %v1883, %v1881
    %v1885 = vsel %vm232, %v1841, 2147483647
    %v1886 = vand.u32 %v1885, 65535
    %v1887 = vshra.s32 %v1885, 16
    %v1888 = vcvt.s32.f32 %v1886
    %v1889 = vcvt.s32.f32 %v1887
    %1890 = vmin.xlane.f32.xlu0 %v1889
    %v1891 = vpop.xlane.xlu0 %1890
    %vm1892 = vcmp.eq.f32.partialorder %v1889, %v1891
    %v1893 = vsel %vm1892, %v1888, inf
    %1894 = vmin.xlane.f32.xlu0 %v1893
    %v1895 = vpop.xlane.xlu0 %1894
    %v1896 = vcvt.f32.s32 %v1895
    %v1897 = vcvt.f32.s32 %v1891
    %v1898 = vshll.u32 %v1897, 16
    %v1899 = vadd.s32 %v1898, %v1896
    %v1900 = vsel %vm232, %v1842, 2147483647
    %v1901 = vand.u32 %v1900, 65535
    %v1902 = vshra.s32 %v1900, 16
    %v1903 = vcvt.s32.f32 %v1901
    %v1904 = vcvt.s32.f32 %v1902
    %1905 = vmin.xlane.f32.xlu0 %v1904
    %v1906 = vpop.xlane.xlu0 %1905
    %vm1907 = vcmp.eq.f32.partialorder %v1904, %v1906
    %v1908 = vsel %vm1907, %v1903, inf
    %1909 = vmin.xlane.f32.xlu0 %v1908
    %v1910 = vpop.xlane.xlu0 %1909
    %v1911 = vcvt.f32.s32 %v1910
    %v1912 = vcvt.f32.s32 %v1906
    %v1913 = vshll.u32 %v1912, 16
    %v1914 = vadd.s32 %v1913, %v1911
    %v1915 = vsel %vm232, %v1843, 2147483647
    %v1916 = vand.u32 %v1915, 65535
    %v1917 = vshra.s32 %v1915, 16
    %v1918 = vcvt.s32.f32 %v1916
    %v1919 = vcvt.s32.f32 %v1917
    %1920 = vmin.xlane.f32.xlu0 %v1919
    %v1921 = vpop.xlane.xlu0 %1920
    %vm1922 = vcmp.eq.f32.partialorder %v1919, %v1921
    %v1923 = vsel %vm1922, %v1918, inf
    %1924 = vmin.xlane.f32.xlu0 %v1923
    %v1925 = vpop.xlane.xlu0 %1924
    %v1926 = vcvt.f32.s32 %v1925
    %v1927 = vcvt.f32.s32 %v1921
    %v1928 = vshll.u32 %v1927, 16
    %v1929 = vadd.s32 %v1928, %v1926
    %v1930 = vsel %vm232, %v1844, 2147483647
    %v1931 = vand.u32 %v1930, 65535
    %v1932 = vshra.s32 %v1930, 16
    %v1933 = vcvt.s32.f32 %v1931
    %v1934 = vcvt.s32.f32 %v1932
    %1935 = vmin.xlane.f32.xlu0 %v1934
    %v1936 = vpop.xlane.xlu0 %1935
    %vm1937 = vcmp.eq.f32.partialorder %v1934, %v1936
    %v1938 = vsel %vm1937, %v1933, inf
    %1939 = vmin.xlane.f32.xlu0 %v1938
    %v1940 = vpop.xlane.xlu0 %1939
    %v1941 = vcvt.f32.s32 %v1940
    %v1942 = vcvt.f32.s32 %v1936
    %v1943 = vshll.u32 %v1942, 16
    %v1944 = vadd.s32 %v1943, %v1941
    %v1945 = vsel %vm232, %v1845, 2147483647
    %v1946 = vand.u32 %v1945, 65535
    %v1947 = vshra.s32 %v1945, 16
    %v1948 = vcvt.s32.f32 %v1946
    %v1949 = vcvt.s32.f32 %v1947
    %1950 = vmin.xlane.f32.xlu0 %v1949
    %v1951 = vpop.xlane.xlu0 %1950
    %vm1952 = vcmp.eq.f32.partialorder %v1949, %v1951
    %v1953 = vsel %vm1952, %v1948, inf
    %1954 = vmin.xlane.f32.xlu0 %v1953
    %v1955 = vpop.xlane.xlu0 %1954
    %v1956 = vcvt.f32.s32 %v1955
    %v1957 = vcvt.f32.s32 %v1951
    %v1958 = vshll.u32 %v1957, 16
    %v1959 = vadd.s32 %v1958, %v1956
    %v1960 = vsel %vm232, %v1846, 2147483647
    %v1961 = vand.u32 %v1960, 65535
    %v1962 = vshra.s32 %v1960, 16
    %v1963 = vcvt.s32.f32 %v1961
    %v1964 = vcvt.s32.f32 %v1962
    %1965 = vmin.xlane.f32.xlu0 %v1964
    %v1966 = vpop.xlane.xlu0 %1965
    %vm1967 = vcmp.eq.f32.partialorder %v1964, %v1966
    %v1968 = vsel %vm1967, %v1963, inf
    %1969 = vmin.xlane.f32.xlu0 %v1968
    %v1970 = vpop.xlane.xlu0 %1969
    %v1971 = vcvt.f32.s32 %v1970
    %v1972 = vcvt.f32.s32 %v1966
    %v1973 = vshll.u32 %v1972, 16
    %v1974 = vadd.s32 %v1973, %v1971
    %v1975 = vsel %vm232, %v1847, 2147483647
    %v1976 = vand.u32 %v1975, 65535
    %v1977 = vshra.s32 %v1975, 16
    %v1978 = vcvt.s32.f32 %v1976
    %v1979 = vcvt.s32.f32 %v1977
    %1980 = vmin.xlane.f32.xlu0 %v1979
    %v1981 = vpop.xlane.xlu0 %1980
    %vm1982 = vcmp.eq.f32.partialorder %v1979, %v1981
    %v1983 = vsel %vm1982, %v1978, inf
    %1984 = vmin.xlane.f32.xlu0 %v1983
    %v1985 = vpop.xlane.xlu0 %1984
    %v1986 = vcvt.f32.s32 %v1985
    %v1987 = vcvt.f32.s32 %v1981
    %v1988 = vshll.u32 %v1987, 16
    %v1989 = vadd.s32 %v1988, %v1986
    %v1990 = vsel %vm232, %v1848, 2147483647
    %v1991 = vand.u32 %v1990, 65535
    %v1992 = vshra.s32 %v1990, 16
    %v1993 = vcvt.s32.f32 %v1991
    %v1994 = vcvt.s32.f32 %v1992
    %1995 = vmin.xlane.f32.xlu0 %v1994
    %v1996 = vpop.xlane.xlu0 %1995
    %vm1997 = vcmp.eq.f32.partialorder %v1994, %v1996
    %v1998 = vsel %vm1997, %v1993, inf
    %1999 = vmin.xlane.f32.xlu0 %v1998
    %v2000 = vpop.xlane.xlu0 %1999
    %v2001 = vcvt.f32.s32 %v2000
    %v2002 = vcvt.f32.s32 %v1996
    %v2003 = vshll.u32 %v2002, 16
    %v2004 = vadd.s32 %v2003, %v2001
    %v2005 = vsel %vm232, %v1849, 2147483647
    %v2006 = vand.u32 %v2005, 65535
    %v2007 = vshra.s32 %v2005, 16
    %v2008 = vcvt.s32.f32 %v2006
    %v2009 = vcvt.s32.f32 %v2007
    %2010 = vmin.xlane.f32.xlu0 %v2009
    %v2011 = vpop.xlane.xlu0 %2010
    %vm2012 = vcmp.eq.f32.partialorder %v2009, %v2011
    %v2013 = vsel %vm2012, %v2008, inf
    %2014 = vmin.xlane.f32.xlu0 %v2013
    %v2015 = vpop.xlane.xlu0 %2014
    %v2016 = vcvt.f32.s32 %v2015
    %v2017 = vcvt.f32.s32 %v2011
    %v2018 = vshll.u32 %v2017, 16
    %v2019 = vadd.s32 %v2018, %v2016
    %v2020 = vsel %vm232, %v1850, 2147483647
    %v2021 = vand.u32 %v2020, 65535
    %v2022 = vshra.s32 %v2020, 16
    %v2023 = vcvt.s32.f32 %v2021
    %v2024 = vcvt.s32.f32 %v2022
    %2025 = vmin.xlane.f32.xlu0 %v2024
    %v2026 = vpop.xlane.xlu0 %2025
    %vm2027 = vcmp.eq.f32.partialorder %v2024, %v2026
    %v2028 = vsel %vm2027, %v2023, inf
    %2029 = vmin.xlane.f32.xlu0 %v2028
    %v2030 = vpop.xlane.xlu0 %2029
    %v2031 = vcvt.f32.s32 %v2030
    %v2032 = vcvt.f32.s32 %v2026
    %v2033 = vshll.u32 %v2032, 16
    %v2034 = vadd.s32 %v2033, %v2031
    %v2035 = vsel %vm232, %v1851, 2147483647
    %v2036 = vand.u32 %v2035, 65535
    %v2037 = vshra.s32 %v2035, 16
    %v2038 = vcvt.s32.f32 %v2036
    %v2039 = vcvt.s32.f32 %v2037
    %2040 = vmin.xlane.f32.xlu0 %v2039
    %v2041 = vpop.xlane.xlu0 %2040
    %vm2042 = vcmp.eq.f32.partialorder %v2039, %v2041
    %v2043 = vsel %vm2042, %v2038, inf
    %2044 = vmin.xlane.f32.xlu0 %v2043
    %v2045 = vpop.xlane.xlu0 %2044
    %v2046 = vcvt.f32.s32 %v2045
    %v2047 = vcvt.f32.s32 %v2041
    %v2048 = vshll.u32 %v2047, 16
    %v2049 = vadd.s32 %v2048, %v2046
    %v2050 = vsel %vm232, %v1852, 2147483647
    %v2051 = vand.u32 %v2050, 65535
    %v2052 = vshra.s32 %v2050, 16
    %v2053 = vcvt.s32.f32 %v2051
    %v2054 = vcvt.s32.f32 %v2052
    %2055 = vmin.xlane.f32.xlu0 %v2054
    %v2056 = vpop.xlane.xlu0 %2055
    %vm2057 = vcmp.eq.f32.partialorder %v2054, %v2056
    %v2058 = vsel %vm2057, %v2053, inf
    %2059 = vmin.xlane.f32.xlu0 %v2058
    %v2060 = vpop.xlane.xlu0 %2059
    %v2061 = vcvt.f32.s32 %v2060
    %v2062 = vcvt.f32.s32 %v2056
    %v2063 = vshll.u32 %v2062, 16
    %v2064 = vadd.s32 %v2063, %v2061
    %v2065 = vsel %vm232, %v1853, 2147483647
    %v2066 = vand.u32 %v2065, 65535
    %v2067 = vshra.s32 %v2065, 16
    %v2068 = vcvt.s32.f32 %v2066
    %v2069 = vcvt.s32.f32 %v2067
    %2070 = vmin.xlane.f32.xlu0 %v2069
    %v2071 = vpop.xlane.xlu0 %2070
    %vm2072 = vcmp.eq.f32.partialorder %v2069, %v2071
    %v2073 = vsel %vm2072, %v2068, inf
    %2074 = vmin.xlane.f32.xlu0 %v2073
    %v2075 = vpop.xlane.xlu0 %2074
    %v2076 = vcvt.f32.s32 %v2075
    %v2077 = vcvt.f32.s32 %v2071
    %v2078 = vshll.u32 %v2077, 16
    %v2079 = vadd.s32 %v2078, %v2076
    %v2080 = vsel %vm232, %v1854, 2147483647
    %v2081 = vand.u32 %v2080, 65535
    %v2082 = vshra.s32 %v2080, 16
    %v2083 = vcvt.s32.f32 %v2081
    %v2084 = vcvt.s32.f32 %v2082
    %2085 = vmin.xlane.f32.xlu0 %v2084
    %v2086 = vpop.xlane.xlu0 %2085
    %vm2087 = vcmp.eq.f32.partialorder %v2084, %v2086
    %v2088 = vsel %vm2087, %v2083, inf
    %2089 = vmin.xlane.f32.xlu0 %v2088
    %v2090 = vpop.xlane.xlu0 %2089
    %v2091 = vcvt.f32.s32 %v2090
    %v2092 = vcvt.f32.s32 %v2086
    %v2093 = vshll.u32 %v2092, 16
    %v2094 = vadd.s32 %v2093, %v2091
    %vm2095 = vcmp.eq.s32.totalorder %v33, %v1869
    %vm2096 = vcmp.eq.s32.totalorder %v33, %v1884
    %vm2097 = vcmp.eq.s32.totalorder %v33, %v1899
    %vm2098 = vcmp.eq.s32.totalorder %v33, %v1914
    %vm2099 = vcmp.eq.s32.totalorder %v33, %v1929
    %vm2100 = vcmp.eq.s32.totalorder %v33, %v1944
    %vm2101 = vcmp.eq.s32.totalorder %v33, %v1959
    %vm2102 = vcmp.eq.s32.totalorder %v33, %v1974
    %vm2103 = vcmp.eq.s32.totalorder %v33, %v1989
    %vm2104 = vcmp.eq.s32.totalorder %v33, %v2004
    %vm2105 = vcmp.eq.s32.totalorder %v33, %v2019
    %vm2106 = vcmp.eq.s32.totalorder %v33, %v2034
    %vm2107 = vcmp.eq.s32.totalorder %v33, %v2049
    %vm2108 = vcmp.eq.s32.totalorder %v33, %v2064
    %vm2109 = vcmp.eq.s32.totalorder %v33, %v2079
    %vm2110 = vcmp.eq.s32.totalorder %v33, %v2094
    %v2111 = vsel %vm2095, inf, %v1233
    %v2112 = vsel %vm2096, inf, %v1238
    %v2113 = vsel %vm2097, inf, %v1243
    %v2114 = vsel %vm2098, inf, %v1248
    %v2115 = vsel %vm2099, inf, %v1253
    %v2116 = vsel %vm2100, inf, %v1258
    %v2117 = vsel %vm2101, inf, %v1263
    %v2118 = vsel %vm2102, inf, %v1268
    %v2119 = vsel %vm2103, inf, %v1273
    %v2120 = vsel %vm2104, inf, %v1278
    %v2121 = vsel %vm2105, inf, %v1283
    %v2122 = vsel %vm2106, inf, %v1288
    %v2123 = vsel %vm2107, inf, %v1293
    %v2124 = vsel %vm2108, inf, %v1298
    %v2125 = vsel %vm2109, inf, %v1303
    %v2126 = vsel %vm2110, inf, %v1308
    %v2127 = vsel %vm232, %v2111, inf
    %2128 = vmin.xlane.f32.xlu0 %v2127
    %v2129 = vpop.xlane.xlu0 %2128
    %v2130 = vsel %vm232, %v2112, inf
    %2131 = vmin.xlane.f32.xlu0 %v2130
    %v2132 = vpop.xlane.xlu0 %2131
    %v2133 = vsel %vm232, %v2113, inf
    %2134 = vmin.xlane.f32.xlu0 %v2133
    %v2135 = vpop.xlane.xlu0 %2134
    %v2136 = vsel %vm232, %v2114, inf
    %2137 = vmin.xlane.f32.xlu0 %v2136
    %v2138 = vpop.xlane.xlu0 %2137
    %v2139 = vsel %vm232, %v2115, inf
    %2140 = vmin.xlane.f32.xlu0 %v2139
    %v2141 = vpop.xlane.xlu0 %2140
    %v2142 = vsel %vm232, %v2116, inf
    %2143 = vmin.xlane.f32.xlu0 %v2142
    %v2144 = vpop.xlane.xlu0 %2143
    %v2145 = vsel %vm232, %v2117, inf
    %2146 = vmin.xlane.f32.xlu0 %v2145
    %v2147 = vpop.xlane.xlu0 %2146
    %v2148 = vsel %vm232, %v2118, inf
    %2149 = vmin.xlane.f32.xlu0 %v2148
    %v2150 = vpop.xlane.xlu0 %2149
    %v2151 = vsel %vm232, %v2119, inf
    %2152 = vmin.xlane.f32.xlu0 %v2151
    %v2153 = vpop.xlane.xlu0 %2152
    %v2154 = vsel %vm232, %v2120, inf
    %2155 = vmin.xlane.f32.xlu0 %v2154
    %v2156 = vpop.xlane.xlu0 %2155
    %v2157 = vsel %vm232, %v2121, inf
    %2158 = vmin.xlane.f32.xlu0 %v2157
    %v2159 = vpop.xlane.xlu0 %2158
    %v2160 = vsel %vm232, %v2122, inf
    %2161 = vmin.xlane.f32.xlu0 %v2160
    %v2162 = vpop.xlane.xlu0 %2161
    %v2163 = vsel %vm232, %v2123, inf
    %2164 = vmin.xlane.f32.xlu0 %v2163
    %v2165 = vpop.xlane.xlu0 %2164
    %v2166 = vsel %vm232, %v2124, inf
    %2167 = vmin.xlane.f32.xlu0 %v2166
    %v2168 = vpop.xlane.xlu0 %2167
    %v2169 = vsel %vm232, %v2125, inf
    %2170 = vmin.xlane.f32.xlu0 %v2169
    %v2171 = vpop.xlane.xlu0 %2170
    %v2172 = vsel %vm232, %v2126, inf
    %2173 = vmin.xlane.f32.xlu0 %v2172
    %v2174 = vpop.xlane.xlu0 %2173
    %v2175 = vadd.f32 %v1807, %v2129
    %v2176 = vadd.f32 %v1808, %v2132
    %v2177 = vadd.f32 %v1809, %v2135
    %v2178 = vadd.f32 %v1810, %v2138
    %v2179 = vadd.f32 %v1811, %v2141
    %v2180 = vadd.f32 %v1812, %v2144
    %v2181 = vadd.f32 %v1813, %v2147
    %v2182 = vadd.f32 %v1814, %v2150
    %v2183 = vadd.f32 %v1815, %v2153
    %v2184 = vadd.f32 %v1816, %v2156
    %v2185 = vadd.f32 %v1817, %v2159
    %v2186 = vadd.f32 %v1818, %v2162
    %v2187 = vadd.f32 %v1819, %v2165
    %v2188 = vadd.f32 %v1820, %v2168
    %v2189 = vadd.f32 %v1821, %v2171
    %v2190 = vadd.f32 %v1822, %v2174
    %v2191 = vmul.f32 %v2175, 0.5
    %v2192 = vmul.f32 %v2176, 0.5
    %v2193 = vmul.f32 %v2177, 0.5
    %v2194 = vmul.f32 %v2178, 0.5
    %v2195 = vmul.f32 %v2179, 0.5
    %v2196 = vmul.f32 %v2180, 0.5
    %v2197 = vmul.f32 %v2181, 0.5
    %v2198 = vmul.f32 %v2182, 0.5
    %v2199 = vmul.f32 %v2183, 0.5
    %v2200 = vmul.f32 %v2184, 0.5
    %v2201 = vmul.f32 %v2185, 0.5
    %v2202 = vmul.f32 %v2186, 0.5
    %v2203 = vmul.f32 %v2187, 0.5
    %v2204 = vmul.f32 %v2188, 0.5
    %v2205 = vmul.f32 %v2189, 0.5
    %v2206 = vmul.f32 %v2190, 0.5
    %v2207 = vadd.f32 %v1743, %v2191
    %v2208 = vadd.f32 %v1744, %v2192
    %v2209 = vadd.f32 %v1745, %v2193
    %v2210 = vadd.f32 %v1746, %v2194
    %v2211 = vadd.f32 %v1747, %v2195
    %v2212 = vadd.f32 %v1748, %v2196
    %v2213 = vadd.f32 %v1749, %v2197
    %v2214 = vadd.f32 %v1750, %v2198
    %v2215 = vadd.f32 %v1751, %v2199
    %v2216 = vadd.f32 %v1752, %v2200
    %v2217 = vadd.f32 %v1753, %v2201
    %v2218 = vadd.f32 %v1754, %v2202
    %v2219 = vadd.f32 %v1755, %v2203
    %v2220 = vadd.f32 %v1756, %v2204
    %v2221 = vadd.f32 %v1757, %v2205
    %v2222 = vadd.f32 %v1758, %v2206
    %v2223 = vmul.f32 %v2207, 0.5
    %v2224 = vmul.f32 %v2208, 0.5
    %v2225 = vmul.f32 %v2209, 0.5
    %v2226 = vmul.f32 %v2210, 0.5
    %v2227 = vmul.f32 %v2211, 0.5
    %v2228 = vmul.f32 %v2212, 0.5
    %v2229 = vmul.f32 %v2213, 0.5
    %v2230 = vmul.f32 %v2214, 0.5
    %v2231 = vmul.f32 %v2215, 0.5
    %v2232 = vmul.f32 %v2216, 0.5
    %v2233 = vmul.f32 %v2217, 0.5
    %v2234 = vmul.f32 %v2218, 0.5
    %v2235 = vmul.f32 %v2219, 0.5
    %v2236 = vmul.f32 %v2220, 0.5
    %v2237 = vmul.f32 %v2221, 0.5
    %v2238 = vmul.f32 %v2222, 0.5
    %s2239 = scalar_lea.vmem %s0, 64
    %v2240 = vld [vmem:[%s2239] sm:$0xff]
    %v2241 = vld [vmem:[%s2239 + $0x8] sm:$0xff]
    %v2242 = vld [vmem:[%s2239 + $0x10] sm:$0xff]
    %v2243 = vld [vmem:[%s2239 + $0x18] sm:$0xff]
    %2244 = vmatprep.subr.mxu0 0.0
    %2245 = vmatpush1.msra.mxu0 %v2240
    %2246 = vmatprep.subr.mxu0 0.0
    %2247 = vmatpush1.msra.mxu0 %v2241
    %2248 = vmatprep.subr.mxu0 0.0
    %2249 = vmatpush1.msra.mxu0 %v2242
    %2250 = vmatprep.subr.mxu0 0.0
    %2251 = vmatpush1.msra.mxu0 %v2243
    %2252 = vmatprep.subr.mxu0 0.0
    %2253 = vmatpush1.msra.mxu0 0.0
    %2254 = vmatprep.subr.mxu0 0.0
    %2255 = vmatpush1.msra.mxu0 0.0
    %2256 = vmatprep.subr.mxu0 0.0
    %2257 = vmatpush1.msra.mxu0 0.0
    %2258 = vmatprep.subr.mxu0 0.0
    %2259 = vmatpush1.msra.mxu0 0.0
    %2260 = vmatprep.subr.mxu0 0.0
    %2261 = vmatpush1.msra.mxu0 0.0
    %2262 = vmatprep.subr.mxu0 0.0
    %2263 = vmatpush1.msra.mxu0 0.0
    %2264 = vmatprep.subr.mxu0 0.0
    %2265 = vmatpush1.msra.mxu0 0.0
    %2266 = vmatprep.subr.mxu0 0.0
    %2267 = vmatpush1.msra.mxu0 0.0
    %2268 = vmatprep.subr.mxu0 0.0
    %2269 = vmatpush1.msra.mxu0 0.0
    %2270 = vmatprep.subr.mxu0 0.0
    %2271 = vmatpush1.msra.mxu0 0.0
    %2272 = vmatprep.subr.mxu0 0.0
    %2273 = vmatpush1.msra.mxu0 0.0
    %2274 = vmatprep.subr.mxu0 0.0
    %2275 = vmatpush1.msra.mxu0 0.0
    %2276 = vmatprep.subr.mxu0 0.0
    %2277 = vmatpush1.msra.mxu0 0.0
    %2278 = vmatprep.subr.mxu0 0.0
    %2279 = vmatpush1.msra.mxu0 0.0
    %2280 = vmatprep.subr.mxu0 0.0
    %2281 = vmatpush1.msra.mxu0 0.0
    %2282 = vmatprep.subr.mxu0 0.0
    %2283 = vmatpush1.msra.mxu0 0.0
    %2284 = vmatprep.subr.mxu0 0.0
    %2285 = vmatpush1.msra.mxu0 0.0
    %2286 = vmatprep.subr.mxu0 0.0
    %2287 = vmatpush1.msra.mxu0 0.0
    %2288 = vmatprep.subr.mxu0 0.0
    %2289 = vmatpush1.msra.mxu0 0.0
    %2290 = vmatprep.subr.mxu0 0.0
    %2291 = vmatpush1.msra.mxu0 0.0
    %2292 = vmatprep.subr.mxu0 0.0
    %2293 = vmatpush1.msra.mxu0 0.0
    %2294 = vmatprep.subr.mxu0 0.0
    %2295 = vmatpush1.msra.mxu0 0.0
    %2296 = vmatprep.subr.mxu0 0.0
    %2297 = vmatpush1.msra.mxu0 0.0
    %2298 = vmatprep.subr.mxu0 0.0
    %2299 = vmatpush1.msra.mxu0 0.0
    %2300 = vmatprep.subr.mxu0 0.0
    %2301 = vmatpush1.msra.mxu0 0.0
    %2302 = vmatprep.subr.mxu0 0.0
    %2303 = vmatpush1.msra.mxu0 0.0
    %2304 = vmatprep.subr.mxu0 0.0
    %2305 = vmatpush1.msra.mxu0 0.0
    %2306 = vmatprep.subr.mxu0 0.0
    %2307 = vmatpush1.msra.mxu0 0.0
    %2308 = vmatprep.mubr.f32.mxu0 0.0
    %2309 = vmatmul.mubr.f32.gmra.mrb[0].mxu0 %v40
    %v2310 = vpop.f32.mrb[0].mxu0
    %v2311 = vadd.f32 0.0, %v2310
    %v2312 = vpop.f32.mrb[0].mxu0
    %2313 = vmatprep.mubr.f32.mxu0 0.0
    %2314 = vmatmul.mubr.f32.gmra.mrb[0].mxu0 %v43
    %v2315 = vpop.f32.mrb[0].mxu0
    %v2316 = vadd.f32 0.0, %v2315
    %v2317 = vpop.f32.mrb[0].mxu0
    %2318 = vmatprep.mubr.f32.mxu0 0.0
    %2319 = vmatmul.mubr.f32.gmra.mrb[0].mxu0 %v46
    %v2320 = vpop.f32.mrb[0].mxu0
    %v2321 = vadd.f32 0.0, %v2320
    %v2322 = vpop.f32.mrb[0].mxu0
    %2323 = vmatprep.mubr.f32.mxu0 0.0
    %2324 = vmatmul.mubr.f32.gmra.mrb[0].mxu0 %v49
    %v2325 = vpop.f32.mrb[0].mxu0
    %v2326 = vadd.f32 0.0, %v2325
    %v2327 = vpop.f32.mrb[0].mxu0
    %2328 = vmatprep.mubr.f32.mxu0 0.0
    %2329 = vmatmul.mubr.f32.gmra.mrb[0].mxu0 %v52
    %v2330 = vpop.f32.mrb[0].mxu0
    %v2331 = vadd.f32 0.0, %v2330
    %v2332 = vpop.f32.mrb[0].mxu0
    %2333 = vmatprep.mubr.f32.mxu0 0.0
    %2334 = vmatmul.mubr.f32.gmra.mrb[0].mxu0 %v55
    %v2335 = vpop.f32.mrb[0].mxu0
    %v2336 = vadd.f32 0.0, %v2335
    %v2337 = vpop.f32.mrb[0].mxu0
    %2338 = vmatprep.mubr.f32.mxu0 0.0
    %2339 = vmatmul.mubr.f32.gmra.mrb[0].mxu0 %v58
    %v2340 = vpop.f32.mrb[0].mxu0
    %v2341 = vadd.f32 0.0, %v2340
    %v2342 = vpop.f32.mrb[0].mxu0
    %2343 = vmatprep.mubr.f32.mxu0 0.0
    %2344 = vmatmul.mubr.f32.gmra.mrb[0].mxu0 %v61
    %v2345 = vpop.f32.mrb[0].mxu0
    %v2346 = vadd.f32 0.0, %v2345
    %v2347 = vpop.f32.mrb[0].mxu0
    %2348 = vmatprep.mubr.f32.mxu0 0.0
    %2349 = vmatmul.mubr.f32.gmra.mrb[0].mxu0 %v64
    %v2350 = vpop.f32.mrb[0].mxu0
    %v2351 = vadd.f32 0.0, %v2350
    %v2352 = vpop.f32.mrb[0].mxu0
    %2353 = vmatprep.mubr.f32.mxu0 0.0
    %2354 = vmatmul.mubr.f32.gmra.mrb[0].mxu0 %v67
    %v2355 = vpop.f32.mrb[0].mxu0
    %v2356 = vadd.f32 0.0, %v2355
    %v2357 = vpop.f32.mrb[0].mxu0
    %2358 = vmatprep.mubr.f32.mxu0 0.0
    %2359 = vmatmul.mubr.f32.gmra.mrb[0].mxu0 %v70
    %v2360 = vpop.f32.mrb[0].mxu0
    %v2361 = vadd.f32 0.0, %v2360
    %v2362 = vpop.f32.mrb[0].mxu0
    %2363 = vmatprep.mubr.f32.mxu0 0.0
    %2364 = vmatmul.mubr.f32.gmra.mrb[0].mxu0 %v73
    %v2365 = vpop.f32.mrb[0].mxu0
    %v2366 = vadd.f32 0.0, %v2365
    %v2367 = vpop.f32.mrb[0].mxu0
    %2368 = vmatprep.mubr.f32.mxu0 0.0
    %2369 = vmatmul.mubr.f32.gmra.mrb[0].mxu0 %v76
    %v2370 = vpop.f32.mrb[0].mxu0
    %v2371 = vadd.f32 0.0, %v2370
    %v2372 = vpop.f32.mrb[0].mxu0
    %2373 = vmatprep.mubr.f32.mxu0 0.0
    %2374 = vmatmul.mubr.f32.gmra.mrb[0].mxu0 %v79
    %v2375 = vpop.f32.mrb[0].mxu0
    %v2376 = vadd.f32 0.0, %v2375
    %v2377 = vpop.f32.mrb[0].mxu0
    %2378 = vmatprep.mubr.f32.mxu0 0.0
    %2379 = vmatmul.mubr.f32.gmra.mrb[0].mxu0 %v82
    %v2380 = vpop.f32.mrb[0].mxu0
    %v2381 = vadd.f32 0.0, %v2380
    %v2382 = vpop.f32.mrb[0].mxu0
    %2383 = vmatprep.mubr.f32.mxu0 0.0
    %2384 = vmatmul.mubr.f32.gmra.mrb[0].mxu0 %v85
    %v2385 = vpop.f32.mrb[0].mxu0
    %v2386 = vadd.f32 0.0, %v2385
    %v2387 = vpop.f32.mrb[0].mxu0
    %2388 = vdwg.mxu0
    %v2389 = vsel %vm232, %v2311, -inf
    %2390 = vmax.xlane.f32.xlu0 %v2389
    %v2391 = vpop.xlane.xlu0 %2390
    %v2392 = vsel %vm232, %v2316, -inf
    %2393 = vmax.xlane.f32.xlu0 %v2392
    %v2394 = vpop.xlane.xlu0 %2393
    %v2395 = vsel %vm232, %v2321, -inf
    %2396 = vmax.xlane.f32.xlu0 %v2395
    %v2397 = vpop.xlane.xlu0 %2396
    %v2398 = vsel %vm232, %v2326, -inf
    %2399 = vmax.xlane.f32.xlu0 %v2398
    %v2400 = vpop.xlane.xlu0 %2399
    %v2401 = vsel %vm232, %v2331, -inf
    %2402 = vmax.xlane.f32.xlu0 %v2401
    %v2403 = vpop.xlane.xlu0 %2402
    %v2404 = vsel %vm232, %v2336, -inf
    %2405 = vmax.xlane.f32.xlu0 %v2404
    %v2406 = vpop.xlane.xlu0 %2405
    %v2407 = vsel %vm232, %v2341, -inf
    %2408 = vmax.xlane.f32.xlu0 %v2407
    %v2409 = vpop.xlane.xlu0 %2408
    %v2410 = vsel %vm232, %v2346, -inf
    %2411 = vmax.xlane.f32.xlu0 %v2410
    %v2412 = vpop.xlane.xlu0 %2411
    %v2413 = vsel %vm232, %v2351, -inf
    %2414 = vmax.xlane.f32.xlu0 %v2413
    %v2415 = vpop.xlane.xlu0 %2414
    %v2416 = vsel %vm232, %v2356, -inf
    %2417 = vmax.xlane.f32.xlu0 %v2416
    %v2418 = vpop.xlane.xlu0 %2417
    %v2419 = vsel %vm232, %v2361, -inf
    %2420 = vmax.xlane.f32.xlu0 %v2419
    %v2421 = vpop.xlane.xlu0 %2420
    %v2422 = vsel %vm232, %v2366, -inf
    %2423 = vmax.xlane.f32.xlu0 %v2422
    %v2424 = vpop.xlane.xlu0 %2423
    %v2425 = vsel %vm232, %v2371, -inf
    %2426 = vmax.xlane.f32.xlu0 %v2425
    %v2427 = vpop.xlane.xlu0 %2426
    %v2428 = vsel %vm232, %v2376, -inf
    %2429 = vmax.xlane.f32.xlu0 %v2428
    %v2430 = vpop.xlane.xlu0 %2429
    %v2431 = vsel %vm232, %v2381, -inf
    %2432 = vmax.xlane.f32.xlu0 %v2431
    %v2433 = vpop.xlane.xlu0 %2432
    %v2434 = vsel %vm232, %v2386, -inf
    %2435 = vmax.xlane.f32.xlu0 %v2434
    %v2436 = vpop.xlane.xlu0 %2435
    %v2437 = vadd.f32 %v2391, 0.0
    %v2438 = vadd.f32 %v2394, 0.0
    %v2439 = vadd.f32 %v2397, 0.0
    %v2440 = vadd.f32 %v2400, 0.0
    %v2441 = vadd.f32 %v2403, 0.0
    %v2442 = vadd.f32 %v2406, 0.0
    %v2443 = vadd.f32 %v2409, 0.0
    %v2444 = vadd.f32 %v2412, 0.0
    %v2445 = vadd.f32 %v2415, 0.0
    %v2446 = vadd.f32 %v2418, 0.0
    %v2447 = vadd.f32 %v2421, 0.0
    %v2448 = vadd.f32 %v2424, 0.0
    %v2449 = vadd.f32 %v2427, 0.0
    %v2450 = vadd.f32 %v2430, 0.0
    %v2451 = vadd.f32 %v2433, 0.0
    %v2452 = vadd.f32 %v2436, 0.0
    %vm2453 = vcmp.eq.f32.partialorder %v2311, %v2391
    %vm2454 = vcmp.eq.f32.partialorder %v2316, %v2394
    %vm2455 = vcmp.eq.f32.partialorder %v2321, %v2397
    %vm2456 = vcmp.eq.f32.partialorder %v2326, %v2400
    %vm2457 = vcmp.eq.f32.partialorder %v2331, %v2403
    %vm2458 = vcmp.eq.f32.partialorder %v2336, %v2406
    %vm2459 = vcmp.eq.f32.partialorder %v2341, %v2409
    %vm2460 = vcmp.eq.f32.partialorder %v2346, %v2412
    %vm2461 = vcmp.eq.f32.partialorder %v2351, %v2415
    %vm2462 = vcmp.eq.f32.partialorder %v2356, %v2418
    %vm2463 = vcmp.eq.f32.partialorder %v2361, %v2421
    %vm2464 = vcmp.eq.f32.partialorder %v2366, %v2424
    %vm2465 = vcmp.eq.f32.partialorder %v2371, %v2427
    %vm2466 = vcmp.eq.f32.partialorder %v2376, %v2430
    %vm2467 = vcmp.eq.f32.partialorder %v2381, %v2433
    %vm2468 = vcmp.eq.f32.partialorder %v2386, %v2436
    %v2469 = vsel %vm2453, %v33, 64
    %v2470 = vsel %vm2454, %v33, 64
    %v2471 = vsel %vm2455, %v33, 64
    %v2472 = vsel %vm2456, %v33, 64
    %v2473 = vsel %vm2457, %v33, 64
    %v2474 = vsel %vm2458, %v33, 64
    %v2475 = vsel %vm2459, %v33, 64
    %v2476 = vsel %vm2460, %v33, 64
    %v2477 = vsel %vm2461, %v33, 64
    %v2478 = vsel %vm2462, %v33, 64
    %v2479 = vsel %vm2463, %v33, 64
    %v2480 = vsel %vm2464, %v33, 64
    %v2481 = vsel %vm2465, %v33, 64
    %v2482 = vsel %vm2466, %v33, 64
    %v2483 = vsel %vm2467, %v33, 64
    %v2484 = vsel %vm2468, %v33, 64
    %v2485 = vsel %vm232, %v2469, 2147483647
    %v2486 = vand.u32 %v2485, 65535
    %v2487 = vshra.s32 %v2485, 16
    %v2488 = vcvt.s32.f32 %v2486
    %v2489 = vcvt.s32.f32 %v2487
    %2490 = vmin.xlane.f32.xlu0 %v2489
    %v2491 = vpop.xlane.xlu0 %2490
    %vm2492 = vcmp.eq.f32.partialorder %v2489, %v2491
    %v2493 = vsel %vm2492, %v2488, inf
    %2494 = vmin.xlane.f32.xlu0 %v2493
    %v2495 = vpop.xlane.xlu0 %2494
    %v2496 = vcvt.f32.s32 %v2495
    %v2497 = vcvt.f32.s32 %v2491
    %v2498 = vshll.u32 %v2497, 16
    %v2499 = vadd.s32 %v2498, %v2496
    %v2500 = vsel %vm232, %v2470, 2147483647
    %v2501 = vand.u32 %v2500, 65535
    %v2502 = vshra.s32 %v2500, 16
    %v2503 = vcvt.s32.f32 %v2501
    %v2504 = vcvt.s32.f32 %v2502
    %2505 = vmin.xlane.f32.xlu0 %v2504
    %v2506 = vpop.xlane.xlu0 %2505
    %vm2507 = vcmp.eq.f32.partialorder %v2504, %v2506
    %v2508 = vsel %vm2507, %v2503, inf
    %2509 = vmin.xlane.f32.xlu0 %v2508
    %v2510 = vpop.xlane.xlu0 %2509
    %v2511 = vcvt.f32.s32 %v2510
    %v2512 = vcvt.f32.s32 %v2506
    %v2513 = vshll.u32 %v2512, 16
    %v2514 = vadd.s32 %v2513, %v2511
    %v2515 = vsel %vm232, %v2471, 2147483647
    %v2516 = vand.u32 %v2515, 65535
    %v2517 = vshra.s32 %v2515, 16
    %v2518 = vcvt.s32.f32 %v2516
    %v2519 = vcvt.s32.f32 %v2517
    %2520 = vmin.xlane.f32.xlu0 %v2519
    %v2521 = vpop.xlane.xlu0 %2520
    %vm2522 = vcmp.eq.f32.partialorder %v2519, %v2521
    %v2523 = vsel %vm2522, %v2518, inf
    %2524 = vmin.xlane.f32.xlu0 %v2523
    %v2525 = vpop.xlane.xlu0 %2524
    %v2526 = vcvt.f32.s32 %v2525
    %v2527 = vcvt.f32.s32 %v2521
    %v2528 = vshll.u32 %v2527, 16
    %v2529 = vadd.s32 %v2528, %v2526
    %v2530 = vsel %vm232, %v2472, 2147483647
    %v2531 = vand.u32 %v2530, 65535
    %v2532 = vshra.s32 %v2530, 16
    %v2533 = vcvt.s32.f32 %v2531
    %v2534 = vcvt.s32.f32 %v2532
    %2535 = vmin.xlane.f32.xlu0 %v2534
    %v2536 = vpop.xlane.xlu0 %2535
    %vm2537 = vcmp.eq.f32.partialorder %v2534, %v2536
    %v2538 = vsel %vm2537, %v2533, inf
    %2539 = vmin.xlane.f32.xlu0 %v2538
    %v2540 = vpop.xlane.xlu0 %2539
    %v2541 = vcvt.f32.s32 %v2540
    %v2542 = vcvt.f32.s32 %v2536
    %v2543 = vshll.u32 %v2542, 16
    %v2544 = vadd.s32 %v2543, %v2541
    %v2545 = vsel %vm232, %v2473, 2147483647
    %v2546 = vand.u32 %v2545, 65535
    %v2547 = vshra.s32 %v2545, 16
    %v2548 = vcvt.s32.f32 %v2546
    %v2549 = vcvt.s32.f32 %v2547
    %2550 = vmin.xlane.f32.xlu0 %v2549
    %v2551 = vpop.xlane.xlu0 %2550
    %vm2552 = vcmp.eq.f32.partialorder %v2549, %v2551
    %v2553 = vsel %vm2552, %v2548, inf
    %2554 = vmin.xlane.f32.xlu0 %v2553
    %v2555 = vpop.xlane.xlu0 %2554
    %v2556 = vcvt.f32.s32 %v2555
    %v2557 = vcvt.f32.s32 %v2551
    %v2558 = vshll.u32 %v2557, 16
    %v2559 = vadd.s32 %v2558, %v2556
    %v2560 = vsel %vm232, %v2474, 2147483647
    %v2561 = vand.u32 %v2560, 65535
    %v2562 = vshra.s32 %v2560, 16
    %v2563 = vcvt.s32.f32 %v2561
    %v2564 = vcvt.s32.f32 %v2562
    %2565 = vmin.xlane.f32.xlu0 %v2564
    %v2566 = vpop.xlane.xlu0 %2565
    %vm2567 = vcmp.eq.f32.partialorder %v2564, %v2566
    %v2568 = vsel %vm2567, %v2563, inf
    %2569 = vmin.xlane.f32.xlu0 %v2568
    %v2570 = vpop.xlane.xlu0 %2569
    %v2571 = vcvt.f32.s32 %v2570
    %v2572 = vcvt.f32.s32 %v2566
    %v2573 = vshll.u32 %v2572, 16
    %v2574 = vadd.s32 %v2573, %v2571
    %v2575 = vsel %vm232, %v2475, 2147483647
    %v2576 = vand.u32 %v2575, 65535
    %v2577 = vshra.s32 %v2575, 16
    %v2578 = vcvt.s32.f32 %v2576
    %v2579 = vcvt.s32.f32 %v2577
    %2580 = vmin.xlane.f32.xlu0 %v2579
    %v2581 = vpop.xlane.xlu0 %2580
    %vm2582 = vcmp.eq.f32.partialorder %v2579, %v2581
    %v2583 = vsel %vm2582, %v2578, inf
    %2584 = vmin.xlane.f32.xlu0 %v2583
    %v2585 = vpop.xlane.xlu0 %2584
    %v2586 = vcvt.f32.s32 %v2585
    %v2587 = vcvt.f32.s32 %v2581
    %v2588 = vshll.u32 %v2587, 16
    %v2589 = vadd.s32 %v2588, %v2586
    %v2590 = vsel %vm232, %v2476, 2147483647
    %v2591 = vand.u32 %v2590, 65535
    %v2592 = vshra.s32 %v2590, 16
    %v2593 = vcvt.s32.f32 %v2591
    %v2594 = vcvt.s32.f32 %v2592
    %2595 = vmin.xlane.f32.xlu0 %v2594
    %v2596 = vpop.xlane.xlu0 %2595
    %vm2597 = vcmp.eq.f32.partialorder %v2594, %v2596
    %v2598 = vsel %vm2597, %v2593, inf
    %2599 = vmin.xlane.f32.xlu0 %v2598
    %v2600 = vpop.xlane.xlu0 %2599
    %v2601 = vcvt.f32.s32 %v2600
    %v2602 = vcvt.f32.s32 %v2596
    %v2603 = vshll.u32 %v2602, 16
    %v2604 = vadd.s32 %v2603, %v2601
    %v2605 = vsel %vm232, %v2477, 2147483647
    %v2606 = vand.u32 %v2605, 65535
    %v2607 = vshra.s32 %v2605, 16
    %v2608 = vcvt.s32.f32 %v2606
    %v2609 = vcvt.s32.f32 %v2607
    %2610 = vmin.xlane.f32.xlu0 %v2609
    %v2611 = vpop.xlane.xlu0 %2610
    %vm2612 = vcmp.eq.f32.partialorder %v2609, %v2611
    %v2613 = vsel %vm2612, %v2608, inf
    %2614 = vmin.xlane.f32.xlu0 %v2613
    %v2615 = vpop.xlane.xlu0 %2614
    %v2616 = vcvt.f32.s32 %v2615
    %v2617 = vcvt.f32.s32 %v2611
    %v2618 = vshll.u32 %v2617, 16
    %v2619 = vadd.s32 %v2618, %v2616
    %v2620 = vsel %vm232, %v2478, 2147483647
    %v2621 = vand.u32 %v2620, 65535
    %v2622 = vshra.s32 %v2620, 16
    %v2623 = vcvt.s32.f32 %v2621
    %v2624 = vcvt.s32.f32 %v2622
    %2625 = vmin.xlane.f32.xlu0 %v2624
    %v2626 = vpop.xlane.xlu0 %2625
    %vm2627 = vcmp.eq.f32.partialorder %v2624, %v2626
    %v2628 = vsel %vm2627, %v2623, inf
    %2629 = vmin.xlane.f32.xlu0 %v2628
    %v2630 = vpop.xlane.xlu0 %2629
    %v2631 = vcvt.f32.s32 %v2630
    %v2632 = vcvt.f32.s32 %v2626
    %v2633 = vshll.u32 %v2632, 16
    %v2634 = vadd.s32 %v2633, %v2631
    %v2635 = vsel %vm232, %v2479, 2147483647
    %v2636 = vand.u32 %v2635, 65535
    %v2637 = vshra.s32 %v2635, 16
    %v2638 = vcvt.s32.f32 %v2636
    %v2639 = vcvt.s32.f32 %v2637
    %2640 = vmin.xlane.f32.xlu0 %v2639
    %v2641 = vpop.xlane.xlu0 %2640
    %vm2642 = vcmp.eq.f32.partialorder %v2639, %v2641
    %v2643 = vsel %vm2642, %v2638, inf
    %2644 = vmin.xlane.f32.xlu0 %v2643
    %v2645 = vpop.xlane.xlu0 %2644
    %v2646 = vcvt.f32.s32 %v2645
    %v2647 = vcvt.f32.s32 %v2641
    %v2648 = vshll.u32 %v2647, 16
    %v2649 = vadd.s32 %v2648, %v2646
    %v2650 = vsel %vm232, %v2480, 2147483647
    %v2651 = vand.u32 %v2650, 65535
    %v2652 = vshra.s32 %v2650, 16
    %v2653 = vcvt.s32.f32 %v2651
    %v2654 = vcvt.s32.f32 %v2652
    %2655 = vmin.xlane.f32.xlu0 %v2654
    %v2656 = vpop.xlane.xlu0 %2655
    %vm2657 = vcmp.eq.f32.partialorder %v2654, %v2656
    %v2658 = vsel %vm2657, %v2653, inf
    %2659 = vmin.xlane.f32.xlu0 %v2658
    %v2660 = vpop.xlane.xlu0 %2659
    %v2661 = vcvt.f32.s32 %v2660
    %v2662 = vcvt.f32.s32 %v2656
    %v2663 = vshll.u32 %v2662, 16
    %v2664 = vadd.s32 %v2663, %v2661
    %v2665 = vsel %vm232, %v2481, 2147483647
    %v2666 = vand.u32 %v2665, 65535
    %v2667 = vshra.s32 %v2665, 16
    %v2668 = vcvt.s32.f32 %v2666
    %v2669 = vcvt.s32.f32 %v2667
    %2670 = vmin.xlane.f32.xlu0 %v2669
    %v2671 = vpop.xlane.xlu0 %2670
    %vm2672 = vcmp.eq.f32.partialorder %v2669, %v2671
    %v2673 = vsel %vm2672, %v2668, inf
    %2674 = vmin.xlane.f32.xlu0 %v2673
    %v2675 = vpop.xlane.xlu0 %2674
    %v2676 = vcvt.f32.s32 %v2675
    %v2677 = vcvt.f32.s32 %v2671
    %v2678 = vshll.u32 %v2677, 16
    %v2679 = vadd.s32 %v2678, %v2676
    %v2680 = vsel %vm232, %v2482, 2147483647
    %v2681 = vand.u32 %v2680, 65535
    %v2682 = vshra.s32 %v2680, 16
    %v2683 = vcvt.s32.f32 %v2681
    %v2684 = vcvt.s32.f32 %v2682
    %2685 = vmin.xlane.f32.xlu0 %v2684
    %v2686 = vpop.xlane.xlu0 %2685
    %vm2687 = vcmp.eq.f32.partialorder %v2684, %v2686
    %v2688 = vsel %vm2687, %v2683, inf
    %2689 = vmin.xlane.f32.xlu0 %v2688
    %v2690 = vpop.xlane.xlu0 %2689
    %v2691 = vcvt.f32.s32 %v2690
    %v2692 = vcvt.f32.s32 %v2686
    %v2693 = vshll.u32 %v2692, 16
    %v2694 = vadd.s32 %v2693, %v2691
    %v2695 = vsel %vm232, %v2483, 2147483647
    %v2696 = vand.u32 %v2695, 65535
    %v2697 = vshra.s32 %v2695, 16
    %v2698 = vcvt.s32.f32 %v2696
    %v2699 = vcvt.s32.f32 %v2697
    %2700 = vmin.xlane.f32.xlu0 %v2699
    %v2701 = vpop.xlane.xlu0 %2700
    %vm2702 = vcmp.eq.f32.partialorder %v2699, %v2701
    %v2703 = vsel %vm2702, %v2698, inf
    %2704 = vmin.xlane.f32.xlu0 %v2703
    %v2705 = vpop.xlane.xlu0 %2704
    %v2706 = vcvt.f32.s32 %v2705
    %v2707 = vcvt.f32.s32 %v2701
    %v2708 = vshll.u32 %v2707, 16
    %v2709 = vadd.s32 %v2708, %v2706
    %v2710 = vsel %vm232, %v2484, 2147483647
    %v2711 = vand.u32 %v2710, 65535
    %v2712 = vshra.s32 %v2710, 16
    %v2713 = vcvt.s32.f32 %v2711
    %v2714 = vcvt.s32.f32 %v2712
    %2715 = vmin.xlane.f32.xlu0 %v2714
    %v2716 = vpop.xlane.xlu0 %2715
    %vm2717 = vcmp.eq.f32.partialorder %v2714, %v2716
    %v2718 = vsel %vm2717, %v2713, inf
    %2719 = vmin.xlane.f32.xlu0 %v2718
    %v2720 = vpop.xlane.xlu0 %2719
    %v2721 = vcvt.f32.s32 %v2720
    %v2722 = vcvt.f32.s32 %v2716
    %v2723 = vshll.u32 %v2722, 16
    %v2724 = vadd.s32 %v2723, %v2721
    %vm2725 = vcmp.eq.s32.totalorder %v33, %v2499
    %vm2726 = vcmp.eq.s32.totalorder %v33, %v2514
    %vm2727 = vcmp.eq.s32.totalorder %v33, %v2529
    %vm2728 = vcmp.eq.s32.totalorder %v33, %v2544
    %vm2729 = vcmp.eq.s32.totalorder %v33, %v2559
    %vm2730 = vcmp.eq.s32.totalorder %v33, %v2574
    %vm2731 = vcmp.eq.s32.totalorder %v33, %v2589
    %vm2732 = vcmp.eq.s32.totalorder %v33, %v2604
    %vm2733 = vcmp.eq.s32.totalorder %v33, %v2619
    %vm2734 = vcmp.eq.s32.totalorder %v33, %v2634
    %vm2735 = vcmp.eq.s32.totalorder %v33, %v2649
    %vm2736 = vcmp.eq.s32.totalorder %v33, %v2664
    %vm2737 = vcmp.eq.s32.totalorder %v33, %v2679
    %vm2738 = vcmp.eq.s32.totalorder %v33, %v2694
    %vm2739 = vcmp.eq.s32.totalorder %v33, %v2709
    %vm2740 = vcmp.eq.s32.totalorder %v33, %v2724
    %v2741 = vsel %vm2725, -inf, %v2311
    %v2742 = vsel %vm2726, -inf, %v2316
    %v2743 = vsel %vm2727, -inf, %v2321
    %v2744 = vsel %vm2728, -inf, %v2326
    %v2745 = vsel %vm2729, -inf, %v2331
    %v2746 = vsel %vm2730, -inf, %v2336
    %v2747 = vsel %vm2731, -inf, %v2341
    %v2748 = vsel %vm2732, -inf, %v2346
    %v2749 = vsel %vm2733, -inf, %v2351
    %v2750 = vsel %vm2734, -inf, %v2356
    %v2751 = vsel %vm2735, -inf, %v2361
    %v2752 = vsel %vm2736, -inf, %v2366
    %v2753 = vsel %vm2737, -inf, %v2371
    %v2754 = vsel %vm2738, -inf, %v2376
    %v2755 = vsel %vm2739, -inf, %v2381
    %v2756 = vsel %vm2740, -inf, %v2386
    %v2757 = vsel %vm232, %v2741, -inf
    %2758 = vmax.xlane.f32.xlu0 %v2757
    %v2759 = vpop.xlane.xlu0 %2758
    %v2760 = vsel %vm232, %v2742, -inf
    %2761 = vmax.xlane.f32.xlu0 %v2760
    %v2762 = vpop.xlane.xlu0 %2761
    %v2763 = vsel %vm232, %v2743, -inf
    %2764 = vmax.xlane.f32.xlu0 %v2763
    %v2765 = vpop.xlane.xlu0 %2764
    %v2766 = vsel %vm232, %v2744, -inf
    %2767 = vmax.xlane.f32.xlu0 %v2766
    %v2768 = vpop.xlane.xlu0 %2767
    %v2769 = vsel %vm232, %v2745, -inf
    %2770 = vmax.xlane.f32.xlu0 %v2769
    %v2771 = vpop.xlane.xlu0 %2770
    %v2772 = vsel %vm232, %v2746, -inf
    %2773 = vmax.xlane.f32.xlu0 %v2772
    %v2774 = vpop.xlane.xlu0 %2773
    %v2775 = vsel %vm232, %v2747, -inf
    %2776 = vmax.xlane.f32.xlu0 %v2775
    %v2777 = vpop.xlane.xlu0 %2776
    %v2778 = vsel %vm232, %v2748, -inf
    %2779 = vmax.xlane.f32.xlu0 %v2778
    %v2780 = vpop.xlane.xlu0 %2779
    %v2781 = vsel %vm232, %v2749, -inf
    %2782 = vmax.xlane.f32.xlu0 %v2781
    %v2783 = vpop.xlane.xlu0 %2782
    %v2784 = vsel %vm232, %v2750, -inf
    %2785 = vmax.xlane.f32.xlu0 %v2784
    %v2786 = vpop.xlane.xlu0 %2785
    %v2787 = vsel %vm232, %v2751, -inf
    %2788 = vmax.xlane.f32.xlu0 %v2787
    %v2789 = vpop.xlane.xlu0 %2788
    %v2790 = vsel %vm232, %v2752, -inf
    %2791 = vmax.xlane.f32.xlu0 %v2790
    %v2792 = vpop.xlane.xlu0 %2791
    %v2793 = vsel %vm232, %v2753, -inf
    %2794 = vmax.xlane.f32.xlu0 %v2793
    %v2795 = vpop.xlane.xlu0 %2794
    %v2796 = vsel %vm232, %v2754, -inf
    %2797 = vmax.xlane.f32.xlu0 %v2796
    %v2798 = vpop.xlane.xlu0 %2797
    %v2799 = vsel %vm232, %v2755, -inf
    %2800 = vmax.xlane.f32.xlu0 %v2799
    %v2801 = vpop.xlane.xlu0 %2800
    %v2802 = vsel %vm232, %v2756, -inf
    %2803 = vmax.xlane.f32.xlu0 %v2802
    %v2804 = vpop.xlane.xlu0 %2803
    %v2805 = vadd.f32 %v2437, %v2759
    %v2806 = vadd.f32 %v2438, %v2762
    %v2807 = vadd.f32 %v2439, %v2765
    %v2808 = vadd.f32 %v2440, %v2768
    %v2809 = vadd.f32 %v2441, %v2771
    %v2810 = vadd.f32 %v2442, %v2774
    %v2811 = vadd.f32 %v2443, %v2777
    %v2812 = vadd.f32 %v2444, %v2780
    %v2813 = vadd.f32 %v2445, %v2783
    %v2814 = vadd.f32 %v2446, %v2786
    %v2815 = vadd.f32 %v2447, %v2789
    %v2816 = vadd.f32 %v2448, %v2792
    %v2817 = vadd.f32 %v2449, %v2795
    %v2818 = vadd.f32 %v2450, %v2798
    %v2819 = vadd.f32 %v2451, %v2801
    %v2820 = vadd.f32 %v2452, %v2804
    %v2821 = vmul.f32 %v2805, 0.5
    %v2822 = vmul.f32 %v2806, 0.5
    %v2823 = vmul.f32 %v2807, 0.5
    %v2824 = vmul.f32 %v2808, 0.5
    %v2825 = vmul.f32 %v2809, 0.5
    %v2826 = vmul.f32 %v2810, 0.5
    %v2827 = vmul.f32 %v2811, 0.5
    %v2828 = vmul.f32 %v2812, 0.5
    %v2829 = vmul.f32 %v2813, 0.5
    %v2830 = vmul.f32 %v2814, 0.5
    %v2831 = vmul.f32 %v2815, 0.5
    %v2832 = vmul.f32 %v2816, 0.5
    %v2833 = vmul.f32 %v2817, 0.5
    %v2834 = vmul.f32 %v2818, 0.5
    %v2835 = vmul.f32 %v2819, 0.5
    %v2836 = vmul.f32 %v2820, 0.5
    %v2837 = vsel %vm232, %v2311, inf
    %2838 = vmin.xlane.f32.xlu0 %v2837
    %v2839 = vpop.xlane.xlu0 %2838
    %v2840 = vsel %vm232, %v2316, inf
    %2841 = vmin.xlane.f32.xlu0 %v2840
    %v2842 = vpop.xlane.xlu0 %2841
    %v2843 = vsel %vm232, %v2321, inf
    %2844 = vmin.xlane.f32.xlu0 %v2843
    %v2845 = vpop.xlane.xlu0 %2844
    %v2846 = vsel %vm232, %v2326, inf
    %2847 = vmin.xlane.f32.xlu0 %v2846
    %v2848 = vpop.xlane.xlu0 %2847
    %v2849 = vsel %vm232, %v2331, inf
    %2850 = vmin.xlane.f32.xlu0 %v2849
    %v2851 = vpop.xlane.xlu0 %2850
    %v2852 = vsel %vm232, %v2336, inf
    %2853 = vmin.xlane.f32.xlu0 %v2852
    %v2854 = vpop.xlane.xlu0 %2853
    %v2855 = vsel %vm232, %v2341, inf
    %2856 = vmin.xlane.f32.xlu0 %v2855
    %v2857 = vpop.xlane.xlu0 %2856
    %v2858 = vsel %vm232, %v2346, inf
    %2859 = vmin.xlane.f32.xlu0 %v2858
    %v2860 = vpop.xlane.xlu0 %2859
    %v2861 = vsel %vm232, %v2351, inf
    %2862 = vmin.xlane.f32.xlu0 %v2861
    %v2863 = vpop.xlane.xlu0 %2862
    %v2864 = vsel %vm232, %v2356, inf
    %2865 = vmin.xlane.f32.xlu0 %v2864
    %v2866 = vpop.xlane.xlu0 %2865
    %v2867 = vsel %vm232, %v2361, inf
    %2868 = vmin.xlane.f32.xlu0 %v2867
    %v2869 = vpop.xlane.xlu0 %2868
    %v2870 = vsel %vm232, %v2366, inf
    %2871 = vmin.xlane.f32.xlu0 %v2870
    %v2872 = vpop.xlane.xlu0 %2871
    %v2873 = vsel %vm232, %v2371, inf
    %2874 = vmin.xlane.f32.xlu0 %v2873
    %v2875 = vpop.xlane.xlu0 %2874
    %v2876 = vsel %vm232, %v2376, inf
    %2877 = vmin.xlane.f32.xlu0 %v2876
    %v2878 = vpop.xlane.xlu0 %2877
    %v2879 = vsel %vm232, %v2381, inf
    %2880 = vmin.xlane.f32.xlu0 %v2879
    %v2881 = vpop.xlane.xlu0 %2880
    %v2882 = vsel %vm232, %v2386, inf
    %2883 = vmin.xlane.f32.xlu0 %v2882
    %v2884 = vpop.xlane.xlu0 %2883
    %v2885 = vadd.f32 %v2839, 0.0
    %v2886 = vadd.f32 %v2842, 0.0
    %v2887 = vadd.f32 %v2845, 0.0
    %v2888 = vadd.f32 %v2848, 0.0
    %v2889 = vadd.f32 %v2851, 0.0
    %v2890 = vadd.f32 %v2854, 0.0
    %v2891 = vadd.f32 %v2857, 0.0
    %v2892 = vadd.f32 %v2860, 0.0
    %v2893 = vadd.f32 %v2863, 0.0
    %v2894 = vadd.f32 %v2866, 0.0
    %v2895 = vadd.f32 %v2869, 0.0
    %v2896 = vadd.f32 %v2872, 0.0
    %v2897 = vadd.f32 %v2875, 0.0
    %v2898 = vadd.f32 %v2878, 0.0
    %v2899 = vadd.f32 %v2881, 0.0
    %v2900 = vadd.f32 %v2884, 0.0
    %vm2901 = vcmp.eq.f32.partialorder %v2311, %v2839
    %vm2902 = vcmp.eq.f32.partialorder %v2316, %v2842
    %vm2903 = vcmp.eq.f32.partialorder %v2321, %v2845
    %vm2904 = vcmp.eq.f32.partialorder %v2326, %v2848
    %vm2905 = vcmp.eq.f32.partialorder %v2331, %v2851
    %vm2906 = vcmp.eq.f32.partialorder %v2336, %v2854
    %vm2907 = vcmp.eq.f32.partialorder %v2341, %v2857
    %vm2908 = vcmp.eq.f32.partialorder %v2346, %v2860
    %vm2909 = vcmp.eq.f32.partialorder %v2351, %v2863
    %vm2910 = vcmp.eq.f32.partialorder %v2356, %v2866
    %vm2911 = vcmp.eq.f32.partialorder %v2361, %v2869
    %vm2912 = vcmp.eq.f32.partialorder %v2366, %v2872
    %vm2913 = vcmp.eq.f32.partialorder %v2371, %v2875
    %vm2914 = vcmp.eq.f32.partialorder %v2376, %v2878
    %vm2915 = vcmp.eq.f32.partialorder %v2381, %v2881
    %vm2916 = vcmp.eq.f32.partialorder %v2386, %v2884
    %v2917 = vsel %vm2901, %v33, 64
    %v2918 = vsel %vm2902, %v33, 64
    %v2919 = vsel %vm2903, %v33, 64
    %v2920 = vsel %vm2904, %v33, 64
    %v2921 = vsel %vm2905, %v33, 64
    %v2922 = vsel %vm2906, %v33, 64
    %v2923 = vsel %vm2907, %v33, 64
    %v2924 = vsel %vm2908, %v33, 64
    %v2925 = vsel %vm2909, %v33, 64
    %v2926 = vsel %vm2910, %v33, 64
    %v2927 = vsel %vm2911, %v33, 64
    %v2928 = vsel %vm2912, %v33, 64
    %v2929 = vsel %vm2913, %v33, 64
    %v2930 = vsel %vm2914, %v33, 64
    %v2931 = vsel %vm2915, %v33, 64
    %v2932 = vsel %vm2916, %v33, 64
    %v2933 = vsel %vm232, %v2917, 2147483647
    %v2934 = vand.u32 %v2933, 65535
    %v2935 = vshra.s32 %v2933, 16
    %v2936 = vcvt.s32.f32 %v2934
    %v2937 = vcvt.s32.f32 %v2935
    %2938 = vmin.xlane.f32.xlu0 %v2937
    %v2939 = vpop.xlane.xlu0 %2938
    %vm2940 = vcmp.eq.f32.partialorder %v2937, %v2939
    %v2941 = vsel %vm2940, %v2936, inf
    %2942 = vmin.xlane.f32.xlu0 %v2941
    %v2943 = vpop.xlane.xlu0 %2942
    %v2944 = vcvt.f32.s32 %v2943
    %v2945 = vcvt.f32.s32 %v2939
    %v2946 = vshll.u32 %v2945, 16
    %v2947 = vadd.s32 %v2946, %v2944
    %v2948 = vsel %vm232, %v2918, 2147483647
    %v2949 = vand.u32 %v2948, 65535
    %v2950 = vshra.s32 %v2948, 16
    %v2951 = vcvt.s32.f32 %v2949
    %v2952 = vcvt.s32.f32 %v2950
    %2953 = vmin.xlane.f32.xlu0 %v2952
    %v2954 = vpop.xlane.xlu0 %2953
    %vm2955 = vcmp.eq.f32.partialorder %v2952, %v2954
    %v2956 = vsel %vm2955, %v2951, inf
    %2957 = vmin.xlane.f32.xlu0 %v2956
    %v2958 = vpop.xlane.xlu0 %2957
    %v2959 = vcvt.f32.s32 %v2958
    %v2960 = vcvt.f32.s32 %v2954
    %v2961 = vshll.u32 %v2960, 16
    %v2962 = vadd.s32 %v2961, %v2959
    %v2963 = vsel %vm232, %v2919, 2147483647
    %v2964 = vand.u32 %v2963, 65535
    %v2965 = vshra.s32 %v2963, 16
    %v2966 = vcvt.s32.f32 %v2964
    %v2967 = vcvt.s32.f32 %v2965
    %2968 = vmin.xlane.f32.xlu0 %v2967
    %v2969 = vpop.xlane.xlu0 %2968
    %vm2970 = vcmp.eq.f32.partialorder %v2967, %v2969
    %v2971 = vsel %vm2970, %v2966, inf
    %2972 = vmin.xlane.f32.xlu0 %v2971
    %v2973 = vpop.xlane.xlu0 %2972
    %v2974 = vcvt.f32.s32 %v2973
    %v2975 = vcvt.f32.s32 %v2969
    %v2976 = vshll.u32 %v2975, 16
    %v2977 = vadd.s32 %v2976, %v2974
    %v2978 = vsel %vm232, %v2920, 2147483647
    %v2979 = vand.u32 %v2978, 65535
    %v2980 = vshra.s32 %v2978, 16
    %v2981 = vcvt.s32.f32 %v2979
    %v2982 = vcvt.s32.f32 %v2980
    %2983 = vmin.xlane.f32.xlu0 %v2982
    %v2984 = vpop.xlane.xlu0 %2983
    %vm2985 = vcmp.eq.f32.partialorder %v2982, %v2984
    %v2986 = vsel %vm2985, %v2981, inf
    %2987 = vmin.xlane.f32.xlu0 %v2986
    %v2988 = vpop.xlane.xlu0 %2987
    %v2989 = vcvt.f32.s32 %v2988
    %v2990 = vcvt.f32.s32 %v2984
    %v2991 = vshll.u32 %v2990, 16
    %v2992 = vadd.s32 %v2991, %v2989
    %v2993 = vsel %vm232, %v2921, 2147483647
    %v2994 = vand.u32 %v2993, 65535
    %v2995 = vshra.s32 %v2993, 16
    %v2996 = vcvt.s32.f32 %v2994
    %v2997 = vcvt.s32.f32 %v2995
    %2998 = vmin.xlane.f32.xlu0 %v2997
    %v2999 = vpop.xlane.xlu0 %2998
    %vm3000 = vcmp.eq.f32.partialorder %v2997, %v2999
    %v3001 = vsel %vm3000, %v2996, inf
    %3002 = vmin.xlane.f32.xlu0 %v3001
    %v3003 = vpop.xlane.xlu0 %3002
    %v3004 = vcvt.f32.s32 %v3003
    %v3005 = vcvt.f32.s32 %v2999
    %v3006 = vshll.u32 %v3005, 16
    %v3007 = vadd.s32 %v3006, %v3004
    %v3008 = vsel %vm232, %v2922, 2147483647
    %v3009 = vand.u32 %v3008, 65535
    %v3010 = vshra.s32 %v3008, 16
    %v3011 = vcvt.s32.f32 %v3009
    %v3012 = vcvt.s32.f32 %v3010
    %3013 = vmin.xlane.f32.xlu0 %v3012
    %v3014 = vpop.xlane.xlu0 %3013
    %vm3015 = vcmp.eq.f32.partialorder %v3012, %v3014
    %v3016 = vsel %vm3015, %v3011, inf
    %3017 = vmin.xlane.f32.xlu0 %v3016
    %v3018 = vpop.xlane.xlu0 %3017
    %v3019 = vcvt.f32.s32 %v3018
    %v3020 = vcvt.f32.s32 %v3014
    %v3021 = vshll.u32 %v3020, 16
    %v3022 = vadd.s32 %v3021, %v3019
    %v3023 = vsel %vm232, %v2923, 2147483647
    %v3024 = vand.u32 %v3023, 65535
    %v3025 = vshra.s32 %v3023, 16
    %v3026 = vcvt.s32.f32 %v3024
    %v3027 = vcvt.s32.f32 %v3025
    %3028 = vmin.xlane.f32.xlu0 %v3027
    %v3029 = vpop.xlane.xlu0 %3028
    %vm3030 = vcmp.eq.f32.partialorder %v3027, %v3029
    %v3031 = vsel %vm3030, %v3026, inf
    %3032 = vmin.xlane.f32.xlu0 %v3031
    %v3033 = vpop.xlane.xlu0 %3032
    %v3034 = vcvt.f32.s32 %v3033
    %v3035 = vcvt.f32.s32 %v3029
    %v3036 = vshll.u32 %v3035, 16
    %v3037 = vadd.s32 %v3036, %v3034
    %v3038 = vsel %vm232, %v2924, 2147483647
    %v3039 = vand.u32 %v3038, 65535
    %v3040 = vshra.s32 %v3038, 16
    %v3041 = vcvt.s32.f32 %v3039
    %v3042 = vcvt.s32.f32 %v3040
    %3043 = vmin.xlane.f32.xlu0 %v3042
    %v3044 = vpop.xlane.xlu0 %3043
    %vm3045 = vcmp.eq.f32.partialorder %v3042, %v3044
    %v3046 = vsel %vm3045, %v3041, inf
    %3047 = vmin.xlane.f32.xlu0 %v3046
    %v3048 = vpop.xlane.xlu0 %3047
    %v3049 = vcvt.f32.s32 %v3048
    %v3050 = vcvt.f32.s32 %v3044
    %v3051 = vshll.u32 %v3050, 16
    %v3052 = vadd.s32 %v3051, %v3049
    %v3053 = vsel %vm232, %v2925, 2147483647
    %v3054 = vand.u32 %v3053, 65535
    %v3055 = vshra.s32 %v3053, 16
    %v3056 = vcvt.s32.f32 %v3054
    %v3057 = vcvt.s32.f32 %v3055
    %3058 = vmin.xlane.f32.xlu0 %v3057
    %v3059 = vpop.xlane.xlu0 %3058
    %vm3060 = vcmp.eq.f32.partialorder %v3057, %v3059
    %v3061 = vsel %vm3060, %v3056, inf
    %3062 = vmin.xlane.f32.xlu0 %v3061
    %v3063 = vpop.xlane.xlu0 %3062
    %v3064 = vcvt.f32.s32 %v3063
    %v3065 = vcvt.f32.s32 %v3059
    %v3066 = vshll.u32 %v3065, 16
    %v3067 = vadd.s32 %v3066, %v3064
    %v3068 = vsel %vm232, %v2926, 2147483647
    %v3069 = vand.u32 %v3068, 65535
    %v3070 = vshra.s32 %v3068, 16
    %v3071 = vcvt.s32.f32 %v3069
    %v3072 = vcvt.s32.f32 %v3070
    %3073 = vmin.xlane.f32.xlu0 %v3072
    %v3074 = vpop.xlane.xlu0 %3073
    %vm3075 = vcmp.eq.f32.partialorder %v3072, %v3074
    %v3076 = vsel %vm3075, %v3071, inf
    %3077 = vmin.xlane.f32.xlu0 %v3076
    %v3078 = vpop.xlane.xlu0 %3077
    %v3079 = vcvt.f32.s32 %v3078
    %v3080 = vcvt.f32.s32 %v3074
    %v3081 = vshll.u32 %v3080, 16
    %v3082 = vadd.s32 %v3081, %v3079
    %v3083 = vsel %vm232, %v2927, 2147483647
    %v3084 = vand.u32 %v3083, 65535
    %v3085 = vshra.s32 %v3083, 16
    %v3086 = vcvt.s32.f32 %v3084
    %v3087 = vcvt.s32.f32 %v3085
    %3088 = vmin.xlane.f32.xlu0 %v3087
    %v3089 = vpop.xlane.xlu0 %3088
    %vm3090 = vcmp.eq.f32.partialorder %v3087, %v3089
    %v3091 = vsel %vm3090, %v3086, inf
    %3092 = vmin.xlane.f32.xlu0 %v3091
    %v3093 = vpop.xlane.xlu0 %3092
    %v3094 = vcvt.f32.s32 %v3093
    %v3095 = vcvt.f32.s32 %v3089
    %v3096 = vshll.u32 %v3095, 16
    %v3097 = vadd.s32 %v3096, %v3094
    %v3098 = vsel %vm232, %v2928, 2147483647
    %v3099 = vand.u32 %v3098, 65535
    %v3100 = vshra.s32 %v3098, 16
    %v3101 = vcvt.s32.f32 %v3099
    %v3102 = vcvt.s32.f32 %v3100
    %3103 = vmin.xlane.f32.xlu0 %v3102
    %v3104 = vpop.xlane.xlu0 %3103
    %vm3105 = vcmp.eq.f32.partialorder %v3102, %v3104
    %v3106 = vsel %vm3105, %v3101, inf
    %3107 = vmin.xlane.f32.xlu0 %v3106
    %v3108 = vpop.xlane.xlu0 %3107
    %v3109 = vcvt.f32.s32 %v3108
    %v3110 = vcvt.f32.s32 %v3104
    %v3111 = vshll.u32 %v3110, 16
    %v3112 = vadd.s32 %v3111, %v3109
    %v3113 = vsel %vm232, %v2929, 2147483647
    %v3114 = vand.u32 %v3113, 65535
    %v3115 = vshra.s32 %v3113, 16
    %v3116 = vcvt.s32.f32 %v3114
    %v3117 = vcvt.s32.f32 %v3115
    %3118 = vmin.xlane.f32.xlu0 %v3117
    %v3119 = vpop.xlane.xlu0 %3118
    %vm3120 = vcmp.eq.f32.partialorder %v3117, %v3119
    %v3121 = vsel %vm3120, %v3116, inf
    %3122 = vmin.xlane.f32.xlu0 %v3121
    %v3123 = vpop.xlane.xlu0 %3122
    %v3124 = vcvt.f32.s32 %v3123
    %v3125 = vcvt.f32.s32 %v3119
    %v3126 = vshll.u32 %v3125, 16
    %v3127 = vadd.s32 %v3126, %v3124
    %v3128 = vsel %vm232, %v2930, 2147483647
    %v3129 = vand.u32 %v3128, 65535
    %v3130 = vshra.s32 %v3128, 16
    %v3131 = vcvt.s32.f32 %v3129
    %v3132 = vcvt.s32.f32 %v3130
    %3133 = vmin.xlane.f32.xlu0 %v3132
    %v3134 = vpop.xlane.xlu0 %3133
    %vm3135 = vcmp.eq.f32.partialorder %v3132, %v3134
    %v3136 = vsel %vm3135, %v3131, inf
    %3137 = vmin.xlane.f32.xlu0 %v3136
    %v3138 = vpop.xlane.xlu0 %3137
    %v3139 = vcvt.f32.s32 %v3138
    %v3140 = vcvt.f32.s32 %v3134
    %v3141 = vshll.u32 %v3140, 16
    %v3142 = vadd.s32 %v3141, %v3139
    %v3143 = vsel %vm232, %v2931, 2147483647
    %v3144 = vand.u32 %v3143, 65535
    %v3145 = vshra.s32 %v3143, 16
    %v3146 = vcvt.s32.f32 %v3144
    %v3147 = vcvt.s32.f32 %v3145
    %3148 = vmin.xlane.f32.xlu0 %v3147
    %v3149 = vpop.xlane.xlu0 %3148
    %vm3150 = vcmp.eq.f32.partialorder %v3147, %v3149
    %v3151 = vsel %vm3150, %v3146, inf
    %3152 = vmin.xlane.f32.xlu0 %v3151
    %v3153 = vpop.xlane.xlu0 %3152
    %v3154 = vcvt.f32.s32 %v3153
    %v3155 = vcvt.f32.s32 %v3149
    %v3156 = vshll.u32 %v3155, 16
    %v3157 = vadd.s32 %v3156, %v3154
    %v3158 = vsel %vm232, %v2932, 2147483647
    %v3159 = vand.u32 %v3158, 65535
    %v3160 = vshra.s32 %v3158, 16
    %v3161 = vcvt.s32.f32 %v3159
    %v3162 = vcvt.s32.f32 %v3160
    %3163 = vmin.xlane.f32.xlu0 %v3162
    %v3164 = vpop.xlane.xlu0 %3163
    %vm3165 = vcmp.eq.f32.partialorder %v3162, %v3164
    %v3166 = vsel %vm3165, %v3161, inf
    %3167 = vmin.xlane.f32.xlu0 %v3166
    %v3168 = vpop.xlane.xlu0 %3167
    %v3169 = vcvt.f32.s32 %v3168
    %v3170 = vcvt.f32.s32 %v3164
    %v3171 = vshll.u32 %v3170, 16
    %v3172 = vadd.s32 %v3171, %v3169
    %vm3173 = vcmp.eq.s32.totalorder %v33, %v2947
    %vm3174 = vcmp.eq.s32.totalorder %v33, %v2962
    %vm3175 = vcmp.eq.s32.totalorder %v33, %v2977
    %vm3176 = vcmp.eq.s32.totalorder %v33, %v2992
    %vm3177 = vcmp.eq.s32.totalorder %v33, %v3007
    %vm3178 = vcmp.eq.s32.totalorder %v33, %v3022
    %vm3179 = vcmp.eq.s32.totalorder %v33, %v3037
    %vm3180 = vcmp.eq.s32.totalorder %v33, %v3052
    %vm3181 = vcmp.eq.s32.totalorder %v33, %v3067
    %vm3182 = vcmp.eq.s32.totalorder %v33, %v3082
    %vm3183 = vcmp.eq.s32.totalorder %v33, %v3097
    %vm3184 = vcmp.eq.s32.totalorder %v33, %v3112
    %vm3185 = vcmp.eq.s32.totalorder %v33, %v3127
    %vm3186 = vcmp.eq.s32.totalorder %v33, %v3142
    %vm3187 = vcmp.eq.s32.totalorder %v33, %v3157
    %vm3188 = vcmp.eq.s32.totalorder %v33, %v3172
    %v3189 = vsel %vm3173, inf, %v2311
    %v3190 = vsel %vm3174, inf, %v2316
    %v3191 = vsel %vm3175, inf, %v2321
    %v3192 = vsel %vm3176, inf, %v2326
    %v3193 = vsel %vm3177, inf, %v2331
    %v3194 = vsel %vm3178, inf, %v2336
    %v3195 = vsel %vm3179, inf, %v2341
    %v3196 = vsel %vm3180, inf, %v2346
    %v3197 = vsel %vm3181, inf, %v2351
    %v3198 = vsel %vm3182, inf, %v2356
    %v3199 = vsel %vm3183, inf, %v2361
    %v3200 = vsel %vm3184, inf, %v2366
    %v3201 = vsel %vm3185, inf, %v2371
    %v3202 = vsel %vm3186, inf, %v2376
    %v3203 = vsel %vm3187, inf, %v2381
    %v3204 = vsel %vm3188, inf, %v2386
    %v3205 = vsel %vm232, %v3189, inf
    %3206 = vmin.xlane.f32.xlu0 %v3205
    %v3207 = vpop.xlane.xlu0 %3206
    %v3208 = vsel %vm232, %v3190, inf
    %3209 = vmin.xlane.f32.xlu0 %v3208
    %v3210 = vpop.xlane.xlu0 %3209
    %v3211 = vsel %vm232, %v3191, inf
    %3212 = vmin.xlane.f32.xlu0 %v3211
    %v3213 = vpop.xlane.xlu0 %3212
    %v3214 = vsel %vm232, %v3192, inf
    %3215 = vmin.xlane.f32.xlu0 %v3214
    %v3216 = vpop.xlane.xlu0 %3215
    %v3217 = vsel %vm232, %v3193, inf
    %3218 = vmin.xlane.f32.xlu0 %v3217
    %v3219 = vpop.xlane.xlu0 %3218
    %v3220 = vsel %vm232, %v3194, inf
    %3221 = vmin.xlane.f32.xlu0 %v3220
    %v3222 = vpop.xlane.xlu0 %3221
    %v3223 = vsel %vm232, %v3195, inf
    %3224 = vmin.xlane.f32.xlu0 %v3223
    %v3225 = vpop.xlane.xlu0 %3224
    %v3226 = vsel %vm232, %v3196, inf
    %3227 = vmin.xlane.f32.xlu0 %v3226
    %v3228 = vpop.xlane.xlu0 %3227
    %v3229 = vsel %vm232, %v3197, inf
    %3230 = vmin.xlane.f32.xlu0 %v3229
    %v3231 = vpop.xlane.xlu0 %3230
    %v3232 = vsel %vm232, %v3198, inf
    %3233 = vmin.xlane.f32.xlu0 %v3232
    %v3234 = vpop.xlane.xlu0 %3233
    %v3235 = vsel %vm232, %v3199, inf
    %3236 = vmin.xlane.f32.xlu0 %v3235
    %v3237 = vpop.xlane.xlu0 %3236
    %v3238 = vsel %vm232, %v3200, inf
    %3239 = vmin.xlane.f32.xlu0 %v3238
    %v3240 = vpop.xlane.xlu0 %3239
    %v3241 = vsel %vm232, %v3201, inf
    %3242 = vmin.xlane.f32.xlu0 %v3241
    %v3243 = vpop.xlane.xlu0 %3242
    %v3244 = vsel %vm232, %v3202, inf
    %3245 = vmin.xlane.f32.xlu0 %v3244
    %v3246 = vpop.xlane.xlu0 %3245
    %v3247 = vsel %vm232, %v3203, inf
    %3248 = vmin.xlane.f32.xlu0 %v3247
    %v3249 = vpop.xlane.xlu0 %3248
    %v3250 = vsel %vm232, %v3204, inf
    %3251 = vmin.xlane.f32.xlu0 %v3250
    %v3252 = vpop.xlane.xlu0 %3251
    %v3253 = vadd.f32 %v2885, %v3207
    %v3254 = vadd.f32 %v2886, %v3210
    %v3255 = vadd.f32 %v2887, %v3213
    %v3256 = vadd.f32 %v2888, %v3216
    %v3257 = vadd.f32 %v2889, %v3219
    %v3258 = vadd.f32 %v2890, %v3222
    %v3259 = vadd.f32 %v2891, %v3225
    %v3260 = vadd.f32 %v2892, %v3228
    %v3261 = vadd.f32 %v2893, %v3231
    %v3262 = vadd.f32 %v2894, %v3234
    %v3263 = vadd.f32 %v2895, %v3237
    %v3264 = vadd.f32 %v2896, %v3240
    %v3265 = vadd.f32 %v2897, %v3243
    %v3266 = vadd.f32 %v2898, %v3246
    %v3267 = vadd.f32 %v2899, %v3249
    %v3268 = vadd.f32 %v2900, %v3252
    %v3269 = vmul.f32 %v3253, 0.5
    %v3270 = vmul.f32 %v3254, 0.5
    %v3271 = vmul.f32 %v3255, 0.5
    %v3272 = vmul.f32 %v3256, 0.5
    %v3273 = vmul.f32 %v3257, 0.5
    %v3274 = vmul.f32 %v3258, 0.5
    %v3275 = vmul.f32 %v3259, 0.5
    %v3276 = vmul.f32 %v3260, 0.5
    %v3277 = vmul.f32 %v3261, 0.5
    %v3278 = vmul.f32 %v3262, 0.5
    %v3279 = vmul.f32 %v3263, 0.5
    %v3280 = vmul.f32 %v3264, 0.5
    %v3281 = vmul.f32 %v3265, 0.5
    %v3282 = vmul.f32 %v3266, 0.5
    %v3283 = vmul.f32 %v3267, 0.5
    %v3284 = vmul.f32 %v3268, 0.5
    %v3285 = vadd.f32 %v2821, %v3269
    %v3286 = vadd.f32 %v2822, %v3270
    %v3287 = vadd.f32 %v2823, %v3271
    %v3288 = vadd.f32 %v2824, %v3272
    %v3289 = vadd.f32 %v2825, %v3273
    %v3290 = vadd.f32 %v2826, %v3274
    %v3291 = vadd.f32 %v2827, %v3275
    %v3292 = vadd.f32 %v2828, %v3276
    %v3293 = vadd.f32 %v2829, %v3277
    %v3294 = vadd.f32 %v2830, %v3278
    %v3295 = vadd.f32 %v2831, %v3279
    %v3296 = vadd.f32 %v2832, %v3280
    %v3297 = vadd.f32 %v2833, %v3281
    %v3298 = vadd.f32 %v2834, %v3282
    %v3299 = vadd.f32 %v2835, %v3283
    %v3300 = vadd.f32 %v2836, %v3284
    %v3301 = vmul.f32 %v3285, 0.5
    %v3302 = vmul.f32 %v3286, 0.5
    %v3303 = vmul.f32 %v3287, 0.5
    %v3304 = vmul.f32 %v3288, 0.5
    %v3305 = vmul.f32 %v3289, 0.5
    %v3306 = vmul.f32 %v3290, 0.5
    %v3307 = vmul.f32 %v3291, 0.5
    %v3308 = vmul.f32 %v3292, 0.5
    %v3309 = vmul.f32 %v3293, 0.5
    %v3310 = vmul.f32 %v3294, 0.5
    %v3311 = vmul.f32 %v3295, 0.5
    %v3312 = vmul.f32 %v3296, 0.5
    %v3313 = vmul.f32 %v3297, 0.5
    %v3314 = vmul.f32 %v3298, 0.5
    %v3315 = vmul.f32 %v3299, 0.5
    %v3316 = vmul.f32 %v3300, 0.5
    %s3317 = scalar_lea.vmem %s0, 96
    %v3318 = vld [vmem:[%s3317] sm:$0xff]
    %v3319 = vld [vmem:[%s3317 + $0x8] sm:$0xff]
    %v3320 = vld [vmem:[%s3317 + $0x10] sm:$0xff]
    %v3321 = vld [vmem:[%s3317 + $0x18] sm:$0xff]
    %3322 = vmatprep.subr.mxu0 0.0
    %3323 = vmatpush1.msra.mxu0 %v3318
    %3324 = vmatprep.subr.mxu0 0.0
    %3325 = vmatpush1.msra.mxu0 %v3319
    %3326 = vmatprep.subr.mxu0 0.0
    %3327 = vmatpush1.msra.mxu0 %v3320
    %3328 = vmatprep.subr.mxu0 0.0
    %3329 = vmatpush1.msra.mxu0 %v3321
    %3330 = vmatprep.subr.mxu0 0.0
    %3331 = vmatpush1.msra.mxu0 0.0
    %3332 = vmatprep.subr.mxu0 0.0
    %3333 = vmatpush1.msra.mxu0 0.0
    %3334 = vmatprep.subr.mxu0 0.0
    %3335 = vmatpush1.msra.mxu0 0.0
    %3336 = vmatprep.subr.mxu0 0.0
    %3337 = vmatpush1.msra.mxu0 0.0
    %3338 = vmatprep.subr.mxu0 0.0
    %3339 = vmatpush1.msra.mxu0 0.0
    %3340 = vmatprep.subr.mxu0 0.0
    %3341 = vmatpush1.msra.mxu0 0.0
    %3342 = vmatprep.subr.mxu0 0.0
    %3343 = vmatpush1.msra.mxu0 0.0
    %3344 = vmatprep.subr.mxu0 0.0
    %3345 = vmatpush1.msra.mxu0 0.0
    %3346 = vmatprep.subr.mxu0 0.0
    %3347 = vmatpush1.msra.mxu0 0.0
    %3348 = vmatprep.subr.mxu0 0.0
    %3349 = vmatpush1.msra.mxu0 0.0
    %3350 = vmatprep.subr.mxu0 0.0
    %3351 = vmatpush1.msra.mxu0 0.0
    %3352 = vmatprep.subr.mxu0 0.0
    %3353 = vmatpush1.msra.mxu0 0.0
    %3354 = vmatprep.subr.mxu0 0.0
    %3355 = vmatpush1.msra.mxu0 0.0
    %3356 = vmatprep.subr.mxu0 0.0
    %3357 = vmatpush1.msra.mxu0 0.0
    %3358 = vmatprep.subr.mxu0 0.0
    %3359 = vmatpush1.msra.mxu0 0.0
    %3360 = vmatprep.subr.mxu0 0.0
    %3361 = vmatpush1.msra.mxu0 0.0
    %3362 = vmatprep.subr.mxu0 0.0
    %3363 = vmatpush1.msra.mxu0 0.0
    %3364 = vmatprep.subr.mxu0 0.0
    %3365 = vmatpush1.msra.mxu0 0.0
    %3366 = vmatprep.subr.mxu0 0.0
    %3367 = vmatpush1.msra.mxu0 0.0
    %3368 = vmatprep.subr.mxu0 0.0
    %3369 = vmatpush1.msra.mxu0 0.0
    %3370 = vmatprep.subr.mxu0 0.0
    %3371 = vmatpush1.msra.mxu0 0.0
    %3372 = vmatprep.subr.mxu0 0.0
    %3373 = vmatpush1.msra.mxu0 0.0
    %3374 = vmatprep.subr.mxu0 0.0
    %3375 = vmatpush1.msra.mxu0 0.0
    %3376 = vmatprep.subr.mxu0 0.0
    %3377 = vmatpush1.msra.mxu0 0.0
    %3378 = vmatprep.subr.mxu0 0.0
    %3379 = vmatpush1.msra.mxu0 0.0
    %3380 = vmatprep.subr.mxu0 0.0
    %3381 = vmatpush1.msra.mxu0 0.0
    %3382 = vmatprep.subr.mxu0 0.0
    %3383 = vmatpush1.msra.mxu0 0.0
    %3384 = vmatprep.subr.mxu0 0.0
    %3385 = vmatpush1.msra.mxu0 0.0
    %3386 = vmatprep.mubr.f32.mxu0 0.0
    %3387 = vmatmul.mubr.f32.gmra.mrb[0].mxu0 %v40
    %v3388 = vpop.f32.mrb[0].mxu0
    %v3389 = vadd.f32 0.0, %v3388
    %v3390 = vpop.f32.mrb[0].mxu0
    %3391 = vmatprep.mubr.f32.mxu0 0.0
    %3392 = vmatmul.mubr.f32.gmra.mrb[0].mxu0 %v43
    %v3393 = vpop.f32.mrb[0].mxu0
    %v3394 = vadd.f32 0.0, %v3393
    %v3395 = vpop.f32.mrb[0].mxu0
    %3396 = vmatprep.mubr.f32.mxu0 0.0
    %3397 = vmatmul.mubr.f32.gmra.mrb[0].mxu0 %v46
    %v3398 = vpop.f32.mrb[0].mxu0
    %v3399 = vadd.f32 0.0, %v3398
    %v3400 = vpop.f32.mrb[0].mxu0
    %3401 = vmatprep.mubr.f32.mxu0 0.0
    %3402 = vmatmul.mubr.f32.gmra.mrb[0].mxu0 %v49
    %v3403 = vpop.f32.mrb[0].mxu0
    %v3404 = vadd.f32 0.0, %v3403
    %v3405 = vpop.f32.mrb[0].mxu0
    %3406 = vmatprep.mubr.f32.mxu0 0.0
    %3407 = vmatmul.mubr.f32.gmra.mrb[0].mxu0 %v52
    %v3408 = vpop.f32.mrb[0].mxu0
    %v3409 = vadd.f32 0.0, %v3408
    %v3410 = vpop.f32.mrb[0].mxu0
    %3411 = vmatprep.mubr.f32.mxu0 0.0
    %3412 = vmatmul.mubr.f32.gmra.mrb[0].mxu0 %v55
    %v3413 = vpop.f32.mrb[0].mxu0
    %v3414 = vadd.f32 0.0, %v3413
    %v3415 = vpop.f32.mrb[0].mxu0
    %3416 = vmatprep.mubr.f32.mxu0 0.0
    %3417 = vmatmul.mubr.f32.gmra.mrb[0].mxu0 %v58
    %v3418 = vpop.f32.mrb[0].mxu0
    %v3419 = vadd.f32 0.0, %v3418
    %v3420 = vpop.f32.mrb[0].mxu0
    %3421 = vmatprep.mubr.f32.mxu0 0.0
    %3422 = vmatmul.mubr.f32.gmra.mrb[0].mxu0 %v61
    %v3423 = vpop.f32.mrb[0].mxu0
    %v3424 = vadd.f32 0.0, %v3423
    %v3425 = vpop.f32.mrb[0].mxu0
    %3426 = vmatprep.mubr.f32.mxu0 0.0
    %3427 = vmatmul.mubr.f32.gmra.mrb[0].mxu0 %v64
    %v3428 = vpop.f32.mrb[0].mxu0
    %v3429 = vadd.f32 0.0, %v3428
    %v3430 = vpop.f32.mrb[0].mxu0
    %3431 = vmatprep.mubr.f32.mxu0 0.0
    %3432 = vmatmul.mubr.f32.gmra.mrb[0].mxu0 %v67
    %v3433 = vpop.f32.mrb[0].mxu0
    %v3434 = vadd.f32 0.0, %v3433
    %v3435 = vpop.f32.mrb[0].mxu0
    %3436 = vmatprep.mubr.f32.mxu0 0.0
    %3437 = vmatmul.mubr.f32.gmra.mrb[0].mxu0 %v70
    %v3438 = vpop.f32.mrb[0].mxu0
    %v3439 = vadd.f32 0.0, %v3438
    %v3440 = vpop.f32.mrb[0].mxu0
    %3441 = vmatprep.mubr.f32.mxu0 0.0
    %3442 = vmatmul.mubr.f32.gmra.mrb[0].mxu0 %v73
    %v3443 = vpop.f32.mrb[0].mxu0
    %v3444 = vadd.f32 0.0, %v3443
    %v3445 = vpop.f32.mrb[0].mxu0
    %3446 = vmatprep.mubr.f32.mxu0 0.0
    %3447 = vmatmul.mubr.f32.gmra.mrb[0].mxu0 %v76
    %v3448 = vpop.f32.mrb[0].mxu0
    %v3449 = vadd.f32 0.0, %v3448
    %v3450 = vpop.f32.mrb[0].mxu0
    %3451 = vmatprep.mubr.f32.mxu0 0.0
    %3452 = vmatmul.mubr.f32.gmra.mrb[0].mxu0 %v79
    %v3453 = vpop.f32.mrb[0].mxu0
    %v3454 = vadd.f32 0.0, %v3453
    %v3455 = vpop.f32.mrb[0].mxu0
    %3456 = vmatprep.mubr.f32.mxu0 0.0
    %3457 = vmatmul.mubr.f32.gmra.mrb[0].mxu0 %v82
    %v3458 = vpop.f32.mrb[0].mxu0
    %v3459 = vadd.f32 0.0, %v3458
    %v3460 = vpop.f32.mrb[0].mxu0
    %3461 = vmatprep.mubr.f32.mxu0 0.0
    %3462 = vmatmul.mubr.f32.gmra.mrb[0].mxu0 %v85
    %v3463 = vpop.f32.mrb[0].mxu0
    %v3464 = vadd.f32 0.0, %v3463
    %v3465 = vpop.f32.mrb[0].mxu0
    %3466 = vdwg.mxu0
    %v3467 = vsel %vm232, %v3389, -inf
    %3468 = vmax.xlane.f32.xlu0 %v3467
    %v3469 = vpop.xlane.xlu0 %3468
    %v3470 = vsel %vm232, %v3394, -inf
    %3471 = vmax.xlane.f32.xlu0 %v3470
    %v3472 = vpop.xlane.xlu0 %3471
    %v3473 = vsel %vm232, %v3399, -inf
    %3474 = vmax.xlane.f32.xlu0 %v3473
    %v3475 = vpop.xlane.xlu0 %3474
    %v3476 = vsel %vm232, %v3404, -inf
    %3477 = vmax.xlane.f32.xlu0 %v3476
    %v3478 = vpop.xlane.xlu0 %3477
    %v3479 = vsel %vm232, %v3409, -inf
    %3480 = vmax.xlane.f32.xlu0 %v3479
    %v3481 = vpop.xlane.xlu0 %3480
    %v3482 = vsel %vm232, %v3414, -inf
    %3483 = vmax.xlane.f32.xlu0 %v3482
    %v3484 = vpop.xlane.xlu0 %3483
    %v3485 = vsel %vm232, %v3419, -inf
    %3486 = vmax.xlane.f32.xlu0 %v3485
    %v3487 = vpop.xlane.xlu0 %3486
    %v3488 = vsel %vm232, %v3424, -inf
    %3489 = vmax.xlane.f32.xlu0 %v3488
    %v3490 = vpop.xlane.xlu0 %3489
    %v3491 = vsel %vm232, %v3429, -inf
    %3492 = vmax.xlane.f32.xlu0 %v3491
    %v3493 = vpop.xlane.xlu0 %3492
    %v3494 = vsel %vm232, %v3434, -inf
    %3495 = vmax.xlane.f32.xlu0 %v3494
    %v3496 = vpop.xlane.xlu0 %3495
    %v3497 = vsel %vm232, %v3439, -inf
    %3498 = vmax.xlane.f32.xlu0 %v3497
    %v3499 = vpop.xlane.xlu0 %3498
    %v3500 = vsel %vm232, %v3444, -inf
    %3501 = vmax.xlane.f32.xlu0 %v3500
    %v3502 = vpop.xlane.xlu0 %3501
    %v3503 = vsel %vm232, %v3449, -inf
    %3504 = vmax.xlane.f32.xlu0 %v3503
    %v3505 = vpop.xlane.xlu0 %3504
    %v3506 = vsel %vm232, %v3454, -inf
    %3507 = vmax.xlane.f32.xlu0 %v3506
    %v3508 = vpop.xlane.xlu0 %3507
    %v3509 = vsel %vm232, %v3459, -inf
    %3510 = vmax.xlane.f32.xlu0 %v3509
    %v3511 = vpop.xlane.xlu0 %3510
    %v3512 = vsel %vm232, %v3464, -inf
    %3513 = vmax.xlane.f32.xlu0 %v3512
    %v3514 = vpop.xlane.xlu0 %3513
    %v3515 = vadd.f32 %v3469, 0.0
    %v3516 = vadd.f32 %v3472, 0.0
    %v3517 = vadd.f32 %v3475, 0.0
    %v3518 = vadd.f32 %v3478, 0.0
    %v3519 = vadd.f32 %v3481, 0.0
    %v3520 = vadd.f32 %v3484, 0.0
    %v3521 = vadd.f32 %v3487, 0.0
    %v3522 = vadd.f32 %v3490, 0.0
    %v3523 = vadd.f32 %v3493, 0.0
    %v3524 = vadd.f32 %v3496, 0.0
    %v3525 = vadd.f32 %v3499, 0.0
    %v3526 = vadd.f32 %v3502, 0.0
    %v3527 = vadd.f32 %v3505, 0.0
    %v3528 = vadd.f32 %v3508, 0.0
    %v3529 = vadd.f32 %v3511, 0.0
    %v3530 = vadd.f32 %v3514, 0.0
    %vm3531 = vcmp.eq.f32.partialorder %v3389, %v3469
    %vm3532 = vcmp.eq.f32.partialorder %v3394, %v3472
    %vm3533 = vcmp.eq.f32.partialorder %v3399, %v3475
    %vm3534 = vcmp.eq.f32.partialorder %v3404, %v3478
    %vm3535 = vcmp.eq.f32.partialorder %v3409, %v3481
    %vm3536 = vcmp.eq.f32.partialorder %v3414, %v3484
    %vm3537 = vcmp.eq.f32.partialorder %v3419, %v3487
    %vm3538 = vcmp.eq.f32.partialorder %v3424, %v3490
    %vm3539 = vcmp.eq.f32.partialorder %v3429, %v3493
    %vm3540 = vcmp.eq.f32.partialorder %v3434, %v3496
    %vm3541 = vcmp.eq.f32.partialorder %v3439, %v3499
    %vm3542 = vcmp.eq.f32.partialorder %v3444, %v3502
    %vm3543 = vcmp.eq.f32.partialorder %v3449, %v3505
    %vm3544 = vcmp.eq.f32.partialorder %v3454, %v3508
    %vm3545 = vcmp.eq.f32.partialorder %v3459, %v3511
    %vm3546 = vcmp.eq.f32.partialorder %v3464, %v3514
    %v3547 = vsel %vm3531, %v33, 64
    %v3548 = vsel %vm3532, %v33, 64
    %v3549 = vsel %vm3533, %v33, 64
    %v3550 = vsel %vm3534, %v33, 64
    %v3551 = vsel %vm3535, %v33, 64
    %v3552 = vsel %vm3536, %v33, 64
    %v3553 = vsel %vm3537, %v33, 64
    %v3554 = vsel %vm3538, %v33, 64
    %v3555 = vsel %vm3539, %v33, 64
    %v3556 = vsel %vm3540, %v33, 64
    %v3557 = vsel %vm3541, %v33, 64
    %v3558 = vsel %vm3542, %v33, 64
    %v3559 = vsel %vm3543, %v33, 64
    %v3560 = vsel %vm3544, %v33, 64
    %v3561 = vsel %vm3545, %v33, 64
    %v3562 = vsel %vm3546, %v33, 64
    %v3563 = vsel %vm232, %v3547, 2147483647
    %v3564 = vand.u32 %v3563, 65535
    %v3565 = vshra.s32 %v3563, 16
    %v3566 = vcvt.s32.f32 %v3564
    %v3567 = vcvt.s32.f32 %v3565
    %3568 = vmin.xlane.f32.xlu0 %v3567
    %v3569 = vpop.xlane.xlu0 %3568
    %vm3570 = vcmp.eq.f32.partialorder %v3567, %v3569
    %v3571 = vsel %vm3570, %v3566, inf
    %3572 = vmin.xlane.f32.xlu0 %v3571
    %v3573 = vpop.xlane.xlu0 %3572
    %v3574 = vcvt.f32.s32 %v3573
    %v3575 = vcvt.f32.s32 %v3569
    %v3576 = vshll.u32 %v3575, 16
    %v3577 = vadd.s32 %v3576, %v3574
    %v3578 = vsel %vm232, %v3548, 2147483647
    %v3579 = vand.u32 %v3578, 65535
    %v3580 = vshra.s32 %v3578, 16
    %v3581 = vcvt.s32.f32 %v3579
    %v3582 = vcvt.s32.f32 %v3580
    %3583 = vmin.xlane.f32.xlu0 %v3582
    %v3584 = vpop.xlane.xlu0 %3583
    %vm3585 = vcmp.eq.f32.partialorder %v3582, %v3584
    %v3586 = vsel %vm3585, %v3581, inf
    %3587 = vmin.xlane.f32.xlu0 %v3586
    %v3588 = vpop.xlane.xlu0 %3587
    %v3589 = vcvt.f32.s32 %v3588
    %v3590 = vcvt.f32.s32 %v3584
    %v3591 = vshll.u32 %v3590, 16
    %v3592 = vadd.s32 %v3591, %v3589
    %v3593 = vsel %vm232, %v3549, 2147483647
    %v3594 = vand.u32 %v3593, 65535
    %v3595 = vshra.s32 %v3593, 16
    %v3596 = vcvt.s32.f32 %v3594
    %v3597 = vcvt.s32.f32 %v3595
    %3598 = vmin.xlane.f32.xlu0 %v3597
    %v3599 = vpop.xlane.xlu0 %3598
    %vm3600 = vcmp.eq.f32.partialorder %v3597, %v3599
    %v3601 = vsel %vm3600, %v3596, inf
    %3602 = vmin.xlane.f32.xlu0 %v3601
    %v3603 = vpop.xlane.xlu0 %3602
    %v3604 = vcvt.f32.s32 %v3603
    %v3605 = vcvt.f32.s32 %v3599
    %v3606 = vshll.u32 %v3605, 16
    %v3607 = vadd.s32 %v3606, %v3604
    %v3608 = vsel %vm232, %v3550, 2147483647
    %v3609 = vand.u32 %v3608, 65535
    %v3610 = vshra.s32 %v3608, 16
    %v3611 = vcvt.s32.f32 %v3609
    %v3612 = vcvt.s32.f32 %v3610
    %3613 = vmin.xlane.f32.xlu0 %v3612
    %v3614 = vpop.xlane.xlu0 %3613
    %vm3615 = vcmp.eq.f32.partialorder %v3612, %v3614
    %v3616 = vsel %vm3615, %v3611, inf
    %3617 = vmin.xlane.f32.xlu0 %v3616
    %v3618 = vpop.xlane.xlu0 %3617
    %v3619 = vcvt.f32.s32 %v3618
    %v3620 = vcvt.f32.s32 %v3614
    %v3621 = vshll.u32 %v3620, 16
    %v3622 = vadd.s32 %v3621, %v3619
    %v3623 = vsel %vm232, %v3551, 2147483647
    %v3624 = vand.u32 %v3623, 65535
    %v3625 = vshra.s32 %v3623, 16
    %v3626 = vcvt.s32.f32 %v3624
    %v3627 = vcvt.s32.f32 %v3625
    %3628 = vmin.xlane.f32.xlu0 %v3627
    %v3629 = vpop.xlane.xlu0 %3628
    %vm3630 = vcmp.eq.f32.partialorder %v3627, %v3629
    %v3631 = vsel %vm3630, %v3626, inf
    %3632 = vmin.xlane.f32.xlu0 %v3631
    %v3633 = vpop.xlane.xlu0 %3632
    %v3634 = vcvt.f32.s32 %v3633
    %v3635 = vcvt.f32.s32 %v3629
    %v3636 = vshll.u32 %v3635, 16
    %v3637 = vadd.s32 %v3636, %v3634
    %v3638 = vsel %vm232, %v3552, 2147483647
    %v3639 = vand.u32 %v3638, 65535
    %v3640 = vshra.s32 %v3638, 16
    %v3641 = vcvt.s32.f32 %v3639
    %v3642 = vcvt.s32.f32 %v3640
    %3643 = vmin.xlane.f32.xlu0 %v3642
    %v3644 = vpop.xlane.xlu0 %3643
    %vm3645 = vcmp.eq.f32.partialorder %v3642, %v3644
    %v3646 = vsel %vm3645, %v3641, inf
    %3647 = vmin.xlane.f32.xlu0 %v3646
    %v3648 = vpop.xlane.xlu0 %3647
    %v3649 = vcvt.f32.s32 %v3648
    %v3650 = vcvt.f32.s32 %v3644
    %v3651 = vshll.u32 %v3650, 16
    %v3652 = vadd.s32 %v3651, %v3649
    %v3653 = vsel %vm232, %v3553, 2147483647
    %v3654 = vand.u32 %v3653, 65535
    %v3655 = vshra.s32 %v3653, 16
    %v3656 = vcvt.s32.f32 %v3654
    %v3657 = vcvt.s32.f32 %v3655
    %3658 = vmin.xlane.f32.xlu0 %v3657
    %v3659 = vpop.xlane.xlu0 %3658
    %vm3660 = vcmp.eq.f32.partialorder %v3657, %v3659
    %v3661 = vsel %vm3660, %v3656, inf
    %3662 = vmin.xlane.f32.xlu0 %v3661
    %v3663 = vpop.xlane.xlu0 %3662
    %v3664 = vcvt.f32.s32 %v3663
    %v3665 = vcvt.f32.s32 %v3659
    %v3666 = vshll.u32 %v3665, 16
    %v3667 = vadd.s32 %v3666, %v3664
    %v3668 = vsel %vm232, %v3554, 2147483647
    %v3669 = vand.u32 %v3668, 65535
    %v3670 = vshra.s32 %v3668, 16
    %v3671 = vcvt.s32.f32 %v3669
    %v3672 = vcvt.s32.f32 %v3670
    %3673 = vmin.xlane.f32.xlu0 %v3672
    %v3674 = vpop.xlane.xlu0 %3673
    %vm3675 = vcmp.eq.f32.partialorder %v3672, %v3674
    %v3676 = vsel %vm3675, %v3671, inf
    %3677 = vmin.xlane.f32.xlu0 %v3676
    %v3678 = vpop.xlane.xlu0 %3677
    %v3679 = vcvt.f32.s32 %v3678
    %v3680 = vcvt.f32.s32 %v3674
    %v3681 = vshll.u32 %v3680, 16
    %v3682 = vadd.s32 %v3681, %v3679
    %v3683 = vsel %vm232, %v3555, 2147483647
    %v3684 = vand.u32 %v3683, 65535
    %v3685 = vshra.s32 %v3683, 16
    %v3686 = vcvt.s32.f32 %v3684
    %v3687 = vcvt.s32.f32 %v3685
    %3688 = vmin.xlane.f32.xlu0 %v3687
    %v3689 = vpop.xlane.xlu0 %3688
    %vm3690 = vcmp.eq.f32.partialorder %v3687, %v3689
    %v3691 = vsel %vm3690, %v3686, inf
    %3692 = vmin.xlane.f32.xlu0 %v3691
    %v3693 = vpop.xlane.xlu0 %3692
    %v3694 = vcvt.f32.s32 %v3693
    %v3695 = vcvt.f32.s32 %v3689
    %v3696 = vshll.u32 %v3695, 16
    %v3697 = vadd.s32 %v3696, %v3694
    %v3698 = vsel %vm232, %v3556, 2147483647
    %v3699 = vand.u32 %v3698, 65535
    %v3700 = vshra.s32 %v3698, 16
    %v3701 = vcvt.s32.f32 %v3699
    %v3702 = vcvt.s32.f32 %v3700
    %3703 = vmin.xlane.f32.xlu0 %v3702
    %v3704 = vpop.xlane.xlu0 %3703
    %vm3705 = vcmp.eq.f32.partialorder %v3702, %v3704
    %v3706 = vsel %vm3705, %v3701, inf
    %3707 = vmin.xlane.f32.xlu0 %v3706
    %v3708 = vpop.xlane.xlu0 %3707
    %v3709 = vcvt.f32.s32 %v3708
    %v3710 = vcvt.f32.s32 %v3704
    %v3711 = vshll.u32 %v3710, 16
    %v3712 = vadd.s32 %v3711, %v3709
    %v3713 = vsel %vm232, %v3557, 2147483647
    %v3714 = vand.u32 %v3713, 65535
    %v3715 = vshra.s32 %v3713, 16
    %v3716 = vcvt.s32.f32 %v3714
    %v3717 = vcvt.s32.f32 %v3715
    %3718 = vmin.xlane.f32.xlu0 %v3717
    %v3719 = vpop.xlane.xlu0 %3718
    %vm3720 = vcmp.eq.f32.partialorder %v3717, %v3719
    %v3721 = vsel %vm3720, %v3716, inf
    %3722 = vmin.xlane.f32.xlu0 %v3721
    %v3723 = vpop.xlane.xlu0 %3722
    %v3724 = vcvt.f32.s32 %v3723
    %v3725 = vcvt.f32.s32 %v3719
    %v3726 = vshll.u32 %v3725, 16
    %v3727 = vadd.s32 %v3726, %v3724
    %v3728 = vsel %vm232, %v3558, 2147483647
    %v3729 = vand.u32 %v3728, 65535
    %v3730 = vshra.s32 %v3728, 16
    %v3731 = vcvt.s32.f32 %v3729
    %v3732 = vcvt.s32.f32 %v3730
    %3733 = vmin.xlane.f32.xlu0 %v3732
    %v3734 = vpop.xlane.xlu0 %3733
    %vm3735 = vcmp.eq.f32.partialorder %v3732, %v3734
    %v3736 = vsel %vm3735, %v3731, inf
    %3737 = vmin.xlane.f32.xlu0 %v3736
    %v3738 = vpop.xlane.xlu0 %3737
    %v3739 = vcvt.f32.s32 %v3738
    %v3740 = vcvt.f32.s32 %v3734
    %v3741 = vshll.u32 %v3740, 16
    %v3742 = vadd.s32 %v3741, %v3739
    %v3743 = vsel %vm232, %v3559, 2147483647
    %v3744 = vand.u32 %v3743, 65535
    %v3745 = vshra.s32 %v3743, 16
    %v3746 = vcvt.s32.f32 %v3744
    %v3747 = vcvt.s32.f32 %v3745
    %3748 = vmin.xlane.f32.xlu0 %v3747
    %v3749 = vpop.xlane.xlu0 %3748
    %vm3750 = vcmp.eq.f32.partialorder %v3747, %v3749
    %v3751 = vsel %vm3750, %v3746, inf
    %3752 = vmin.xlane.f32.xlu0 %v3751
    %v3753 = vpop.xlane.xlu0 %3752
    %v3754 = vcvt.f32.s32 %v3753
    %v3755 = vcvt.f32.s32 %v3749
    %v3756 = vshll.u32 %v3755, 16
    %v3757 = vadd.s32 %v3756, %v3754
    %v3758 = vsel %vm232, %v3560, 2147483647
    %v3759 = vand.u32 %v3758, 65535
    %v3760 = vshra.s32 %v3758, 16
    %v3761 = vcvt.s32.f32 %v3759
    %v3762 = vcvt.s32.f32 %v3760
    %3763 = vmin.xlane.f32.xlu0 %v3762
    %v3764 = vpop.xlane.xlu0 %3763
    %vm3765 = vcmp.eq.f32.partialorder %v3762, %v3764
    %v3766 = vsel %vm3765, %v3761, inf
    %3767 = vmin.xlane.f32.xlu0 %v3766
    %v3768 = vpop.xlane.xlu0 %3767
    %v3769 = vcvt.f32.s32 %v3768
    %v3770 = vcvt.f32.s32 %v3764
    %v3771 = vshll.u32 %v3770, 16
    %v3772 = vadd.s32 %v3771, %v3769
    %v3773 = vsel %vm232, %v3561, 2147483647
    %v3774 = vand.u32 %v3773, 65535
    %v3775 = vshra.s32 %v3773, 16
    %v3776 = vcvt.s32.f32 %v3774
    %v3777 = vcvt.s32.f32 %v3775
    %3778 = vmin.xlane.f32.xlu0 %v3777
    %v3779 = vpop.xlane.xlu0 %3778
    %vm3780 = vcmp.eq.f32.partialorder %v3777, %v3779
    %v3781 = vsel %vm3780, %v3776, inf
    %3782 = vmin.xlane.f32.xlu0 %v3781
    %v3783 = vpop.xlane.xlu0 %3782
    %v3784 = vcvt.f32.s32 %v3783
    %v3785 = vcvt.f32.s32 %v3779
    %v3786 = vshll.u32 %v3785, 16
    %v3787 = vadd.s32 %v3786, %v3784
    %v3788 = vsel %vm232, %v3562, 2147483647
    %v3789 = vand.u32 %v3788, 65535
    %v3790 = vshra.s32 %v3788, 16
    %v3791 = vcvt.s32.f32 %v3789
    %v3792 = vcvt.s32.f32 %v3790
    %3793 = vmin.xlane.f32.xlu0 %v3792
    %v3794 = vpop.xlane.xlu0 %3793
    %vm3795 = vcmp.eq.f32.partialorder %v3792, %v3794
    %v3796 = vsel %vm3795, %v3791, inf
    %3797 = vmin.xlane.f32.xlu0 %v3796
    %v3798 = vpop.xlane.xlu0 %3797
    %v3799 = vcvt.f32.s32 %v3798
    %v3800 = vcvt.f32.s32 %v3794
    %v3801 = vshll.u32 %v3800, 16
    %v3802 = vadd.s32 %v3801, %v3799
    %vm3803 = vcmp.eq.s32.totalorder %v33, %v3577
    %vm3804 = vcmp.eq.s32.totalorder %v33, %v3592
    %vm3805 = vcmp.eq.s32.totalorder %v33, %v3607
    %vm3806 = vcmp.eq.s32.totalorder %v33, %v3622
    %vm3807 = vcmp.eq.s32.totalorder %v33, %v3637
    %vm3808 = vcmp.eq.s32.totalorder %v33, %v3652
    %vm3809 = vcmp.eq.s32.totalorder %v33, %v3667
    %vm3810 = vcmp.eq.s32.totalorder %v33, %v3682
    %vm3811 = vcmp.eq.s32.totalorder %v33, %v3697
    %vm3812 = vcmp.eq.s32.totalorder %v33, %v3712
    %vm3813 = vcmp.eq.s32.totalorder %v33, %v3727
    %vm3814 = vcmp.eq.s32.totalorder %v33, %v3742
    %vm3815 = vcmp.eq.s32.totalorder %v33, %v3757
    %vm3816 = vcmp.eq.s32.totalorder %v33, %v3772
    %vm3817 = vcmp.eq.s32.totalorder %v33, %v3787
    %vm3818 = vcmp.eq.s32.totalorder %v33, %v3802
    %v3819 = vsel %vm3803, -inf, %v3389
    %v3820 = vsel %vm3804, -inf, %v3394
    %v3821 = vsel %vm3805, -inf, %v3399
    %v3822 = vsel %vm3806, -inf, %v3404
    %v3823 = vsel %vm3807, -inf, %v3409
    %v3824 = vsel %vm3808, -inf, %v3414
    %v3825 = vsel %vm3809, -inf, %v3419
    %v3826 = vsel %vm3810, -inf, %v3424
    %v3827 = vsel %vm3811, -inf, %v3429
    %v3828 = vsel %vm3812, -inf, %v3434
    %v3829 = vsel %vm3813, -inf, %v3439
    %v3830 = vsel %vm3814, -inf, %v3444
    %v3831 = vsel %vm3815, -inf, %v3449
    %v3832 = vsel %vm3816, -inf, %v3454
    %v3833 = vsel %vm3817, -inf, %v3459
    %v3834 = vsel %vm3818, -inf, %v3464
    %v3835 = vsel %vm232, %v3819, -inf
    %3836 = vmax.xlane.f32.xlu0 %v3835
    %v3837 = vpop.xlane.xlu0 %3836
    %v3838 = vsel %vm232, %v3820, -inf
    %3839 = vmax.xlane.f32.xlu0 %v3838
    %v3840 = vpop.xlane.xlu0 %3839
    %v3841 = vsel %vm232, %v3821, -inf
    %3842 = vmax.xlane.f32.xlu0 %v3841
    %v3843 = vpop.xlane.xlu0 %3842
    %v3844 = vsel %vm232, %v3822, -inf
    %3845 = vmax.xlane.f32.xlu0 %v3844
    %v3846 = vpop.xlane.xlu0 %3845
    %v3847 = vsel %vm232, %v3823, -inf
    %3848 = vmax.xlane.f32.xlu0 %v3847
    %v3849 = vpop.xlane.xlu0 %3848
    %v3850 = vsel %vm232, %v3824, -inf
    %3851 = vmax.xlane.f32.xlu0 %v3850
    %v3852 = vpop.xlane.xlu0 %3851
    %v3853 = vsel %vm232, %v3825, -inf
    %3854 = vmax.xlane.f32.xlu0 %v3853
    %v3855 = vpop.xlane.xlu0 %3854
    %v3856 = vsel %vm232, %v3826, -inf
    %3857 = vmax.xlane.f32.xlu0 %v3856
    %v3858 = vpop.xlane.xlu0 %3857
    %v3859 = vsel %vm232, %v3827, -inf
    %3860 = vmax.xlane.f32.xlu0 %v3859
    %v3861 = vpop.xlane.xlu0 %3860
    %v3862 = vsel %vm232, %v3828, -inf
    %3863 = vmax.xlane.f32.xlu0 %v3862
    %v3864 = vpop.xlane.xlu0 %3863
    %v3865 = vsel %vm232, %v3829, -inf
    %3866 = vmax.xlane.f32.xlu0 %v3865
    %v3867 = vpop.xlane.xlu0 %3866
    %v3868 = vsel %vm232, %v3830, -inf
    %3869 = vmax.xlane.f32.xlu0 %v3868
    %v3870 = vpop.xlane.xlu0 %3869
    %v3871 = vsel %vm232, %v3831, -inf
    %3872 = vmax.xlane.f32.xlu0 %v3871
    %v3873 = vpop.xlane.xlu0 %3872
    %v3874 = vsel %vm232, %v3832, -inf
    %3875 = vmax.xlane.f32.xlu0 %v3874
    %v3876 = vpop.xlane.xlu0 %3875
    %v3877 = vsel %vm232, %v3833, -inf
    %3878 = vmax.xlane.f32.xlu0 %v3877
    %v3879 = vpop.xlane.xlu0 %3878
    %v3880 = vsel %vm232, %v3834, -inf
    %3881 = vmax.xlane.f32.xlu0 %v3880
    %v3882 = vpop.xlane.xlu0 %3881
    %v3883 = vadd.f32 %v3515, %v3837
    %v3884 = vadd.f32 %v3516, %v3840
    %v3885 = vadd.f32 %v3517, %v3843
    %v3886 = vadd.f32 %v3518, %v3846
    %v3887 = vadd.f32 %v3519, %v3849
    %v3888 = vadd.f32 %v3520, %v3852
    %v3889 = vadd.f32 %v3521, %v3855
    %v3890 = vadd.f32 %v3522, %v3858
    %v3891 = vadd.f32 %v3523, %v3861
    %v3892 = vadd.f32 %v3524, %v3864
    %v3893 = vadd.f32 %v3525, %v3867
    %v3894 = vadd.f32 %v3526, %v3870
    %v3895 = vadd.f32 %v3527, %v3873
    %v3896 = vadd.f32 %v3528, %v3876
    %v3897 = vadd.f32 %v3529, %v3879
    %v3898 = vadd.f32 %v3530, %v3882
    %v3899 = vmul.f32 %v3883, 0.5
    %v3900 = vmul.f32 %v3884, 0.5
    %v3901 = vmul.f32 %v3885, 0.5
    %v3902 = vmul.f32 %v3886, 0.5
    %v3903 = vmul.f32 %v3887, 0.5
    %v3904 = vmul.f32 %v3888, 0.5
    %v3905 = vmul.f32 %v3889, 0.5
    %v3906 = vmul.f32 %v3890, 0.5
    %v3907 = vmul.f32 %v3891, 0.5
    %v3908 = vmul.f32 %v3892, 0.5
    %v3909 = vmul.f32 %v3893, 0.5
    %v3910 = vmul.f32 %v3894, 0.5
    %v3911 = vmul.f32 %v3895, 0.5
    %v3912 = vmul.f32 %v3896, 0.5
    %v3913 = vmul.f32 %v3897, 0.5
    %v3914 = vmul.f32 %v3898, 0.5
    %v3915 = vsel %vm232, %v3389, inf
    %3916 = vmin.xlane.f32.xlu0 %v3915
    %v3917 = vpop.xlane.xlu0 %3916
    %v3918 = vsel %vm232, %v3394, inf
    %3919 = vmin.xlane.f32.xlu0 %v3918
    %v3920 = vpop.xlane.xlu0 %3919
    %v3921 = vsel %vm232, %v3399, inf
    %3922 = vmin.xlane.f32.xlu0 %v3921
    %v3923 = vpop.xlane.xlu0 %3922
    %v3924 = vsel %vm232, %v3404, inf
    %3925 = vmin.xlane.f32.xlu0 %v3924
    %v3926 = vpop.xlane.xlu0 %3925
    %v3927 = vsel %vm232, %v3409, inf
    %3928 = vmin.xlane.f32.xlu0 %v3927
    %v3929 = vpop.xlane.xlu0 %3928
    %v3930 = vsel %vm232, %v3414, inf
    %3931 = vmin.xlane.f32.xlu0 %v3930
    %v3932 = vpop.xlane.xlu0 %3931
    %v3933 = vsel %vm232, %v3419, inf
    %3934 = vmin.xlane.f32.xlu0 %v3933
    %v3935 = vpop.xlane.xlu0 %3934
    %v3936 = vsel %vm232, %v3424, inf
    %3937 = vmin.xlane.f32.xlu0 %v3936
    %v3938 = vpop.xlane.xlu0 %3937
    %v3939 = vsel %vm232, %v3429, inf
    %3940 = vmin.xlane.f32.xlu0 %v3939
    %v3941 = vpop.xlane.xlu0 %3940
    %v3942 = vsel %vm232, %v3434, inf
    %3943 = vmin.xlane.f32.xlu0 %v3942
    %v3944 = vpop.xlane.xlu0 %3943
    %v3945 = vsel %vm232, %v3439, inf
    %3946 = vmin.xlane.f32.xlu0 %v3945
    %v3947 = vpop.xlane.xlu0 %3946
    %v3948 = vsel %vm232, %v3444, inf
    %3949 = vmin.xlane.f32.xlu0 %v3948
    %v3950 = vpop.xlane.xlu0 %3949
    %v3951 = vsel %vm232, %v3449, inf
    %3952 = vmin.xlane.f32.xlu0 %v3951
    %v3953 = vpop.xlane.xlu0 %3952
    %v3954 = vsel %vm232, %v3454, inf
    %3955 = vmin.xlane.f32.xlu0 %v3954
    %v3956 = vpop.xlane.xlu0 %3955
    %v3957 = vsel %vm232, %v3459, inf
    %3958 = vmin.xlane.f32.xlu0 %v3957
    %v3959 = vpop.xlane.xlu0 %3958
    %v3960 = vsel %vm232, %v3464, inf
    %3961 = vmin.xlane.f32.xlu0 %v3960
    %v3962 = vpop.xlane.xlu0 %3961
    %v3963 = vadd.f32 %v3917, 0.0
    %v3964 = vadd.f32 %v3920, 0.0
    %v3965 = vadd.f32 %v3923, 0.0
    %v3966 = vadd.f32 %v3926, 0.0
    %v3967 = vadd.f32 %v3929, 0.0
    %v3968 = vadd.f32 %v3932, 0.0
    %v3969 = vadd.f32 %v3935, 0.0
    %v3970 = vadd.f32 %v3938, 0.0
    %v3971 = vadd.f32 %v3941, 0.0
    %v3972 = vadd.f32 %v3944, 0.0
    %v3973 = vadd.f32 %v3947, 0.0
    %v3974 = vadd.f32 %v3950, 0.0
    %v3975 = vadd.f32 %v3953, 0.0
    %v3976 = vadd.f32 %v3956, 0.0
    %v3977 = vadd.f32 %v3959, 0.0
    %v3978 = vadd.f32 %v3962, 0.0
    %vm3979 = vcmp.eq.f32.partialorder %v3389, %v3917
    %vm3980 = vcmp.eq.f32.partialorder %v3394, %v3920
    %vm3981 = vcmp.eq.f32.partialorder %v3399, %v3923
    %vm3982 = vcmp.eq.f32.partialorder %v3404, %v3926
    %vm3983 = vcmp.eq.f32.partialorder %v3409, %v3929
    %vm3984 = vcmp.eq.f32.partialorder %v3414, %v3932
    %vm3985 = vcmp.eq.f32.partialorder %v3419, %v3935
    %vm3986 = vcmp.eq.f32.partialorder %v3424, %v3938
    %vm3987 = vcmp.eq.f32.partialorder %v3429, %v3941
    %vm3988 = vcmp.eq.f32.partialorder %v3434, %v3944
    %vm3989 = vcmp.eq.f32.partialorder %v3439, %v3947
    %vm3990 = vcmp.eq.f32.partialorder %v3444, %v3950
    %vm3991 = vcmp.eq.f32.partialorder %v3449, %v3953
    %vm3992 = vcmp.eq.f32.partialorder %v3454, %v3956
    %vm3993 = vcmp.eq.f32.partialorder %v3459, %v3959
    %vm3994 = vcmp.eq.f32.partialorder %v3464, %v3962
    %v3995 = vsel %vm3979, %v33, 64
    %v3996 = vsel %vm3980, %v33, 64
    %v3997 = vsel %vm3981, %v33, 64
    %v3998 = vsel %vm3982, %v33, 64
    %v3999 = vsel %vm3983, %v33, 64
    %v4000 = vsel %vm3984, %v33, 64
    %v4001 = vsel %vm3985, %v33, 64
    %v4002 = vsel %vm3986, %v33, 64
    %v4003 = vsel %vm3987, %v33, 64
    %v4004 = vsel %vm3988, %v33, 64
    %v4005 = vsel %vm3989, %v33, 64
    %v4006 = vsel %vm3990, %v33, 64
    %v4007 = vsel %vm3991, %v33, 64
    %v4008 = vsel %vm3992, %v33, 64
    %v4009 = vsel %vm3993, %v33, 64
    %v4010 = vsel %vm3994, %v33, 64
    %v4011 = vsel %vm232, %v3995, 2147483647
    %v4012 = vand.u32 %v4011, 65535
    %v4013 = vshra.s32 %v4011, 16
    %v4014 = vcvt.s32.f32 %v4012
    %v4015 = vcvt.s32.f32 %v4013
    %4016 = vmin.xlane.f32.xlu0 %v4015
    %v4017 = vpop.xlane.xlu0 %4016
    %vm4018 = vcmp.eq.f32.partialorder %v4015, %v4017
    %v4019 = vsel %vm4018, %v4014, inf
    %4020 = vmin.xlane.f32.xlu0 %v4019
    %v4021 = vpop.xlane.xlu0 %4020
    %v4022 = vcvt.f32.s32 %v4021
    %v4023 = vcvt.f32.s32 %v4017
    %v4024 = vshll.u32 %v4023, 16
    %v4025 = vadd.s32 %v4024, %v4022
    %v4026 = vsel %vm232, %v3996, 2147483647
    %v4027 = vand.u32 %v4026, 65535
    %v4028 = vshra.s32 %v4026, 16
    %v4029 = vcvt.s32.f32 %v4027
    %v4030 = vcvt.s32.f32 %v4028
    %4031 = vmin.xlane.f32.xlu0 %v4030
    %v4032 = vpop.xlane.xlu0 %4031
    %vm4033 = vcmp.eq.f32.partialorder %v4030, %v4032
    %v4034 = vsel %vm4033, %v4029, inf
    %4035 = vmin.xlane.f32.xlu0 %v4034
    %v4036 = vpop.xlane.xlu0 %4035
    %v4037 = vcvt.f32.s32 %v4036
    %v4038 = vcvt.f32.s32 %v4032
    %v4039 = vshll.u32 %v4038, 16
    %v4040 = vadd.s32 %v4039, %v4037
    %v4041 = vsel %vm232, %v3997, 2147483647
    %v4042 = vand.u32 %v4041, 65535
    %v4043 = vshra.s32 %v4041, 16
    %v4044 = vcvt.s32.f32 %v4042
    %v4045 = vcvt.s32.f32 %v4043
    %4046 = vmin.xlane.f32.xlu0 %v4045
    %v4047 = vpop.xlane.xlu0 %4046
    %vm4048 = vcmp.eq.f32.partialorder %v4045, %v4047
    %v4049 = vsel %vm4048, %v4044, inf
    %4050 = vmin.xlane.f32.xlu0 %v4049
    %v4051 = vpop.xlane.xlu0 %4050
    %v4052 = vcvt.f32.s32 %v4051
    %v4053 = vcvt.f32.s32 %v4047
    %v4054 = vshll.u32 %v4053, 16
    %v4055 = vadd.s32 %v4054, %v4052
    %v4056 = vsel %vm232, %v3998, 2147483647
    %v4057 = vand.u32 %v4056, 65535
    %v4058 = vshra.s32 %v4056, 16
    %v4059 = vcvt.s32.f32 %v4057
    %v4060 = vcvt.s32.f32 %v4058
    %4061 = vmin.xlane.f32.xlu0 %v4060
    %v4062 = vpop.xlane.xlu0 %4061
    %vm4063 = vcmp.eq.f32.partialorder %v4060, %v4062
    %v4064 = vsel %vm4063, %v4059, inf
    %4065 = vmin.xlane.f32.xlu0 %v4064
    %v4066 = vpop.xlane.xlu0 %4065
    %v4067 = vcvt.f32.s32 %v4066
    %v4068 = vcvt.f32.s32 %v4062
    %v4069 = vshll.u32 %v4068, 16
    %v4070 = vadd.s32 %v4069, %v4067
    %v4071 = vsel %vm232, %v3999, 2147483647
    %v4072 = vand.u32 %v4071, 65535
    %v4073 = vshra.s32 %v4071, 16
    %v4074 = vcvt.s32.f32 %v4072
    %v4075 = vcvt.s32.f32 %v4073
    %4076 = vmin.xlane.f32.xlu0 %v4075
    %v4077 = vpop.xlane.xlu0 %4076
    %vm4078 = vcmp.eq.f32.partialorder %v4075, %v4077
    %v4079 = vsel %vm4078, %v4074, inf
    %4080 = vmin.xlane.f32.xlu0 %v4079
    %v4081 = vpop.xlane.xlu0 %4080
    %v4082 = vcvt.f32.s32 %v4081
    %v4083 = vcvt.f32.s32 %v4077
    %v4084 = vshll.u32 %v4083, 16
    %v4085 = vadd.s32 %v4084, %v4082
    %v4086 = vsel %vm232, %v4000, 2147483647
    %v4087 = vand.u32 %v4086, 65535
    %v4088 = vshra.s32 %v4086, 16
    %v4089 = vcvt.s32.f32 %v4087
    %v4090 = vcvt.s32.f32 %v4088
    %4091 = vmin.xlane.f32.xlu0 %v4090
    %v4092 = vpop.xlane.xlu0 %4091
    %vm4093 = vcmp.eq.f32.partialorder %v4090, %v4092
    %v4094 = vsel %vm4093, %v4089, inf
    %4095 = vmin.xlane.f32.xlu0 %v4094
    %v4096 = vpop.xlane.xlu0 %4095
    %v4097 = vcvt.f32.s32 %v4096
    %v4098 = vcvt.f32.s32 %v4092
    %v4099 = vshll.u32 %v4098, 16
    %v4100 = vadd.s32 %v4099, %v4097
    %v4101 = vsel %vm232, %v4001, 2147483647
    %v4102 = vand.u32 %v4101, 65535
    %v4103 = vshra.s32 %v4101, 16
    %v4104 = vcvt.s32.f32 %v4102
    %v4105 = vcvt.s32.f32 %v4103
    %4106 = vmin.xlane.f32.xlu0 %v4105
    %v4107 = vpop.xlane.xlu0 %4106
    %vm4108 = vcmp.eq.f32.partialorder %v4105, %v4107
    %v4109 = vsel %vm4108, %v4104, inf
    %4110 = vmin.xlane.f32.xlu0 %v4109
    %v4111 = vpop.xlane.xlu0 %4110
    %v4112 = vcvt.f32.s32 %v4111
    %v4113 = vcvt.f32.s32 %v4107
    %v4114 = vshll.u32 %v4113, 16
    %v4115 = vadd.s32 %v4114, %v4112
    %v4116 = vsel %vm232, %v4002, 2147483647
    %v4117 = vand.u32 %v4116, 65535
    %v4118 = vshra.s32 %v4116, 16
    %v4119 = vcvt.s32.f32 %v4117
    %v4120 = vcvt.s32.f32 %v4118
    %4121 = vmin.xlane.f32.xlu0 %v4120
    %v4122 = vpop.xlane.xlu0 %4121
    %vm4123 = vcmp.eq.f32.partialorder %v4120, %v4122
    %v4124 = vsel %vm4123, %v4119, inf
    %4125 = vmin.xlane.f32.xlu0 %v4124
    %v4126 = vpop.xlane.xlu0 %4125
    %v4127 = vcvt.f32.s32 %v4126
    %v4128 = vcvt.f32.s32 %v4122
    %v4129 = vshll.u32 %v4128, 16
    %v4130 = vadd.s32 %v4129, %v4127
    %v4131 = vsel %vm232, %v4003, 2147483647
    %v4132 = vand.u32 %v4131, 65535
    %v4133 = vshra.s32 %v4131, 16
    %v4134 = vcvt.s32.f32 %v4132
    %v4135 = vcvt.s32.f32 %v4133
    %4136 = vmin.xlane.f32.xlu0 %v4135
    %v4137 = vpop.xlane.xlu0 %4136
    %vm4138 = vcmp.eq.f32.partialorder %v4135, %v4137
    %v4139 = vsel %vm4138, %v4134, inf
    %4140 = vmin.xlane.f32.xlu0 %v4139
    %v4141 = vpop.xlane.xlu0 %4140
    %v4142 = vcvt.f32.s32 %v4141
    %v4143 = vcvt.f32.s32 %v4137
    %v4144 = vshll.u32 %v4143, 16
    %v4145 = vadd.s32 %v4144, %v4142
    %v4146 = vsel %vm232, %v4004, 2147483647
    %v4147 = vand.u32 %v4146, 65535
    %v4148 = vshra.s32 %v4146, 16
    %v4149 = vcvt.s32.f32 %v4147
    %v4150 = vcvt.s32.f32 %v4148
    %4151 = vmin.xlane.f32.xlu0 %v4150
    %v4152 = vpop.xlane.xlu0 %4151
    %vm4153 = vcmp.eq.f32.partialorder %v4150, %v4152
    %v4154 = vsel %vm4153, %v4149, inf
    %4155 = vmin.xlane.f32.xlu0 %v4154
    %v4156 = vpop.xlane.xlu0 %4155
    %v4157 = vcvt.f32.s32 %v4156
    %v4158 = vcvt.f32.s32 %v4152
    %v4159 = vshll.u32 %v4158, 16
    %v4160 = vadd.s32 %v4159, %v4157
    %v4161 = vsel %vm232, %v4005, 2147483647
    %v4162 = vand.u32 %v4161, 65535
    %v4163 = vshra.s32 %v4161, 16
    %v4164 = vcvt.s32.f32 %v4162
    %v4165 = vcvt.s32.f32 %v4163
    %4166 = vmin.xlane.f32.xlu0 %v4165
    %v4167 = vpop.xlane.xlu0 %4166
    %vm4168 = vcmp.eq.f32.partialorder %v4165, %v4167
    %v4169 = vsel %vm4168, %v4164, inf
    %4170 = vmin.xlane.f32.xlu0 %v4169
    %v4171 = vpop.xlane.xlu0 %4170
    %v4172 = vcvt.f32.s32 %v4171
    %v4173 = vcvt.f32.s32 %v4167
    %v4174 = vshll.u32 %v4173, 16
    %v4175 = vadd.s32 %v4174, %v4172
    %v4176 = vsel %vm232, %v4006, 2147483647
    %v4177 = vand.u32 %v4176, 65535
    %v4178 = vshra.s32 %v4176, 16
    %v4179 = vcvt.s32.f32 %v4177
    %v4180 = vcvt.s32.f32 %v4178
    %4181 = vmin.xlane.f32.xlu0 %v4180
    %v4182 = vpop.xlane.xlu0 %4181
    %vm4183 = vcmp.eq.f32.partialorder %v4180, %v4182
    %v4184 = vsel %vm4183, %v4179, inf
    %4185 = vmin.xlane.f32.xlu0 %v4184
    %v4186 = vpop.xlane.xlu0 %4185
    %v4187 = vcvt.f32.s32 %v4186
    %v4188 = vcvt.f32.s32 %v4182
    %v4189 = vshll.u32 %v4188, 16
    %v4190 = vadd.s32 %v4189, %v4187
    %v4191 = vsel %vm232, %v4007, 2147483647
    %v4192 = vand.u32 %v4191, 65535
    %v4193 = vshra.s32 %v4191, 16
    %v4194 = vcvt.s32.f32 %v4192
    %v4195 = vcvt.s32.f32 %v4193
    %4196 = vmin.xlane.f32.xlu0 %v4195
    %v4197 = vpop.xlane.xlu0 %4196
    %vm4198 = vcmp.eq.f32.partialorder %v4195, %v4197
    %v4199 = vsel %vm4198, %v4194, inf
    %4200 = vmin.xlane.f32.xlu0 %v4199
    %v4201 = vpop.xlane.xlu0 %4200
    %v4202 = vcvt.f32.s32 %v4201
    %v4203 = vcvt.f32.s32 %v4197
    %v4204 = vshll.u32 %v4203, 16
    %v4205 = vadd.s32 %v4204, %v4202
    %v4206 = vsel %vm232, %v4008, 2147483647
    %v4207 = vand.u32 %v4206, 65535
    %v4208 = vshra.s32 %v4206, 16
    %v4209 = vcvt.s32.f32 %v4207
    %v4210 = vcvt.s32.f32 %v4208
    %4211 = vmin.xlane.f32.xlu0 %v4210
    %v4212 = vpop.xlane.xlu0 %4211
    %vm4213 = vcmp.eq.f32.partialorder %v4210, %v4212
    %v4214 = vsel %vm4213, %v4209, inf
    %4215 = vmin.xlane.f32.xlu0 %v4214
    %v4216 = vpop.xlane.xlu0 %4215
    %v4217 = vcvt.f32.s32 %v4216
    %v4218 = vcvt.f32.s32 %v4212
    %v4219 = vshll.u32 %v4218, 16
    %v4220 = vadd.s32 %v4219, %v4217
    %v4221 = vsel %vm232, %v4009, 2147483647
    %v4222 = vand.u32 %v4221, 65535
    %v4223 = vshra.s32 %v4221, 16
    %v4224 = vcvt.s32.f32 %v4222
    %v4225 = vcvt.s32.f32 %v4223
    %4226 = vmin.xlane.f32.xlu0 %v4225
    %v4227 = vpop.xlane.xlu0 %4226
    %vm4228 = vcmp.eq.f32.partialorder %v4225, %v4227
    %v4229 = vsel %vm4228, %v4224, inf
    %4230 = vmin.xlane.f32.xlu0 %v4229
    %v4231 = vpop.xlane.xlu0 %4230
    %v4232 = vcvt.f32.s32 %v4231
    %v4233 = vcvt.f32.s32 %v4227
    %v4234 = vshll.u32 %v4233, 16
    %v4235 = vadd.s32 %v4234, %v4232
    %v4236 = vsel %vm232, %v4010, 2147483647
    %v4237 = vand.u32 %v4236, 65535
    %v4238 = vshra.s32 %v4236, 16
    %v4239 = vcvt.s32.f32 %v4237
    %v4240 = vcvt.s32.f32 %v4238
    %4241 = vmin.xlane.f32.xlu0 %v4240
    %v4242 = vpop.xlane.xlu0 %4241
    %vm4243 = vcmp.eq.f32.partialorder %v4240, %v4242
    %v4244 = vsel %vm4243, %v4239, inf
    %4245 = vmin.xlane.f32.xlu0 %v4244
    %v4246 = vpop.xlane.xlu0 %4245
    %v4247 = vcvt.f32.s32 %v4246
    %v4248 = vcvt.f32.s32 %v4242
    %v4249 = vshll.u32 %v4248, 16
    %v4250 = vadd.s32 %v4249, %v4247
    %vm4251 = vcmp.eq.s32.totalorder %v33, %v4025
    %vm4252 = vcmp.eq.s32.totalorder %v33, %v4040
    %vm4253 = vcmp.eq.s32.totalorder %v33, %v4055
    %vm4254 = vcmp.eq.s32.totalorder %v33, %v4070
    %vm4255 = vcmp.eq.s32.totalorder %v33, %v4085
    %vm4256 = vcmp.eq.s32.totalorder %v33, %v4100
    %vm4257 = vcmp.eq.s32.totalorder %v33, %v4115
    %vm4258 = vcmp.eq.s32.totalorder %v33, %v4130
    %vm4259 = vcmp.eq.s32.totalorder %v33, %v4145
    %vm4260 = vcmp.eq.s32.totalorder %v33, %v4160
    %vm4261 = vcmp.eq.s32.totalorder %v33, %v4175
    %vm4262 = vcmp.eq.s32.totalorder %v33, %v4190
    %vm4263 = vcmp.eq.s32.totalorder %v33, %v4205
    %vm4264 = vcmp.eq.s32.totalorder %v33, %v4220
    %vm4265 = vcmp.eq.s32.totalorder %v33, %v4235
    %vm4266 = vcmp.eq.s32.totalorder %v33, %v4250
    %v4267 = vsel %vm4251, inf, %v3389
    %v4268 = vsel %vm4252, inf, %v3394
    %v4269 = vsel %vm4253, inf, %v3399
    %v4270 = vsel %vm4254, inf, %v3404
    %v4271 = vsel %vm4255, inf, %v3409
    %v4272 = vsel %vm4256, inf, %v3414
    %v4273 = vsel %vm4257, inf, %v3419
    %v4274 = vsel %vm4258, inf, %v3424
    %v4275 = vsel %vm4259, inf, %v3429
    %v4276 = vsel %vm4260, inf, %v3434
    %v4277 = vsel %vm4261, inf, %v3439
    %v4278 = vsel %vm4262, inf, %v3444
    %v4279 = vsel %vm4263, inf, %v3449
    %v4280 = vsel %vm4264, inf, %v3454
    %v4281 = vsel %vm4265, inf, %v3459
    %v4282 = vsel %vm4266, inf, %v3464
    %v4283 = vsel %vm232, %v4267, inf
    %4284 = vmin.xlane.f32.xlu0 %v4283
    %v4285 = vpop.xlane.xlu0 %4284
    %v4286 = vsel %vm232, %v4268, inf
    %4287 = vmin.xlane.f32.xlu0 %v4286
    %v4288 = vpop.xlane.xlu0 %4287
    %v4289 = vsel %vm232, %v4269, inf
    %4290 = vmin.xlane.f32.xlu0 %v4289
    %v4291 = vpop.xlane.xlu0 %4290
    %v4292 = vsel %vm232, %v4270, inf
    %4293 = vmin.xlane.f32.xlu0 %v4292
    %v4294 = vpop.xlane.xlu0 %4293
    %v4295 = vsel %vm232, %v4271, inf
    %4296 = vmin.xlane.f32.xlu0 %v4295
    %v4297 = vpop.xlane.xlu0 %4296
    %v4298 = vsel %vm232, %v4272, inf
    %4299 = vmin.xlane.f32.xlu0 %v4298
    %v4300 = vpop.xlane.xlu0 %4299
    %v4301 = vsel %vm232, %v4273, inf
    %4302 = vmin.xlane.f32.xlu0 %v4301
    %v4303 = vpop.xlane.xlu0 %4302
    %v4304 = vsel %vm232, %v4274, inf
    %4305 = vmin.xlane.f32.xlu0 %v4304
    %v4306 = vpop.xlane.xlu0 %4305
    %v4307 = vsel %vm232, %v4275, inf
    %4308 = vmin.xlane.f32.xlu0 %v4307
    %v4309 = vpop.xlane.xlu0 %4308
    %v4310 = vsel %vm232, %v4276, inf
    %4311 = vmin.xlane.f32.xlu0 %v4310
    %v4312 = vpop.xlane.xlu0 %4311
    %v4313 = vsel %vm232, %v4277, inf
    %4314 = vmin.xlane.f32.xlu0 %v4313
    %v4315 = vpop.xlane.xlu0 %4314
    %v4316 = vsel %vm232, %v4278, inf
    %4317 = vmin.xlane.f32.xlu0 %v4316
    %v4318 = vpop.xlane.xlu0 %4317
    %v4319 = vsel %vm232, %v4279, inf
    %4320 = vmin.xlane.f32.xlu0 %v4319
    %v4321 = vpop.xlane.xlu0 %4320
    %v4322 = vsel %vm232, %v4280, inf
    %4323 = vmin.xlane.f32.xlu0 %v4322
    %v4324 = vpop.xlane.xlu0 %4323
    %v4325 = vsel %vm232, %v4281, inf
    %4326 = vmin.xlane.f32.xlu0 %v4325
    %v4327 = vpop.xlane.xlu0 %4326
    %v4328 = vsel %vm232, %v4282, inf
    %4329 = vmin.xlane.f32.xlu0 %v4328
    %v4330 = vpop.xlane.xlu0 %4329
    %v4331 = vadd.f32 %v3963, %v4285
    %v4332 = vadd.f32 %v3964, %v4288
    %v4333 = vadd.f32 %v3965, %v4291
    %v4334 = vadd.f32 %v3966, %v4294
    %v4335 = vadd.f32 %v3967, %v4297
    %v4336 = vadd.f32 %v3968, %v4300
    %v4337 = vadd.f32 %v3969, %v4303
    %v4338 = vadd.f32 %v3970, %v4306
    %v4339 = vadd.f32 %v3971, %v4309
    %v4340 = vadd.f32 %v3972, %v4312
    %v4341 = vadd.f32 %v3973, %v4315
    %v4342 = vadd.f32 %v3974, %v4318
    %v4343 = vadd.f32 %v3975, %v4321
    %v4344 = vadd.f32 %v3976, %v4324
    %v4345 = vadd.f32 %v3977, %v4327
    %v4346 = vadd.f32 %v3978, %v4330
    %v4347 = vmul.f32 %v4331, 0.5
    %v4348 = vmul.f32 %v4332, 0.5
    %v4349 = vmul.f32 %v4333, 0.5
    %v4350 = vmul.f32 %v4334, 0.5
    %v4351 = vmul.f32 %v4335, 0.5
    %v4352 = vmul.f32 %v4336, 0.5
    %v4353 = vmul.f32 %v4337, 0.5
    %v4354 = vmul.f32 %v4338, 0.5
    %v4355 = vmul.f32 %v4339, 0.5
    %v4356 = vmul.f32 %v4340, 0.5
    %v4357 = vmul.f32 %v4341, 0.5
    %v4358 = vmul.f32 %v4342, 0.5
    %v4359 = vmul.f32 %v4343, 0.5
    %v4360 = vmul.f32 %v4344, 0.5
    %v4361 = vmul.f32 %v4345, 0.5
    %v4362 = vmul.f32 %v4346, 0.5
    %v4363 = vadd.f32 %v3899, %v4347
    %v4364 = vadd.f32 %v3900, %v4348
    %v4365 = vadd.f32 %v3901, %v4349
    %v4366 = vadd.f32 %v3902, %v4350
    %v4367 = vadd.f32 %v3903, %v4351
    %v4368 = vadd.f32 %v3904, %v4352
    %v4369 = vadd.f32 %v3905, %v4353
    %v4370 = vadd.f32 %v3906, %v4354
    %v4371 = vadd.f32 %v3907, %v4355
    %v4372 = vadd.f32 %v3908, %v4356
    %v4373 = vadd.f32 %v3909, %v4357
    %v4374 = vadd.f32 %v3910, %v4358
    %v4375 = vadd.f32 %v3911, %v4359
    %v4376 = vadd.f32 %v3912, %v4360
    %v4377 = vadd.f32 %v3913, %v4361
    %v4378 = vadd.f32 %v3914, %v4362
    %v4379 = vmul.f32 %v4363, 0.5
    %v4380 = vmul.f32 %v4364, 0.5
    %v4381 = vmul.f32 %v4365, 0.5
    %v4382 = vmul.f32 %v4366, 0.5
    %v4383 = vmul.f32 %v4367, 0.5
    %v4384 = vmul.f32 %v4368, 0.5
    %v4385 = vmul.f32 %v4369, 0.5
    %v4386 = vmul.f32 %v4370, 0.5
    %v4387 = vmul.f32 %v4371, 0.5
    %v4388 = vmul.f32 %v4372, 0.5
    %v4389 = vmul.f32 %v4373, 0.5
    %v4390 = vmul.f32 %v4374, 0.5
    %v4391 = vmul.f32 %v4375, 0.5
    %v4392 = vmul.f32 %v4376, 0.5
    %v4393 = vmul.f32 %v4377, 0.5
    %v4394 = vmul.f32 %v4378, 0.5
    %vm4395 = vcmask 7168
    %v4396 = vsel %vm4395, %v1145, %v2223
    %v4397 = vsel %vm4395, %v1146, %v2224
    %v4398 = vsel %vm4395, %v1147, %v2225
    %v4399 = vsel %vm4395, %v1148, %v2226
    %v4400 = vsel %vm4395, %v1149, %v2227
    %v4401 = vsel %vm4395, %v1150, %v2228
    %v4402 = vsel %vm4395, %v1151, %v2229
    %v4403 = vsel %vm4395, %v1152, %v2230
    %v4404 = vsel %vm4395, %v1153, %v2231
    %v4405 = vsel %vm4395, %v1154, %v2232
    %v4406 = vsel %vm4395, %v1155, %v2233
    %v4407 = vsel %vm4395, %v1156, %v2234
    %v4408 = vsel %vm4395, %v1157, %v2235
    %v4409 = vsel %vm4395, %v1158, %v2236
    %v4410 = vsel %vm4395, %v1159, %v2237
    %v4411 = vsel %vm4395, %v1160, %v2238
    %vm4412 = vcmask 15360
    %v4413 = vsel %vm4412, %v4396, %v3301
    %v4414 = vsel %vm4412, %v4397, %v3302
    %v4415 = vsel %vm4412, %v4398, %v3303
    %v4416 = vsel %vm4412, %v4399, %v3304
    %v4417 = vsel %vm4412, %v4400, %v3305
    %v4418 = vsel %vm4412, %v4401, %v3306
    %v4419 = vsel %vm4412, %v4402, %v3307
    %v4420 = vsel %vm4412, %v4403, %v3308
    %v4421 = vsel %vm4412, %v4404, %v3309
    %v4422 = vsel %vm4412, %v4405, %v3310
    %v4423 = vsel %vm4412, %v4406, %v3311
    %v4424 = vsel %vm4412, %v4407, %v3312
    %v4425 = vsel %vm4412, %v4408, %v3313
    %v4426 = vsel %vm4412, %v4409, %v3314
    %v4427 = vsel %vm4412, %v4410, %v3315
    %v4428 = vsel %vm4412, %v4411, %v3316
    %vm4429 = vcmask 23552
    %v4430 = vsel %vm4429, %v4413, %v4379
    %v4431 = vsel %vm4429, %v4414, %v4380
    %v4432 = vsel %vm4429, %v4415, %v4381
    %v4433 = vsel %vm4429, %v4416, %v4382
    %v4434 = vsel %vm4429, %v4417, %v4383
    %v4435 = vsel %vm4429, %v4418, %v4384
    %v4436 = vsel %vm4429, %v4419, %v4385
    %v4437 = vsel %vm4429, %v4420, %v4386
    %v4438 = vsel %vm4429, %v4421, %v4387
    %v4439 = vsel %vm4429, %v4422, %v4388
    %v4440 = vsel %vm4429, %v4423, %v4389
    %v4441 = vsel %vm4429, %v4424, %v4390
    %v4442 = vsel %vm4429, %v4425, %v4391
    %v4443 = vsel %vm4429, %v4426, %v4392
    %v4444 = vsel %vm4429, %v4427, %v4393
    %v4445 = vsel %vm4429, %v4428, %v4394
    %4446 = vxpose.xlu0.b32.start [1/16] %v4430, 128
    %4447 = vxpose.xlu0.b32.cont [2/16] %v4431, 128
    %4448 = vxpose.xlu0.b32.cont [3/16] %v4432, 128
    %4449 = vxpose.xlu0.b32.cont [4/16] %v4433, 128
    %4450 = vxpose.xlu0.b32.cont [5/16] %v4434, 128
    %4451 = vxpose.xlu0.b32.cont [6/16] %v4435, 128
    %4452 = vxpose.xlu0.b32.cont [7/16] %v4436, 128
    %4453 = vxpose.xlu0.b32.cont [8/16] %v4437, 128
    %4454 = vxpose.xlu0.b32.cont [9/16] %v4438, 128
    %4455 = vxpose.xlu0.b32.cont [10/16] %v4439, 128
    %4456 = vxpose.xlu0.b32.cont [11/16] %v4440, 128
    %4457 = vxpose.xlu0.b32.cont [12/16] %v4441, 128
    %4458 = vxpose.xlu0.b32.cont [13/16] %v4442, 128
    %4459 = vxpose.xlu0.b32.cont [14/16] %v4443, 128
    %4460 = vxpose.xlu0.b32.cont [15/16] %v4444, 128
    %4461 = vxpose.xlu0.b32.end [16/16] %v4445, 128
    %v4462 = vpop.trf.xlu0
    %v4463 = vpop.trf.xlu0
    %v4464 = vpop.trf.xlu0
    %v4465 = vpop.trf.xlu0
    %v4466 = vpop.trf.xlu0
    %v4467 = vpop.trf.xlu0
    %v4468 = vpop.trf.xlu0
    %v4469 = vpop.trf.xlu0
    %v4470 = vpop.trf.xlu0
    %v4471 = vpop.trf.xlu0
    %v4472 = vpop.trf.xlu0
    %v4473 = vpop.trf.xlu0
    %v4474 = vpop.trf.xlu0
    %v4475 = vpop.trf.xlu0
    %v4476 = vpop.trf.xlu0
    %v4477 = vpop.trf.xlu0
    %v4479 = vlaneseq
    %v4480 = vshrl.u32 %v4479, 7
    %v4481 = vsub.s32 0, %v4480
    %v4482 = vrot.slane %v31, %v4481
    %v4484 = vadd.f32 %v4462, %v4482
    %4485 = vst [vmem:[#allocation2] sm:$0xf] %v4484
    // Predicated region
    $region14: #{tpu_custom_call.1} parent=1 // pred_check
      _
    $region15: #{tpu_custom_call.1} parent=1 // pred_check_branch
      %4487 = sbr.rel (0) target = $region17
    $region16: #{tpu_custom_call.1} parent=1 // pred_region
      %s4489 = ssub.s32 64, 64
      %4490 = vsyncadd [#allocation3], %s4489
      %s4492 = sshll.u32 [#allocation2], 4
      %s4493 = int_to_ptr.vmem [resolvable:$true] %s4492
      %4495 = dma.vmem_to_hbm [thread:$0]  %s4493, 64, %s3, [#allocation3]
    $region17: #{tpu_custom_call.1} parent=1 // pred_fallthru
      _
    // Predicated region
    $region18: #{tpu_custom_call.1} parent=1 // pred_check
      _
    $region19: #{tpu_custom_call.1} parent=1 // pred_check_branch
      %4497 = sbr.rel (0) target = $region21
    $region20: #{tpu_custom_call.1} parent=1 // pred_region
      %4498 = dma.done [#allocation3], 64
    $region21: #{tpu_custom_call.1} parent=1 // pred_fallthru
      _
    %4499 = vsyncpa [#allocation3], 1

</llo_original>
